<compile_context>
chip_gen: v6e
topology: v6e:2x2x1
jax: 0.10.0
libtpu: 0.0.40
codegen_flags: <defaults>
</compile_context>

<pallas_src>
import functools

import jax
import jax.numpy as jnp
from jax.experimental import pallas as pl
from jax.experimental.pallas import tpu as pltpu

LANES = 128


def _round_up(x, m):
    return ((x + m - 1) // m) * m


def _pick_tm(m, tm_max, min_tiles=4):
    """Row-tile size: multiple of 8, <= tm_max, and (when the problem is big
    enough) at least `min_tiles` grid steps so v7x's two TensorCores and the
    output double-buffer actually get exercised."""
    tm = min(tm_max, _round_up(m, 8))
    if m >= min_tiles * 8:
        tm = min(tm, _round_up(-(-m // min_tiles), 8))
    return max(tm, 8)


def _vmem_limit(resident_bytes):
    # Size the scoped-VMEM request from the per-step resident bytes (plus
    # headroom for compiler scratch) instead of a blanket 32 MiB; keeps one
    # code path valid on 64 MiB (v7x) and 128 MiB (v5e/v6e) parts.
    return int(min(96 * 2 ** 20, max(8 * 2 ** 20, 4 * resident_bytes)))


# ---------------------------------------------------------------------------
# Kernels
# ---------------------------------------------------------------------------
def conv_pool_kernel(x_ref, w_ref, b_ref, o_ref, *scratch, plan, use_relu):
    """Fused 3x3 'same' conv + bias (+ReLU) + 2x2 max-pool for one row tile.

    x_ref:  [n_chunks, tm, k]     packed input chunks (bf16, lane-dense)
    w_ref:  [n_w, n_ck*k, 128]    packed conv weights (bf16, cout padded)
    b_ref:  [1, 128]              bias (f32, padded)
    o_ref:  [tm, 128]             pooled conv-output tile
    scratch: optional VMEM [tm, n_ck*k] patch buffer (only when n_ck > 1)

    `plan` is a static tuple, one entry per group of pool corners that share
    the same LHS patch: (chunk_indices, weight_indices).  For each entry the
    kernel assembles ONE [tm, n_ck*k] patch with 128-lane-aligned copies and
    issues one deep MXU dot per weight index; the 2x2 max-pool is a running
    jnp.maximum over the per-corner results.  Bias + ReLU are applied after
    the max (they commute with it).
    """
    k = x_ref.shape[-1]
    patch_ref = scratch[0] if scratch else None
    pooled = None
    for chunk_idxs, w_idxs in plan:
        if len(chunk_idxs) == 1:
            patch = x_ref[chunk_idxs[0]]
        else:
            for t, ci in enumerate(chunk_idxs):
                patch_ref[:, t * k:(t + 1) * k] = x_ref[ci]
            patch = patch_ref[...]
        for wi in w_idxs:
            r = jnp.dot(patch, w_ref[wi], preferred_element_type=jnp.float32)
            pooled = r if pooled is None else jnp.maximum(pooled, r)
    y = pooled + b_ref[...]
    if use_relu:
        y = jnp.maximum(y, 0.0)
    o_ref[...] = y.astype(o_ref.dtype)


def linear_kernel(x_ref, w_ref, b_ref, o_ref):
    o_ref[...] = (jnp.dot(x_ref[...], w_ref[...],
                          preferred_element_type=jnp.float32)
                  + b_ref[...]).astype(o_ref.dtype)


# ---------------------------------------------------------------------------
# Operand packing (XLA-side, cheap; layout plumbing only)
# ---------------------------------------------------------------------------
def _pack_conv1_input(x):
    """cin == 1: wrapper-side im2col (9 taps -> 16 lanes); one slab per pool
    corner, stacked along a leading axis so a tile read is [4, tm, 16]."""
    B, H, W, _ = x.shape
    ws = H // 2 + 1                     # parity grid; row/col ws-1 is junk
    xp = jnp.pad(x[..., 0].astype(jnp.bfloat16), ((0, 0), (1, 3), (1, 3)))
    corners = []
    for pr in (0, 1):
        for pc in (0, 1):
            taps = [xp[:, pr + dy:pr + dy + 2 * ws:2,
                       pc + dx:pc + dx + 2 * ws:2]
                    for dy in range(3) for dx in range(3)]
            p = jnp.stack(taps, axis=-1)                      # [B, ws, ws, 9]
            p = jnp.pad(p, ((0, 0), (0, 0), (0, 0), (0, 7)))  # K -> 16
            corners.append(p.reshape(B * ws * ws, 16))
    return jnp.stack(corners, axis=0), ws                     # [4, m, 16]


def _pack_conv1_weight(w):              # [cout, 1, 3, 3]
    cout = w.shape[0]
    wt = jnp.transpose(w, (2, 3, 1, 0)).reshape(9, cout)
    wt = jnp.pad(wt, ((0, 7), (0, LANES - cout)))
    return wt.astype(jnp.bfloat16)[None]                      # [1, 16, 128]


def _pack_conv2_input(h):
    """cin > 1: pack 4 consecutive padded columns along the channel axis
    (4*cin = 128 lanes for cin=32) and pre-shift the row parities, so every
    in-kernel chunk is a contiguous, lane-dense [tm, 4*cin] load, no halo."""
    B, H, W, C = h.shape
    ws = H // 2 + 1
    hp = jnp.pad(h.astype(jnp.bfloat16), ((0, 0), (1, 3), (1, 3), (0, 0)))
    slabs = []
    for a in (0, 1):                    # row parity of the conv tap row
        for ro in (0, 1):               # extra pooled-row shift (tap row // 2)
            r0 = a + 2 * ro
            cols = [hp[:, r0:r0 + 2 * ws:2, b:b + 2 * ws:2, :]
                    for b in range(4)]
            q = jnp.stack(cols, axis=3)                       # [B,ws,ws,4,C]
            slabs.append(q.reshape(B * ws * ws, 4 * C))
    return jnp.stack(slabs, axis=0), ws                       # [4, m, 4*C]


def _pack_conv2_weight(w):              # [cout, cin, 3, 3]
    cout, cin = w.shape[0], w.shape[1]
    wt = jnp.transpose(w, (2, 3, 1, 0))                       # [dy,dx,cin,cout]
    per_pc = []
    for pc in (0, 1):                   # pool-corner column parity
        rows = []
        for dy in range(3):
            blk = jnp.zeros((4, cin, LANES), jnp.float32)
            blk = blk.at[pc:pc + 3, :, :cout].set(wt[dy])     # dx -> b = pc+dx
            rows.append(blk.reshape(4 * cin, LANES))
        per_pc.append(jnp.concatenate(rows, axis=0))          # [12*cin, 128]
    return jnp.stack(per_pc).astype(jnp.bfloat16)             # [2, 12*cin, 128]


# ---------------------------------------------------------------------------
# Wrappers
# ---------------------------------------------------------------------------
def conv_relu_pool(x_nhwc, w_conv, b_conv, *, use_relu=True):
    """Fused 3x3 'same' conv + bias (+ReLU) + 2x2/2 max-pool. x: [B,H,W,Cin]."""
    B, H, W, cin = x_nhwc.shape
    cout = w_conv.shape[0]
    assert H == W and H % 2 == 0 and cout <= LANES
    ho = H // 2

    if cin == 1:
        packed, ws = _pack_conv1_input(x_nhwc)
        w_stack = _pack_conv1_weight(w_conv)
        plan = tuple(((c,), (0,)) for c in range(4))   # 1 chunk / 1 dot per corner
        tm_max = 256
    else:
        packed, ws = _pack_conv2_input(x_nhwc)
        w_stack = _pack_conv2_weight(w_conv)
        # The two corners of a pool row (pc = 0/1) share one [tm, 3*4*cin]
        # patch; the chunk index for tap row pr+dy is  parity*2 + shift.
        plan = tuple(
            (tuple(((pr + dy) % 2) * 2 + (pr + dy) // 2 for dy in range(3)),
             (0, 1))
            for pr in (0, 1))
        tm_max = 128                                   # vreg-pressure cap

    n_in, m, k = packed.shape
    n_ck = max(len(c) for c, _ in plan)
    assert w_stack.shape[1] == n_ck * k
    # Parity-grid row/col ws-1 is junk (produced, then sliced off below).
    assert ws == ho + 1

    tm = _pick_tm(m, tm_max)
    m_pad = _round_up(m, tm)
    if m_pad > m:
        packed = jnp.pad(packed, ((0, 0), (0, m_pad - m), (0, 0)))
    b_mat = jnp.pad(b_conv.astype(jnp.float32).reshape(1, cout),
                    ((0, 0), (0, LANES - cout)))

    scratch = ([pltpu.VMEM((tm, n_ck * k), jnp.bfloat16)] if n_ck > 1 else [])
    resident = (2 * (n_in * tm * k * 2 + tm * LANES * 2)   # double-buffered tiles
                + w_stack.size * 2 + b_mat.size * 4        # resident weights
                + tm * n_ck * k * 2)                       # scratch patch

    kernel = functools.partial(conv_pool_kernel, plan=plan, use_relu=use_relu)
    out = pl.pallas_call(
        kernel,
        grid=(m_pad // tm,),
        in_specs=[pl.BlockSpec((n_in, tm, k), lambda i: (0, i, 0)),
                  pl.BlockSpec(w_stack.shape, lambda i: (0, 0, 0)),
                  pl.BlockSpec(b_mat.shape, lambda i: (0, 0))],
        out_specs=pl.BlockSpec((tm, LANES), lambda i: (i, 0)),
        out_shape=jax.ShapeDtypeStruct((m_pad, LANES), jnp.bfloat16),
        scratch_shapes=scratch,
        compiler_params=pltpu.CompilerParams(
            dimension_semantics=("parallel",),
            vmem_limit_bytes=_vmem_limit(resident)),
    )(packed, w_stack, b_mat)

    # Drop padded rows, padded output lanes, and the junk parity row/col.
    return out[:m, :cout].reshape(B, ws, ws, cout)[:, :ho, :ho, :]


def linear(x, w_t, b, *, tb_max=256):
    """x: [B, K]; w_t: [K, N] (input-major weight); b: [N]."""
    bn, k = x.shape
    n = w_t.shape[1]
    n_pad = _round_up(max(n, LANES), LANES)      # lane-dense output
    tb = _pick_tm(bn, tb_max)
    b_pad = _round_up(bn, tb)

    xq = jnp.pad(x.astype(jnp.bfloat16), ((0, b_pad - bn), (0, 0)))
    wq = jnp.pad(w_t.astype(jnp.bfloat16), ((0, 0), (0, n_pad - n)))
    bq = jnp.pad(b.astype(jnp.float32).reshape(1, n), ((0, 0), (0, n_pad - n)))

    resident = 2 * (tb * k * 2 + tb * n_pad * 4) + k * n_pad * 2 + n_pad * 4
    out = pl.pallas_call(
        linear_kernel,
        grid=(b_pad // tb,),
        in_specs=[pl.BlockSpec((tb, k), lambda i: (i, 0)),
                  pl.BlockSpec((k, n_pad), lambda i: (0, 0)),
                  pl.BlockSpec((1, n_pad), lambda i: (0, 0))],
        out_specs=pl.BlockSpec((tb, n_pad), lambda i: (i, 0)),
        out_shape=jax.ShapeDtypeStruct((b_pad, n_pad), jnp.float32),
        compiler_params=pltpu.CompilerParams(
            dimension_semantics=("parallel",),
            vmem_limit_bytes=_vmem_limit(resident)),
    )(xq, wq, bq)
    return out[:bn, :n]


def cnn_forward(x_nchw, params, use_relu=True, dropout_r=0.0):
    if dropout_r > 0:
        # TODO(synk): the reference module only instantiates Dropout when
        # dropout_r > 0; this config uses 0.0, so dropout is not implemented.
        raise NotImplementedError("dropout_r > 0 is not supported")
    x = jnp.transpose(x_nchw, (0, 2, 3, 1)).astype(jnp.float32)   # NCHW->NHWC
    h1 = conv_relu_pool(x, params["w1"], params["b1"], use_relu=use_relu)
    # TODO(synk): at large batch, emit conv1's output directly in the packed
    # parity layout conv2 consumes to cut this inter-stage XLA repack (roughly
    # halves forward HBM traffic); at small batch it is negligible.
    h2 = conv_relu_pool(h1, params["w2"], params["b2"], use_relu=use_relu)
    B, hh, ww, cc = h2.shape
    flat = h2.reshape(B, hh * ww * cc)                            # NHWC order
    n = params["wfc"].shape[0]
    # Fold the PyTorch (C,H,W) flatten order into the fc weight (one-time row
    # permutation) instead of transposing the activation at runtime.
    w_perm = jnp.transpose(params["wfc"].reshape(n, cc, hh, ww),
                           (2, 3, 1, 0)).reshape(cc * hh * ww, n)
    return linear(flat, w_perm, params["bfc"])


# ---------------------------------------------------------------------------
# Pure-JAX reference (numerical sanity check) and setup
# ---------------------------------------------------------------------------
def reference_forward(x_nchw, params, use_relu=True):
    x = jnp.transpose(x_nchw, (0, 2, 3, 1)).astype(jnp.float32)

    def conv(v, w, b):
        wh = jnp.transpose(w, (2, 3, 1, 0))                       # HWIO
        y = jax.lax.conv_general_dilated(
            v, wh, (1, 1), "SAME",
            dimension_numbers=("NHWC", "HWIO", "NHWC"))
        return y + b

    def pool(v):
        B, H, W, C = v.shape
        return v.reshape(B, H // 2, 2, W // 2, 2, C).max(axis=(2, 4))

    h = conv(x, params["w1"], params["b1"])
    h = jnp.maximum(h, 0.0) if use_relu else h
    h = pool(h)
    h = conv(h, params["w2"], params["b2"])
    h = jnp.maximum(h, 0.0) if use_relu else h
    h = pool(h)
    flat = jnp.transpose(h, (0, 3, 1, 2)).reshape(x.shape[0], -1)
    return flat @ params["wfc"].T + params["bfc"]


def init_params(num_classes, key):
    k1, k2, k3, k4, k5, k6 = jax.random.split(key, 6)
    return {
        "w1": jax.random.normal(k1, (32, 1, 3, 3), jnp.float32) * 0.1,
        "b1": jax.random.normal(k2, (32,), jnp.float32) * 0.01,
        "w2": jax.random.normal(k3, (64, 32, 3, 3), jnp.float32) * 0.05,
        "b2": jax.random.normal(k4, (64,), jnp.float32) * 0.01,
        "wfc": jax.random.normal(k5, (num_classes, 64 * 7 * 7), jnp.float32) * 0.02,
        "bfc": jax.random.normal(k6, (num_classes,), jnp.float32) * 0.01,
    }


if __name__ == "__main__":
    num_classes = 10
    batch = 2
    key = jax.random.PRNGKey(0)
    kx, kp = jax.random.split(key)
    # The fc layer (64*7*7) pins the input to 1 channel, 28x28.
    x = jax.random.normal(kx, (batch, 1, 28, 28), jnp.float32)
    params = init_params(num_classes, kp)

    fwd = jax.jit(cnn_forward)
    logits = jax.block_until_ready(fwd(x, params))
    assert logits.shape == (batch, num_classes)
    assert logits.dtype == jnp.float32

    ref = jax.block_until_ready(jax.jit(reference_forward)(x, params))
    err = float(jnp.max(jnp.abs(logits - ref)))
    assert err < 0.1, f"max|pallas - reference| = {err}"
    print("KERNEL_OK")
</pallas_src>

<mosaic_0001>
module attributes {stable_mosaic.version = 11 : i64} {
  func.func @conv_pool_kernel(%arg0: i32, %arg1: memref<4x120x16xbf16, #tpu.memory_space<vmem>>, %arg2: memref<1x16x128xbf16, #tpu.memory_space<vmem>>, %arg3: memref<1x128xf32, #tpu.memory_space<vmem>>, %arg4: memref<120x128xbf16, #tpu.memory_space<vmem>>) attributes {dimension_semantics = [#tpu.dimension_semantics<parallel>], iteration_bounds = array<i64: 4>, scalar_prefetch = 0 : i64, scratch_operands = 0 : i64, tpu.core_type = #tpu.core_type<tc>, window_params = [{transform_indices = @transform_0, window_bounds = array<i64: 4, 120, 16>}, {pipeline_mode = #tpu.pipeline_mode<synchronous>, transform_indices = @transform_1, window_bounds = array<i64: 1, 16, 128>}, {pipeline_mode = #tpu.pipeline_mode<synchronous>, transform_indices = @transform_2, window_bounds = array<i64: 1, 128>}, {transform_indices = @transform_3, window_bounds = array<i64: 120, 128>}]} {
    %c0 = arith.constant 0 : index
    %c0_0 = arith.constant 0 : index
    %c0_1 = arith.constant 0 : index
    %0 = vector.load %arg1[%c0, %c0_0, %c0_1] : memref<4x120x16xbf16, #tpu.memory_space<vmem>>, vector<1x120x16xbf16>
    %1 = vector.shape_cast %0 : vector<1x120x16xbf16> to vector<120x16xbf16>
    %c0_2 = arith.constant 0 : index
    %c0_3 = arith.constant 0 : index
    %c0_4 = arith.constant 0 : index
    %2 = vector.load %arg2[%c0_2, %c0_3, %c0_4] : memref<1x16x128xbf16, #tpu.memory_space<vmem>>, vector<1x16x128xbf16>
    %3 = vector.shape_cast %2 : vector<1x16x128xbf16> to vector<16x128xbf16>
    %cst = arith.constant dense<0.000000e+00> : vector<120x128xf32>
    %4 = tpu.matmul %1, %3, %cst {dimension_numbers = #tpu.dot_dimension_numbers<[1], [0], [0], [1], [0, 0, 1, 1], [], []>} : vector<120x16xbf16>, vector<16x128xbf16>, vector<120x128xf32> -> vector<120x128xf32>
    %c1 = arith.constant 1 : index
    %c0_5 = arith.constant 0 : index
    %c0_6 = arith.constant 0 : index
    %5 = vector.load %arg1[%c1, %c0_5, %c0_6] : memref<4x120x16xbf16, #tpu.memory_space<vmem>>, vector<1x120x16xbf16>
    %6 = vector.shape_cast %5 : vector<1x120x16xbf16> to vector<120x16xbf16>
    %c0_7 = arith.constant 0 : index
    %c0_8 = arith.constant 0 : index
    %c0_9 = arith.constant 0 : index
    %7 = vector.load %arg2[%c0_7, %c0_8, %c0_9] : memref<1x16x128xbf16, #tpu.memory_space<vmem>>, vector<1x16x128xbf16>
    %8 = vector.shape_cast %7 : vector<1x16x128xbf16> to vector<16x128xbf16>
    %cst_10 = arith.constant dense<0.000000e+00> : vector<120x128xf32>
    %9 = tpu.matmul %6, %8, %cst_10 {dimension_numbers = #tpu.dot_dimension_numbers<[1], [0], [0], [1], [0, 0, 1, 1], [], []>} : vector<120x16xbf16>, vector<16x128xbf16>, vector<120x128xf32> -> vector<120x128xf32>
    %10 = arith.maximumf %4, %9 : vector<120x128xf32>
    %c2 = arith.constant 2 : index
    %c0_11 = arith.constant 0 : index
    %c0_12 = arith.constant 0 : index
    %11 = vector.load %arg1[%c2, %c0_11, %c0_12] : memref<4x120x16xbf16, #tpu.memory_space<vmem>>, vector<1x120x16xbf16>
    %12 = vector.shape_cast %11 : vector<1x120x16xbf16> to vector<120x16xbf16>
    %c0_13 = arith.constant 0 : index
    %c0_14 = arith.constant 0 : index
    %c0_15 = arith.constant 0 : index
    %13 = vector.load %arg2[%c0_13, %c0_14, %c0_15] : memref<1x16x128xbf16, #tpu.memory_space<vmem>>, vector<1x16x128xbf16>
    %14 = vector.shape_cast %13 : vector<1x16x128xbf16> to vector<16x128xbf16>
    %cst_16 = arith.constant dense<0.000000e+00> : vector<120x128xf32>
    %15 = tpu.matmul %12, %14, %cst_16 {dimension_numbers = #tpu.dot_dimension_numbers<[1], [0], [0], [1], [0, 0, 1, 1], [], []>} : vector<120x16xbf16>, vector<16x128xbf16>, vector<120x128xf32> -> vector<120x128xf32>
    %16 = arith.maximumf %10, %15 : vector<120x128xf32>
    %c3 = arith.constant 3 : index
    %c0_17 = arith.constant 0 : index
    %c0_18 = arith.constant 0 : index
    %17 = vector.load %arg1[%c3, %c0_17, %c0_18] : memref<4x120x16xbf16, #tpu.memory_space<vmem>>, vector<1x120x16xbf16>
    %18 = vector.shape_cast %17 : vector<1x120x16xbf16> to vector<120x16xbf16>
    %c0_19 = arith.constant 0 : index
    %c0_20 = arith.constant 0 : index
    %c0_21 = arith.constant 0 : index
    %19 = vector.load %arg2[%c0_19, %c0_20, %c0_21] : memref<1x16x128xbf16, #tpu.memory_space<vmem>>, vector<1x16x128xbf16>
    %20 = vector.shape_cast %19 : vector<1x16x128xbf16> to vector<16x128xbf16>
    %cst_22 = arith.constant dense<0.000000e+00> : vector<120x128xf32>
    %21 = tpu.matmul %18, %20, %cst_22 {dimension_numbers = #tpu.dot_dimension_numbers<[1], [0], [0], [1], [0, 0, 1, 1], [], []>} : vector<120x16xbf16>, vector<16x128xbf16>, vector<120x128xf32> -> vector<120x128xf32>
    %22 = arith.maximumf %16, %21 : vector<120x128xf32>
    %c0_23 = arith.constant 0 : index
    %c0_24 = arith.constant 0 : index
    %23 = vector.load %arg3[%c0_23, %c0_24] : memref<1x128xf32, #tpu.memory_space<vmem>>, vector<1x128xf32>
    %24 = vector.broadcast %23 : vector<1x128xf32> to vector<120x128xf32>
    %25 = arith.addf %22, %24 : vector<120x128xf32>
    %cst_25 = arith.constant 0.000000e+00 : f32
    %26 = vector.broadcast %cst_25 : f32 to vector<120x128xf32>
    %27 = arith.maximumf %25, %26 : vector<120x128xf32>
    %28 = arith.truncf %27 : vector<120x128xf32> to vector<120x128xbf16>
    %c0_26 = arith.constant 0 : index
    %c0_27 = arith.constant 0 : index
    %29 = vector.load %arg4[%c0_26, %c0_27] : memref<120x128xbf16, #tpu.memory_space<vmem>>, vector<120x128xbf16>
    tpu.vector_store %arg4[%c0_26, %c0_27], %28 {strides = array<i32>} : memref<120x128xbf16, #tpu.memory_space<vmem>>, vector<120x128xbf16>,
    return
  }
  func.func @transform_0(%arg0: i32) -> (i32, i32, i32) {
    %c0_i32 = arith.constant 0 : i32
    %c0_i32_0 = arith.constant 0 : i32
    %c0_i32_1 = arith.constant 0 : i32
    return %c0_i32, %arg0, %c0_i32_0 : i32, i32, i32
  }
  func.func @transform_1(%arg0: i32) -> (i32, i32, i32) {
    %c0_i32 = arith.constant 0 : i32
    %c0_i32_0 = arith.constant 0 : i32
    %c0_i32_1 = arith.constant 0 : i32
    %c0_i32_2 = arith.constant 0 : i32
    return %c0_i32, %c0_i32_0, %c0_i32_1 : i32, i32, i32
  }
  func.func @transform_2(%arg0: i32) -> (i32, i32) {
    %c0_i32 = arith.constant 0 : i32
    %c0_i32_0 = arith.constant 0 : i32
    %c0_i32_1 = arith.constant 0 : i32
    return %c0_i32, %c0_i32_0 : i32, i32
  }
  func.func @transform_3(%arg0: i32) -> (i32, i32) {
    %c0_i32 = arith.constant 0 : i32
    %c0_i32_0 = arith.constant 0 : i32
    return %arg0, %c0_i32 : i32, i32
  }
}

module attributes {stable_mosaic.version = 11 : i64} {
  func.func @conv_pool_kernel(%arg0: i32, %arg1: memref<4x32x128xbf16, #tpu.memory_space<vmem>>, %arg2: memref<2x384x128xbf16, #tpu.memory_space<vmem>>, %arg3: memref<1x128xf32, #tpu.memory_space<vmem>>, %arg4: memref<32x128xbf16, #tpu.memory_space<vmem>>, %arg5: memref<32x384xbf16, #tpu.memory_space<vmem>>) attributes {dimension_semantics = [#tpu.dimension_semantics<parallel>], iteration_bounds = array<i64: 4>, scalar_prefetch = 0 : i64, scratch_operands = 1 : i64, tpu.core_type = #tpu.core_type<tc>, window_params = [{transform_indices = @transform_0, window_bounds = array<i64: 4, 32, 128>}, {pipeline_mode = #tpu.pipeline_mode<synchronous>, transform_indices = @transform_1, window_bounds = array<i64: 2, 384, 128>}, {pipeline_mode = #tpu.pipeline_mode<synchronous>, transform_indices = @transform_2, window_bounds = array<i64: 1, 128>}, {transform_indices = @transform_3, window_bounds = array<i64: 32, 128>}]} {
    %c0 = arith.constant 0 : index
    %c0_0 = arith.constant 0 : index
    %c0_1 = arith.constant 0 : index
    %0 = vector.load %arg1[%c0, %c0_0, %c0_1] : memref<4x32x128xbf16, #tpu.memory_space<vmem>>, vector<1x32x128xbf16>
    %1 = vector.shape_cast %0 : vector<1x32x128xbf16> to vector<32x128xbf16>
    %c0_2 = arith.constant 0 : index
    %c0_3 = arith.constant 0 : index
    %2 = vector.load %arg5[%c0_2, %c0_3] : memref<32x384xbf16, #tpu.memory_space<vmem>>, vector<32x128xbf16>
    tpu.vector_store %arg5[%c0_2, %c0_3], %1 {strides = array<i32>} : memref<32x384xbf16, #tpu.memory_space<vmem>>, vector<32x128xbf16>,
    %c2 = arith.constant 2 : index
    %c0_4 = arith.constant 0 : index
    %c0_5 = arith.constant 0 : index
    %3 = vector.load %arg1[%c2, %c0_4, %c0_5] : memref<4x32x128xbf16, #tpu.memory_space<vmem>>, vector<1x32x128xbf16>
    %4 = vector.shape_cast %3 : vector<1x32x128xbf16> to vector<32x128xbf16>
    %c0_6 = arith.constant 0 : index
    %c128 = arith.constant 128 : index
    %5 = vector.load %arg5[%c0_6, %c128] : memref<32x384xbf16, #tpu.memory_space<vmem>>, vector<32x128xbf16>
    tpu.vector_store %arg5[%c0_6, %c128], %4 {strides = array<i32>} : memref<32x384xbf16, #tpu.memory_space<vmem>>, vector<32x128xbf16>,
    %c1 = arith.constant 1 : index
    %c0_7 = arith.constant 0 : index
    %c0_8 = arith.constant 0 : index
    %6 = vector.load %arg1[%c1, %c0_7, %c0_8] : memref<4x32x128xbf16, #tpu.memory_space<vmem>>, vector<1x32x128xbf16>
    %7 = vector.shape_cast %6 : vector<1x32x128xbf16> to vector<32x128xbf16>
    %c0_9 = arith.constant 0 : index
    %c256 = arith.constant 256 : index
    %8 = vector.load %arg5[%c0_9, %c256] : memref<32x384xbf16, #tpu.memory_space<vmem>>, vector<32x128xbf16>
    tpu.vector_store %arg5[%c0_9, %c256], %7 {strides = array<i32>} : memref<32x384xbf16, #tpu.memory_space<vmem>>, vector<32x128xbf16>,
    %c0_10 = arith.constant 0 : index
    %c0_11 = arith.constant 0 : index
    %9 = vector.load %arg5[%c0_10, %c0_11] : memref<32x384xbf16, #tpu.memory_space<vmem>>, vector<32x384xbf16>
    %c0_12 = arith.constant 0 : index
    %c0_13 = arith.constant 0 : index
    %c0_14 = arith.constant 0 : index
    %10 = vector.load %arg2[%c0_12, %c0_13, %c0_14] : memref<2x384x128xbf16, #tpu.memory_space<vmem>>, vector<1x384x128xbf16>
    %11 = vector.shape_cast %10 : vector<1x384x128xbf16> to vector<384x128xbf16>
    %cst = arith.constant dense<0.000000e+00> : vector<32x128xf32>
    %12 = tpu.matmul %9, %11, %cst {dimension_numbers = #tpu.dot_dimension_numbers<[1], [0], [0], [1], [0, 0, 1, 1], [], []>} : vector<32x384xbf16>, vector<384x128xbf16>, vector<32x128xf32> -> vector<32x128xf32>
    %c1_15 = arith.constant 1 : index
    %c0_16 = arith.constant 0 : index
    %c0_17 = arith.constant 0 : index
    %13 = vector.load %arg2[%c1_15, %c0_16, %c0_17] : memref<2x384x128xbf16, #tpu.memory_space<vmem>>, vector<1x384x128xbf16>
    %14 = vector.shape_cast %13 : vector<1x384x128xbf16> to vector<384x128xbf16>
    %cst_18 = arith.constant dense<0.000000e+00> : vector<32x128xf32>
    %15 = tpu.matmul %9, %14, %cst_18 {dimension_numbers = #tpu.dot_dimension_numbers<[1], [0], [0], [1], [0, 0, 1, 1], [], []>} : vector<32x384xbf16>, vector<384x128xbf16>, vector<32x128xf32> -> vector<32x128xf32>
    %16 = arith.maximumf %12, %15 : vector<32x128xf32>
    %c2_19 = arith.constant 2 : index
    %c0_20 = arith.constant 0 : index
    %c0_21 = arith.constant 0 : index
    %17 = vector.load %arg1[%c2_19, %c0_20, %c0_21] : memref<4x32x128xbf16, #tpu.memory_space<vmem>>, vector<1x32x128xbf16>
    %18 = vector.shape_cast %17 : vector<1x32x128xbf16> to vector<32x128xbf16>
    %c0_22 = arith.constant 0 : index
    %c0_23 = arith.constant 0 : index
    %19 = vector.load %arg5[%c0_22, %c0_23] : memref<32x384xbf16, #tpu.memory_space<vmem>>, vector<32x128xbf16>
    tpu.vector_store %arg5[%c0_22, %c0_23], %18 {strides = array<i32>} : memref<32x384xbf16, #tpu.memory_space<vmem>>, vector<32x128xbf16>,
    %c1_24 = arith.constant 1 : index
    %c0_25 = arith.constant 0 : index
    %c0_26 = arith.constant 0 : index
    %20 = vector.load %arg1[%c1_24, %c0_25, %c0_26] : memref<4x32x128xbf16, #tpu.memory_space<vmem>>, vector<1x32x128xbf16>
    %21 = vector.shape_cast %20 : vector<1x32x128xbf16> to vector<32x128xbf16>
    %c0_27 = arith.constant 0 : index
    %c128_28 = arith.constant 128 : index
    %22 = vector.load %arg5[%c0_27, %c128_28] : memref<32x384xbf16, #tpu.memory_space<vmem>>, vector<32x128xbf16>
    tpu.vector_store %arg5[%c0_27, %c128_28], %21 {strides = array<i32>} : memref<32x384xbf16, #tpu.memory_space<vmem>>, vector<32x128xbf16>,
    %c3 = arith.constant 3 : index
    %c0_29 = arith.constant 0 : index
    %c0_30 = arith.constant 0 : index
    %23 = vector.load %arg1[%c3, %c0_29, %c0_30] : memref<4x32x128xbf16, #tpu.memory_space<vmem>>, vector<1x32x128xbf16>
    %24 = vector.shape_cast %23 : vector<1x32x128xbf16> to vector<32x128xbf16>
    %c0_31 = arith.constant 0 : index
    %c256_32 = arith.constant 256 : index
    %25 = vector.load %arg5[%c0_31, %c256_32] : memref<32x384xbf16, #tpu.memory_space<vmem>>, vector<32x128xbf16>
    tpu.vector_store %arg5[%c0_31, %c256_32], %24 {strides = array<i32>} : memref<32x384xbf16, #tpu.memory_space<vmem>>, vector<32x128xbf16>,
    %c0_33 = arith.constant 0 : index
    %c0_34 = arith.constant 0 : index
    %26 = vector.load %arg5[%c0_33, %c0_34] : memref<32x384xbf16, #tpu.memory_space<vmem>>, vector<32x384xbf16>
    %c0_35 = arith.constant 0 : index
    %c0_36 = arith.constant 0 : index
    %c0_37 = arith.constant 0 : index
    %27 = vector.load %arg2[%c0_35, %c0_36, %c0_37] : memref<2x384x128xbf16, #tpu.memory_space<vmem>>, vector<1x384x128xbf16>
    %28 = vector.shape_cast %27 : vector<1x384x128xbf16> to vector<384x128xbf16>
    %cst_38 = arith.constant dense<0.000000e+00> : vector<32x128xf32>
    %29 = tpu.matmul %26, %28, %cst_38 {dimension_numbers = #tpu.dot_dimension_numbers<[1], [0], [0], [1], [0, 0, 1, 1], [], []>} : vector<32x384xbf16>, vector<384x128xbf16>, vector<32x128xf32> -> vector<32x128xf32>
    %30 = arith.maximumf %16, %29 : vector<32x128xf32>
    %c1_39 = arith.constant 1 : index
    %c0_40 = arith.constant 0 : index
    %c0_41 = arith.constant 0 : index
    %31 = vector.load %arg2[%c1_39, %c0_40, %c0_41] : memref<2x384x128xbf16, #tpu.memory_space<vmem>>, vector<1x384x128xbf16>
    %32 = vector.shape_cast %31 : vector<1x384x128xbf16> to vector<384x128xbf16>
    %cst_42 = arith.constant dense<0.000000e+00> : vector<32x128xf32>
    %33 = tpu.matmul %26, %32, %cst_42 {dimension_numbers = #tpu.dot_dimension_numbers<[1], [0], [0], [1], [0, 0, 1, 1], [], []>} : vector<32x384xbf16>, vector<384x128xbf16>, vector<32x128xf32> -> vector<32x128xf32>
    %34 = arith.maximumf %30, %33 : vector<32x128xf32>
    %c0_43 = arith.constant 0 : index
    %c0_44 = arith.constant 0 : index
    %35 = vector.load %arg3[%c0_43, %c0_44] : memref<1x128xf32, #tpu.memory_space<vmem>>, vector<1x128xf32>
    %36 = vector.broadcast %35 : vector<1x128xf32> to vector<32x128xf32>
    %37 = arith.addf %34, %36 : vector<32x128xf32>
    %cst_45 = arith.constant 0.000000e+00 : f32
    %38 = vector.broadcast %cst_45 : f32 to vector<32x128xf32>
    %39 = arith.maximumf %37, %38 : vector<32x128xf32>
    %40 = arith.truncf %39 : vector<32x128xf32> to vector<32x128xbf16>
    %c0_46 = arith.constant 0 : index
    %c0_47 = arith.constant 0 : index
    %41 = vector.load %arg4[%c0_46, %c0_47] : memref<32x128xbf16, #tpu.memory_space<vmem>>, vector<32x128xbf16>
    tpu.vector_store %arg4[%c0_46, %c0_47], %40 {strides = array<i32>} : memref<32x128xbf16, #tpu.memory_space<vmem>>, vector<32x128xbf16>,
    return
  }
  func.func @transform_0(%arg0: i32) -> (i32, i32, i32) {
    %c0_i32 = arith.constant 0 : i32
    %c0_i32_0 = arith.constant 0 : i32
    %c0_i32_1 = arith.constant 0 : i32
    return %c0_i32, %arg0, %c0_i32_0 : i32, i32, i32
  }
  func.func @transform_1(%arg0: i32) -> (i32, i32, i32) {
    %c0_i32 = arith.constant 0 : i32
    %c0_i32_0 = arith.constant 0 : i32
    %c0_i32_1 = arith.constant 0 : i32
    %c0_i32_2 = arith.constant 0 : i32
    return %c0_i32, %c0_i32_0, %c0_i32_1 : i32, i32, i32
  }
  func.func @transform_2(%arg0: i32) -> (i32, i32) {
    %c0_i32 = arith.constant 0 : i32
    %c0_i32_0 = arith.constant 0 : i32
    %c0_i32_1 = arith.constant 0 : i32
    return %c0_i32, %c0_i32_0 : i32, i32
  }
  func.func @transform_3(%arg0: i32) -> (i32, i32) {
    %c0_i32 = arith.constant 0 : i32
    %c0_i32_0 = arith.constant 0 : i32
    return %arg0, %c0_i32 : i32, i32
  }
}

module attributes {stable_mosaic.version = 11 : i64} {
  func.func @linear_kernel(%arg0: i32, %arg1: memref<8x3136xbf16, #tpu.memory_space<vmem>>, %arg2: memref<3136x128xbf16, #tpu.memory_space<vmem>>, %arg3: memref<1x128xf32, #tpu.memory_space<vmem>>, %arg4: memref<8x128xf32, #tpu.memory_space<vmem>>) attributes {dimension_semantics = [#tpu.dimension_semantics<parallel>], iteration_bounds = array<i64: 1>, scalar_prefetch = 0 : i64, scratch_operands = 0 : i64, tpu.core_type = #tpu.core_type<tc>, window_params = [{transform_indices = @transform_0, window_bounds = array<i64: 8, 3136>}, {pipeline_mode = #tpu.pipeline_mode<synchronous>, transform_indices = @transform_1, window_bounds = array<i64: 3136, 128>}, {pipeline_mode = #tpu.pipeline_mode<synchronous>, transform_indices = @transform_2, window_bounds = array<i64: 1, 128>}, {transform_indices = @transform_3, window_bounds = array<i64: 8, 128>}]} {
    %c0 = arith.constant 0 : index
    %c0_0 = arith.constant 0 : index
    %0 = vector.load %arg1[%c0, %c0_0] : memref<8x3136xbf16, #tpu.memory_space<vmem>>, vector<8x3136xbf16>
    %c0_1 = arith.constant 0 : index
    %c0_2 = arith.constant 0 : index
    %1 = vector.load %arg2[%c0_1, %c0_2] : memref<3136x128xbf16, #tpu.memory_space<vmem>>, vector<3136x128xbf16>
    %cst = arith.constant dense<0.000000e+00> : vector<8x128xf32>
    %2 = tpu.matmul %0, %1, %cst {dimension_numbers = #tpu.dot_dimension_numbers<[1], [0], [0], [1], [0, 0, 1, 1], [], []>} : vector<8x3136xbf16>, vector<3136x128xbf16>, vector<8x128xf32> -> vector<8x128xf32>
    %c0_3 = arith.constant 0 : index
    %c0_4 = arith.constant 0 : index
    %3 = vector.load %arg3[%c0_3, %c0_4] : memref<1x128xf32, #tpu.memory_space<vmem>>, vector<1x128xf32>
    %4 = vector.broadcast %3 : vector<1x128xf32> to vector<8x128xf32>
    %5 = arith.addf %2, %4 : vector<8x128xf32>
    %c0_5 = arith.constant 0 : index
    %c0_6 = arith.constant 0 : index
    %6 = vector.load %arg4[%c0_5, %c0_6] : memref<8x128xf32, #tpu.memory_space<vmem>>, vector<8x128xf32>
    tpu.vector_store %arg4[%c0_5, %c0_6], %5 {strides = array<i32>} : memref<8x128xf32, #tpu.memory_space<vmem>>, vector<8x128xf32>,
    return
  }
  func.func @transform_0(%arg0: i32) -> (i32, i32) {
    %c0_i32 = arith.constant 0 : i32
    %c0_i32_0 = arith.constant 0 : i32
    return %arg0, %c0_i32 : i32, i32
  }
  func.func @transform_1(%arg0: i32) -> (i32, i32) {
    %c0_i32 = arith.constant 0 : i32
    %c0_i32_0 = arith.constant 0 : i32
    %c0_i32_1 = arith.constant 0 : i32
    return %c0_i32, %c0_i32_0 : i32, i32
  }
  func.func @transform_2(%arg0: i32) -> (i32, i32) {
    %c0_i32 = arith.constant 0 : i32
    %c0_i32_0 = arith.constant 0 : i32
    %c0_i32_1 = arith.constant 0 : i32
    return %c0_i32, %c0_i32_0 : i32, i32
  }
  func.func @transform_3(%arg0: i32) -> (i32, i32) {
    %c0_i32 = arith.constant 0 : i32
    %c0_i32_0 = arith.constant 0 : i32
    return %arg0, %c0_i32 : i32, i32
  }
}

</mosaic_0001>

<llo_original>
// kernel: cnn_forward.3
$region0: #{cnn_forward.3}
  #allocation0 [shape = 'u32[]', space=smem, size = 0x4, offset = 0x4, fixed_abs, tag = 'smem constant byte address 0x4 - core index']
  #allocation1 [shape = 'u32[144,128]{1,0:T(1,128)}', space=vmem, size = 0x12000, scoped, tag = 'internal scratch']
  %s0 = inlined_call_operand.vmem [shape: bf16[4,480,16], index: 0, kind: input, shape index: {}]
  %s1 = inlined_call_operand.vmem [shape: bf16[1,16,128], index: 1, kind: input, shape index: {}]
  %s2 = inlined_call_operand.vmem [shape: f32[1,128], index: 2, kind: input, shape index: {}]
  %s3 = inlined_call_operand.vmem [shape: bf16[480,128], index: 3, kind: output, shape index: {}]
  %s4 = sld [smem:[#allocation0]]
  $region86: #{cnn_forward.3} parent=0
    _
  %s6 = ssub.s32 1, %s4
  %s7 = scalar_select 0, %s6, %s4
  $region1: #{cnn_forward.3} parent=0
    #allocation2 [shape = 'u8[245760]{0}', space=vmem, size = 0x3c000, scoped, tag = 'input window, operand 0']
    loop: start=0, step=1, limit=6
    $region2: #{cnn_forward.3} parent=1 // loop_pre_header
      _
    $region3: #{cnn_forward.3} parent=1 // loop_header
      %s9 = sphi 0, %s13
      %p10 = scmp.ge.s32.totalorder %s9, 6
      %s19 = sphi 0, %s21
      %s22 = sphi 0, %s19
      %s23 = sphi 0, %s22
      %s39 = sphi 0, %s23
      %s43 = sphi 0, %s43
      %s45 = sphi 0, %s43
      %s46 = sphi 0, %s45
      %s60 = sphi 0, %s46
      %s64 = sphi 0, %s64
      %s66 = sphi 0, %s64
      %s67 = sphi 0, %s66
      %s81 = sphi 0, %s67
      %s87 = sphi 0, %s89
      %s90 = sphi 0, %s87
      %s91 = sphi 0, %s90
      %s107 = sphi 0, %s91
    $region4: #{cnn_forward.3} parent=1 // loop_header_branch
      %12 = sbr.rel (%p10) target = $region8
    $region5: #{cnn_forward.3} parent=1 // loop_body
      %s14 = ssub.s32 %s9, 1
      %s15 = ssub.s32 %s9, 2
      %s16 = sadd.s32 %s9, 1
      %s17 = ssub.s32 %s9, %s16
      %p18 = scmp.eq.s32.totalorder %s17, 0
      %s20 = sadd.s32 %s19, 1
      %s21 = scalar_select %p18, %s19, %s20
      %p24 = pneg %p18
      %p25 = scmp.eq.s32.totalorder %s9, 3
      %p26 = por %p24, %p25
      %p27 = scmp.ne.s32.totalorder %s19, %s22
      %p28 = scmp.eq.s32.totalorder %s9, 0
      %p29 = por %p27, %p28
      %p30 = scmp.ne.s32.totalorder %s19, %s22
      %p31 = scmp.eq.s32.totalorder %s14, 3
      %p32 = por %p30, %p31
      %p33 = scmp.ne.s32.totalorder %s22, %s23
      %p34 = scmp.eq.s32.totalorder %s14, 0
      %p35 = por %p33, %p34
      %p36 = scmp.ne.s32.totalorder %s22, %s23
      %p37 = scmp.eq.s32.totalorder %s15, 3
      %p38 = por %p36, %p37
      %p40 = scmp.ne.s32.totalorder %s23, %s39
      %p41 = scmp.eq.s32.totalorder %s15, 0
      %p42 = por %p40, %p41
      %s44 = sadd.s32 %s43, 1
      %p47 = scmp.eq.s32.totalorder %s9, 3
      %p48 = scmp.ne.s32.totalorder %s43, %s45
      %p49 = scmp.eq.s32.totalorder %s9, 0
      %p50 = por %p48, %p49
      %p51 = scmp.ne.s32.totalorder %s43, %s45
      %p52 = scmp.eq.s32.totalorder %s14, 3
      %p53 = por %p51, %p52
      %p54 = scmp.ne.s32.totalorder %s45, %s46
      %p55 = scmp.eq.s32.totalorder %s14, 0
      %p56 = por %p54, %p55
      %p57 = scmp.ne.s32.totalorder %s45, %s46
      %p58 = scmp.eq.s32.totalorder %s15, 3
      %p59 = por %p57, %p58
      %p61 = scmp.ne.s32.totalorder %s46, %s60
      %p62 = scmp.eq.s32.totalorder %s15, 0
      %p63 = por %p61, %p62
      %s65 = sadd.s32 %s64, 1
      %p68 = scmp.eq.s32.totalorder %s9, 3
      %p69 = scmp.ne.s32.totalorder %s64, %s66
      %p70 = scmp.eq.s32.totalorder %s9, 0
      %p71 = por %p69, %p70
      %p72 = scmp.ne.s32.totalorder %s64, %s66
      %p73 = scmp.eq.s32.totalorder %s14, 3
      %p74 = por %p72, %p73
      %p75 = scmp.ne.s32.totalorder %s66, %s67
      %p76 = scmp.eq.s32.totalorder %s14, 0
      %p77 = por %p75, %p76
      %p78 = scmp.ne.s32.totalorder %s66, %s67
      %p79 = scmp.eq.s32.totalorder %s15, 3
      %p80 = por %p78, %p79
      %p82 = scmp.ne.s32.totalorder %s67, %s81
      %p83 = scmp.eq.s32.totalorder %s15, 0
      %p84 = por %p82, %p83
      %s85 = ssub.s32 %s9, %s16
      %p86 = scmp.eq.s32.totalorder %s85, 0
      %s88 = sadd.s32 %s87, 1
      %s89 = scalar_select %p86, %s87, %s88
      %p92 = pneg %p86
      %p93 = scmp.eq.s32.totalorder %s9, 3
      %p94 = por %p92, %p93
      %p95 = scmp.ne.s32.totalorder %s87, %s90
      %p96 = scmp.eq.s32.totalorder %s9, 0
      %p97 = por %p95, %p96
      %p98 = scmp.ne.s32.totalorder %s87, %s90
      %p99 = scmp.eq.s32.totalorder %s14, 3
      %p100 = por %p98, %p99
      %p101 = scmp.ne.s32.totalorder %s90, %s91
      %p102 = scmp.eq.s32.totalorder %s14, 0
      %p103 = por %p101, %p102
      %p104 = scmp.ne.s32.totalorder %s90, %s91
      %p105 = scmp.eq.s32.totalorder %s15, 3
      %p106 = por %p104, %p105
      %p108 = scmp.ne.s32.totalorder %s91, %s107
      %p109 = scmp.eq.s32.totalorder %s15, 0
      %p110 = por %p108, %p109
      %p111 = scmp.le.s32.totalorder 1, %s9
      %p112 = scmp.lt.s32.totalorder %s9, 5
      %p113 = pnand %p111, %p112
      %p114 = pneg %p113
      // Predicated region
      $region9: #{cnn_forward.3} parent=5 // pred_check
        _
      $region10: #{cnn_forward.3} parent=5 // pred_check_branch
        %116 = sbr.rel (%p113) target = $region12
      $region11: #{cnn_forward.3} parent=5 // pred_region
        %s117 = ssub.s32 %s9, 1
        // Predicated region
        $region13: #{cnn_forward.3} parent=11 // pred_check
          %p118 = pneg %p56
        $region14: #{cnn_forward.3} parent=11 // pred_check_branch
          %120 = sbr.rel (%p118) target = $region16
        $region15: #{cnn_forward.3} parent=11 // pred_region
          _
        $region16: #{cnn_forward.3} parent=11 // pred_fallthru
          _
        // Predicated region
        $region17: #{cnn_forward.3} parent=11 // pred_check
          %p121 = pneg %p77
        $region18: #{cnn_forward.3} parent=11 // pred_check_branch
          %123 = sbr.rel (%p121) target = $region20
        $region19: #{cnn_forward.3} parent=11 // pred_region
          _
        $region20: #{cnn_forward.3} parent=11 // pred_fallthru
          _
      $region12: #{cnn_forward.3} parent=5 // pred_fallthru
        _
      %p124 = scmp.lt.s32.totalorder %s9, 4
      // Predicated region
      $region21: #{cnn_forward.3} parent=5 // pred_check
        %p125 = pneg %p124
      $region22: #{cnn_forward.3} parent=5 // pred_check_branch
        %127 = sbr.rel (%p125) target = $region24
      $region23: #{cnn_forward.3} parent=5 // pred_region
        // Predicated region
        $region25: #{cnn_forward.3} parent=23 // pred_check
          %p128 = pneg %p29
        $region26: #{cnn_forward.3} parent=23 // pred_check_branch
          %130 = sbr.rel (%p128) target = $region28
        $region27: #{cnn_forward.3} parent=23 // pred_region
          %s131 = sand.u32 %s19, 1
          %s132 = sand.u32 %s19, 1
          %s133 = smul.addr %s132, 240
          %s134 = scalar_lea.vmem [#allocation2], %s133
          %s135 = smul.u32 15, %s9
          %s136 = smul.addr %s135, 4
          %s137 = scalar_lea.vmem %s0, %s136
          // Predicated region
          $region29: #{cnn_forward.3} parent=27 // pred_check
            _
          $region30: #{cnn_forward.3} parent=27 // pred_check_branch
            %139 = sbr.rel (0) target = $region32
          $region31: #{cnn_forward.3} parent=27 // pred_region
            // Predicated region
            $region33: #{cnn_forward.3} parent=31 // pred_check
              _
            $region34: #{cnn_forward.3} parent=31 // pred_check_branch
              %141 = sbr.rel target = $region36
            $region35: #{cnn_forward.3} parent=31 // pred_region
              // Predicated region
              $region48: #{cnn_forward.3} parent=35 // pred_check
                _
              $region49: #{cnn_forward.3} parent=35 // pred_check_branch
                %275 = sbr.rel (0) target = $region51
              $region50: #{cnn_forward.3} parent=35 // pred_region
                loop: start=0, step=1, limit=1
                $region52: #{cnn_forward.3} parent=50 // loop_pre_header
                  _
                $region53: #{cnn_forward.3} parent=50 // loop_header
                  %s277 = sphi 0, %s281
                  %p278 = scmp.ge.s32.totalorder %s277, 1
                  %s282 = sphi %s137, %s137
                  %s283 = sphi %s134, %s134
                $region54: #{cnn_forward.3} parent=50 // loop_header_branch
                  %280 = sbr.rel (%p278) target = $region58
                $region55: #{cnn_forward.3} parent=50 // loop_body
                  _
                $region56: #{cnn_forward.3} parent=50 // loop_footer
                  %s281 = sadd.s32 1, %s277
                $region57: #{cnn_forward.3} parent=50 // loop_footer_branch
                  %276 = sbr.rel target = $region53
                $region58: #{cnn_forward.3} parent=50 // loop_exit
                  _
                %s285 = ssub.s32 16, 1
                loop: start=0, step=1, limit=1
                $region59: #{cnn_forward.3} parent=50 // loop_pre_header
                  _
                $region60: #{cnn_forward.3} parent=50 // loop_header
                  %s287 = sphi 0, %s291
                  %p288 = scmp.ge.s32.totalorder %s287, 1
                  %s292 = sphi %s137, %s137
                  %s293 = sphi %s134, %s134
                $region61: #{cnn_forward.3} parent=50 // loop_header_branch
                  %290 = sbr.rel (%p288) target = $region65
                $region62: #{cnn_forward.3} parent=50 // loop_body
                  %v294 = vld [vmem:[%s292] sm:%s285]
                  %295 = vst [vmem:[%s293] sm:%s285] %v294
                  %v296 = vld [vmem:[%s292 + $0x4] sm:%s285]
                  %297 = vst [vmem:[%s293 + $0x4] sm:%s285] %v296
                  %v298 = vld [vmem:[%s292 + $0x8] sm:%s285]
                  %299 = vst [vmem:[%s293 + $0x8] sm:%s285] %v298
                  %v300 = vld [vmem:[%s292 + $0xc] sm:%s285]
                  %301 = vst [vmem:[%s293 + $0xc] sm:%s285] %v300
                  %v302 = vld [vmem:[%s292 + $0x10] sm:%s285]
                  %303 = vst [vmem:[%s293 + $0x10] sm:%s285] %v302
                  %v304 = vld [vmem:[%s292 + $0x14] sm:%s285]
                  %305 = vst [vmem:[%s293 + $0x14] sm:%s285] %v304
                  %v306 = vld [vmem:[%s292 + $0x18] sm:%s285]
                  %307 = vst [vmem:[%s293 + $0x18] sm:%s285] %v306
                  %v308 = vld [vmem:[%s292 + $0x1c] sm:%s285]
                  %309 = vst [vmem:[%s293 + $0x1c] sm:%s285] %v308
                  %v310 = vld [vmem:[%s292 + $0x20] sm:%s285]
                  %311 = vst [vmem:[%s293 + $0x20] sm:%s285] %v310
                  %v312 = vld [vmem:[%s292 + $0x24] sm:%s285]
                  %313 = vst [vmem:[%s293 + $0x24] sm:%s285] %v312
                  %v314 = vld [vmem:[%s292 + $0x28] sm:%s285]
                  %315 = vst [vmem:[%s293 + $0x28] sm:%s285] %v314
                  %v316 = vld [vmem:[%s292 + $0x2c] sm:%s285]
                  %317 = vst [vmem:[%s293 + $0x2c] sm:%s285] %v316
                  %v318 = vld [vmem:[%s292 + $0x30] sm:%s285]
                  %319 = vst [vmem:[%s293 + $0x30] sm:%s285] %v318
                  %v320 = vld [vmem:[%s292 + $0x34] sm:%s285]
                  %321 = vst [vmem:[%s293 + $0x34] sm:%s285] %v320
                  %v322 = vld [vmem:[%s292 + $0x38] sm:%s285]
                  %323 = vst [vmem:[%s293 + $0x38] sm:%s285] %v322
                  %v324 = vld [vmem:[%s292 + $0xf0] sm:%s285]
                  %325 = vst [vmem:[%s293 + $0x3c] sm:%s285] %v324
                  %v326 = vld [vmem:[%s292 + $0xf4] sm:%s285]
                  %327 = vst [vmem:[%s293 + $0x40] sm:%s285] %v326
                  %v328 = vld [vmem:[%s292 + $0xf8] sm:%s285]
                  %329 = vst [vmem:[%s293 + $0x44] sm:%s285] %v328
                  %v330 = vld [vmem:[%s292 + $0xfc] sm:%s285]
                  %331 = vst [vmem:[%s293 + $0x48] sm:%s285] %v330
                  %v332 = vld [vmem:[%s292 + $0x100] sm:%s285]
                  %333 = vst [vmem:[%s293 + $0x4c] sm:%s285] %v332
                  %v334 = vld [vmem:[%s292 + $0x104] sm:%s285]
                  %335 = vst [vmem:[%s293 + $0x50] sm:%s285] %v334
                  %v336 = vld [vmem:[%s292 + $0x108] sm:%s285]
                  %337 = vst [vmem:[%s293 + $0x54] sm:%s285] %v336
                  %v338 = vld [vmem:[%s292 + $0x10c] sm:%s285]
                  %339 = vst [vmem:[%s293 + $0x58] sm:%s285] %v338
                  %v340 = vld [vmem:[%s292 + $0x110] sm:%s285]
                  %341 = vst [vmem:[%s293 + $0x5c] sm:%s285] %v340
                  %v342 = vld [vmem:[%s292 + $0x114] sm:%s285]
                  %343 = vst [vmem:[%s293 + $0x60] sm:%s285] %v342
                  %v344 = vld [vmem:[%s292 + $0x118] sm:%s285]
                  %345 = vst [vmem:[%s293 + $0x64] sm:%s285] %v344
                  %v346 = vld [vmem:[%s292 + $0x11c] sm:%s285]
                  %347 = vst [vmem:[%s293 + $0x68] sm:%s285] %v346
                  %v348 = vld [vmem:[%s292 + $0x120] sm:%s285]
                  %349 = vst [vmem:[%s293 + $0x6c] sm:%s285] %v348
                  %v350 = vld [vmem:[%s292 + $0x124] sm:%s285]
                  %351 = vst [vmem:[%s293 + $0x70] sm:%s285] %v350
                  %v352 = vld [vmem:[%s292 + $0x128] sm:%s285]
                  %353 = vst [vmem:[%s293 + $0x74] sm:%s285] %v352
                  %v354 = vld [vmem:[%s292 + $0x1e0] sm:%s285]
                  %355 = vst [vmem:[%s293 + $0x78] sm:%s285] %v354
                  %v356 = vld [vmem:[%s292 + $0x1e4] sm:%s285]
                  %357 = vst [vmem:[%s293 + $0x7c] sm:%s285] %v356
                  %v358 = vld [vmem:[%s292 + $0x1e8] sm:%s285]
                  %359 = vst [vmem:[%s293 + $0x80] sm:%s285] %v358
                  %v360 = vld [vmem:[%s292 + $0x1ec] sm:%s285]
                  %361 = vst [vmem:[%s293 + $0x84] sm:%s285] %v360
                  %v362 = vld [vmem:[%s292 + $0x1f0] sm:%s285]
                  %363 = vst [vmem:[%s293 + $0x88] sm:%s285] %v362
                  %v364 = vld [vmem:[%s292 + $0x1f4] sm:%s285]
                  %365 = vst [vmem:[%s293 + $0x8c] sm:%s285] %v364
                  %v366 = vld [vmem:[%s292 + $0x1f8] sm:%s285]
                  %367 = vst [vmem:[%s293 + $0x90] sm:%s285] %v366
                  %v368 = vld [vmem:[%s292 + $0x1fc] sm:%s285]
                  %369 = vst [vmem:[%s293 + $0x94] sm:%s285] %v368
                  %v370 = vld [vmem:[%s292 + $0x200] sm:%s285]
                  %371 = vst [vmem:[%s293 + $0x98] sm:%s285] %v370
                  %v372 = vld [vmem:[%s292 + $0x204] sm:%s285]
                  %373 = vst [vmem:[%s293 + $0x9c] sm:%s285] %v372
                  %v374 = vld [vmem:[%s292 + $0x208] sm:%s285]
                  %375 = vst [vmem:[%s293 + $0xa0] sm:%s285] %v374
                  %v376 = vld [vmem:[%s292 + $0x20c] sm:%s285]
                  %377 = vst [vmem:[%s293 + $0xa4] sm:%s285] %v376
                  %v378 = vld [vmem:[%s292 + $0x210] sm:%s285]
                  %379 = vst [vmem:[%s293 + $0xa8] sm:%s285] %v378
                  %v380 = vld [vmem:[%s292 + $0x214] sm:%s285]
                  %381 = vst [vmem:[%s293 + $0xac] sm:%s285] %v380
                  %v382 = vld [vmem:[%s292 + $0x218] sm:%s285]
                  %383 = vst [vmem:[%s293 + $0xb0] sm:%s285] %v382
                  %v384 = vld [vmem:[%s292 + $0x2d0] sm:%s285]
                  %385 = vst [vmem:[%s293 + $0xb4] sm:%s285] %v384
                  %v386 = vld [vmem:[%s292 + $0x2d4] sm:%s285]
                  %387 = vst [vmem:[%s293 + $0xb8] sm:%s285] %v386
                  %v388 = vld [vmem:[%s292 + $0x2d8] sm:%s285]
                  %389 = vst [vmem:[%s293 + $0xbc] sm:%s285] %v388
                  %v390 = vld [vmem:[%s292 + $0x2dc] sm:%s285]
                  %391 = vst [vmem:[%s293 + $0xc0] sm:%s285] %v390
                  %v392 = vld [vmem:[%s292 + $0x2e0] sm:%s285]
                  %393 = vst [vmem:[%s293 + $0xc4] sm:%s285] %v392
                  %v394 = vld [vmem:[%s292 + $0x2e4] sm:%s285]
                  %395 = vst [vmem:[%s293 + $0xc8] sm:%s285] %v394
                  %v396 = vld [vmem:[%s292 + $0x2e8] sm:%s285]
                  %397 = vst [vmem:[%s293 + $0xcc] sm:%s285] %v396
                  %v398 = vld [vmem:[%s292 + $0x2ec] sm:%s285]
                  %399 = vst [vmem:[%s293 + $0xd0] sm:%s285] %v398
                  %v400 = vld [vmem:[%s292 + $0x2f0] sm:%s285]
                  %401 = vst [vmem:[%s293 + $0xd4] sm:%s285] %v400
                  %v402 = vld [vmem:[%s292 + $0x2f4] sm:%s285]
                  %403 = vst [vmem:[%s293 + $0xd8] sm:%s285] %v402
                  %v404 = vld [vmem:[%s292 + $0x2f8] sm:%s285]
                  %405 = vst [vmem:[%s293 + $0xdc] sm:%s285] %v404
                  %v406 = vld [vmem:[%s292 + $0x2fc] sm:%s285]
                  %407 = vst [vmem:[%s293 + $0xe0] sm:%s285] %v406
                  %v408 = vld [vmem:[%s292 + $0x300] sm:%s285]
                  %409 = vst [vmem:[%s293 + $0xe4] sm:%s285] %v408
                  %v410 = vld [vmem:[%s292 + $0x304] sm:%s285]
                  %411 = vst [vmem:[%s293 + $0xe8] sm:%s285] %v410
                  %v412 = vld [vmem:[%s292 + $0x308] sm:%s285]
                  %413 = vst [vmem:[%s293 + $0xec] sm:%s285] %v412
                $region63: #{cnn_forward.3} parent=50 // loop_footer
                  %s291 = sadd.s32 1, %s287
                $region64: #{cnn_forward.3} parent=50 // loop_footer_branch
                  %286 = sbr.rel target = $region60
                $region65: #{cnn_forward.3} parent=50 // loop_exit
                  _
              $region51: #{cnn_forward.3} parent=35 // pred_fallthru
                _
            $region36: #{cnn_forward.3} parent=31 // pred_fallthru
              _
            // Predicated region
            $region37: #{cnn_forward.3} parent=31 // pred_check
              _
            $region38: #{cnn_forward.3} parent=31 // pred_check_branch
              %143 = sbr.rel (0) target = $region40
            $region39: #{cnn_forward.3} parent=31 // pred_region
              %s145 = ssub.s32 16, 1
              loop: start=0, step=1, limit=1
              $region41: #{cnn_forward.3} parent=39 // loop_pre_header
                _
              $region42: #{cnn_forward.3} parent=39 // loop_header
                %s147 = sphi 0, %s151
                %p148 = scmp.ge.s32.totalorder %s147, 1
                %s152 = sphi %s137, %s137
                %s153 = sphi %s134, %s134
              $region43: #{cnn_forward.3} parent=39 // loop_header_branch
                %150 = sbr.rel (%p148) target = $region47
              $region44: #{cnn_forward.3} parent=39 // loop_body
                %v154 = vld [vmem:[%s152] sm:%s145]
                %155 = vst [vmem:[%s153] sm:%s145] %v154
                %v156 = vld [vmem:[%s152 + $0x4] sm:%s145]
                %157 = vst [vmem:[%s153 + $0x4] sm:%s145] %v156
                %v158 = vld [vmem:[%s152 + $0x8] sm:%s145]
                %159 = vst [vmem:[%s153 + $0x8] sm:%s145] %v158
                %v160 = vld [vmem:[%s152 + $0xc] sm:%s145]
                %161 = vst [vmem:[%s153 + $0xc] sm:%s145] %v160
                %v162 = vld [vmem:[%s152 + $0x10] sm:%s145]
                %163 = vst [vmem:[%s153 + $0x10] sm:%s145] %v162
                %v164 = vld [vmem:[%s152 + $0x14] sm:%s145]
                %165 = vst [vmem:[%s153 + $0x14] sm:%s145] %v164
                %v166 = vld [vmem:[%s152 + $0x18] sm:%s145]
                %167 = vst [vmem:[%s153 + $0x18] sm:%s145] %v166
                %v168 = vld [vmem:[%s152 + $0x1c] sm:%s145]
                %169 = vst [vmem:[%s153 + $0x1c] sm:%s145] %v168
                %v170 = vld [vmem:[%s152 + $0x20] sm:%s145]
                %171 = vst [vmem:[%s153 + $0x20] sm:%s145] %v170
                %v172 = vld [vmem:[%s152 + $0x24] sm:%s145]
                %173 = vst [vmem:[%s153 + $0x24] sm:%s145] %v172
                %v174 = vld [vmem:[%s152 + $0x28] sm:%s145]
                %175 = vst [vmem:[%s153 + $0x28] sm:%s145] %v174
                %v176 = vld [vmem:[%s152 + $0x2c] sm:%s145]
                %177 = vst [vmem:[%s153 + $0x2c] sm:%s145] %v176
                %v178 = vld [vmem:[%s152 + $0x30] sm:%s145]
                %179 = vst [vmem:[%s153 + $0x30] sm:%s145] %v178
                %v180 = vld [vmem:[%s152 + $0x34] sm:%s145]
                %181 = vst [vmem:[%s153 + $0x34] sm:%s145] %v180
                %v182 = vld [vmem:[%s152 + $0x38] sm:%s145]
                %183 = vst [vmem:[%s153 + $0x38] sm:%s145] %v182
                %v184 = vld [vmem:[%s152 + $0xf0] sm:%s145]
                %185 = vst [vmem:[%s153 + $0x3c] sm:%s145] %v184
                %v186 = vld [vmem:[%s152 + $0xf4] sm:%s145]
                %187 = vst [vmem:[%s153 + $0x40] sm:%s145] %v186
                %v188 = vld [vmem:[%s152 + $0xf8] sm:%s145]
                %189 = vst [vmem:[%s153 + $0x44] sm:%s145] %v188
                %v190 = vld [vmem:[%s152 + $0xfc] sm:%s145]
                %191 = vst [vmem:[%s153 + $0x48] sm:%s145] %v190
                %v192 = vld [vmem:[%s152 + $0x100] sm:%s145]
                %193 = vst [vmem:[%s153 + $0x4c] sm:%s145] %v192
                %v194 = vld [vmem:[%s152 + $0x104] sm:%s145]
                %195 = vst [vmem:[%s153 + $0x50] sm:%s145] %v194
                %v196 = vld [vmem:[%s152 + $0x108] sm:%s145]
                %197 = vst [vmem:[%s153 + $0x54] sm:%s145] %v196
                %v198 = vld [vmem:[%s152 + $0x10c] sm:%s145]
                %199 = vst [vmem:[%s153 + $0x58] sm:%s145] %v198
                %v200 = vld [vmem:[%s152 + $0x110] sm:%s145]
                %201 = vst [vmem:[%s153 + $0x5c] sm:%s145] %v200
                %v202 = vld [vmem:[%s152 + $0x114] sm:%s145]
                %203 = vst [vmem:[%s153 + $0x60] sm:%s145] %v202
                %v204 = vld [vmem:[%s152 + $0x118] sm:%s145]
                %205 = vst [vmem:[%s153 + $0x64] sm:%s145] %v204
                %v206 = vld [vmem:[%s152 + $0x11c] sm:%s145]
                %207 = vst [vmem:[%s153 + $0x68] sm:%s145] %v206
                %v208 = vld [vmem:[%s152 + $0x120] sm:%s145]
                %209 = vst [vmem:[%s153 + $0x6c] sm:%s145] %v208
                %v210 = vld [vmem:[%s152 + $0x124] sm:%s145]
                %211 = vst [vmem:[%s153 + $0x70] sm:%s145] %v210
                %v212 = vld [vmem:[%s152 + $0x128] sm:%s145]
                %213 = vst [vmem:[%s153 + $0x74] sm:%s145] %v212
                %v214 = vld [vmem:[%s152 + $0x1e0] sm:%s145]
                %215 = vst [vmem:[%s153 + $0x78] sm:%s145] %v214
                %v216 = vld [vmem:[%s152 + $0x1e4] sm:%s145]
                %217 = vst [vmem:[%s153 + $0x7c] sm:%s145] %v216
                %v218 = vld [vmem:[%s152 + $0x1e8] sm:%s145]
                %219 = vst [vmem:[%s153 + $0x80] sm:%s145] %v218
                %v220 = vld [vmem:[%s152 + $0x1ec] sm:%s145]
                %221 = vst [vmem:[%s153 + $0x84] sm:%s145] %v220
                %v222 = vld [vmem:[%s152 + $0x1f0] sm:%s145]
                %223 = vst [vmem:[%s153 + $0x88] sm:%s145] %v222
                %v224 = vld [vmem:[%s152 + $0x1f4] sm:%s145]
                %225 = vst [vmem:[%s153 + $0x8c] sm:%s145] %v224
                %v226 = vld [vmem:[%s152 + $0x1f8] sm:%s145]
                %227 = vst [vmem:[%s153 + $0x90] sm:%s145] %v226
                %v228 = vld [vmem:[%s152 + $0x1fc] sm:%s145]
                %229 = vst [vmem:[%s153 + $0x94] sm:%s145] %v228
                %v230 = vld [vmem:[%s152 + $0x200] sm:%s145]
                %231 = vst [vmem:[%s153 + $0x98] sm:%s145] %v230
                %v232 = vld [vmem:[%s152 + $0x204] sm:%s145]
                %233 = vst [vmem:[%s153 + $0x9c] sm:%s145] %v232
                %v234 = vld [vmem:[%s152 + $0x208] sm:%s145]
                %235 = vst [vmem:[%s153 + $0xa0] sm:%s145] %v234
                %v236 = vld [vmem:[%s152 + $0x20c] sm:%s145]
                %237 = vst [vmem:[%s153 + $0xa4] sm:%s145] %v236
                %v238 = vld [vmem:[%s152 + $0x210] sm:%s145]
                %239 = vst [vmem:[%s153 + $0xa8] sm:%s145] %v238
                %v240 = vld [vmem:[%s152 + $0x214] sm:%s145]
                %241 = vst [vmem:[%s153 + $0xac] sm:%s145] %v240
                %v242 = vld [vmem:[%s152 + $0x218] sm:%s145]
                %243 = vst [vmem:[%s153 + $0xb0] sm:%s145] %v242
                %v244 = vld [vmem:[%s152 + $0x2d0] sm:%s145]
                %245 = vst [vmem:[%s153 + $0xb4] sm:%s145] %v244
                %v246 = vld [vmem:[%s152 + $0x2d4] sm:%s145]
                %247 = vst [vmem:[%s153 + $0xb8] sm:%s145] %v246
                %v248 = vld [vmem:[%s152 + $0x2d8] sm:%s145]
                %249 = vst [vmem:[%s153 + $0xbc] sm:%s145] %v248
                %v250 = vld [vmem:[%s152 + $0x2dc] sm:%s145]
                %251 = vst [vmem:[%s153 + $0xc0] sm:%s145] %v250
                %v252 = vld [vmem:[%s152 + $0x2e0] sm:%s145]
                %253 = vst [vmem:[%s153 + $0xc4] sm:%s145] %v252
                %v254 = vld [vmem:[%s152 + $0x2e4] sm:%s145]
                %255 = vst [vmem:[%s153 + $0xc8] sm:%s145] %v254
                %v256 = vld [vmem:[%s152 + $0x2e8] sm:%s145]
                %257 = vst [vmem:[%s153 + $0xcc] sm:%s145] %v256
                %v258 = vld [vmem:[%s152 + $0x2ec] sm:%s145]
                %259 = vst [vmem:[%s153 + $0xd0] sm:%s145] %v258
                %v260 = vld [vmem:[%s152 + $0x2f0] sm:%s145]
                %261 = vst [vmem:[%s153 + $0xd4] sm:%s145] %v260
                %v262 = vld [vmem:[%s152 + $0x2f4] sm:%s145]
                %263 = vst [vmem:[%s153 + $0xd8] sm:%s145] %v262
                %v264 = vld [vmem:[%s152 + $0x2f8] sm:%s145]
                %265 = vst [vmem:[%s153 + $0xdc] sm:%s145] %v264
                %v266 = vld [vmem:[%s152 + $0x2fc] sm:%s145]
                %267 = vst [vmem:[%s153 + $0xe0] sm:%s145] %v266
                %v268 = vld [vmem:[%s152 + $0x300] sm:%s145]
                %269 = vst [vmem:[%s153 + $0xe4] sm:%s145] %v268
                %v270 = vld [vmem:[%s152 + $0x304] sm:%s145]
                %271 = vst [vmem:[%s153 + $0xe8] sm:%s145] %v270
                %v272 = vld [vmem:[%s152 + $0x308] sm:%s145]
                %273 = vst [vmem:[%s153 + $0xec] sm:%s145] %v272
              $region45: #{cnn_forward.3} parent=39 // loop_footer
                %s151 = sadd.s32 1, %s147
              $region46: #{cnn_forward.3} parent=39 // loop_footer_branch
                %146 = sbr.rel target = $region42
              $region47: #{cnn_forward.3} parent=39 // loop_exit
                _
            $region40: #{cnn_forward.3} parent=31 // pred_fallthru
              _
          $region32: #{cnn_forward.3} parent=27 // pred_fallthru
            _
          %414 = vnop
        $region28: #{cnn_forward.3} parent=23 // pred_fallthru
          _
      $region24: #{cnn_forward.3} parent=5 // pred_fallthru
        _
      %p415 = scmp.le.s32.totalorder 1, %s9
      %p416 = scmp.lt.s32.totalorder %s9, 5
      %p417 = pnand %p415, %p416
      %p418 = pneg %p417
      // Predicated region
      $region66: #{cnn_forward.3} parent=5 // pred_check
        _
      $region67: #{cnn_forward.3} parent=5 // pred_check_branch
        %420 = sbr.rel (%p417) target = $region69
      $region68: #{cnn_forward.3} parent=5 // pred_region
        %s421 = ssub.s32 %s9, 1
        %s422 = sand.u32 %s22, 1
        %s423 = sand.u32 %s22, 1
        %s424 = smul.addr %s423, 240
        %s425 = scalar_lea.vmem [#allocation2], %s424
        // Predicated region
        $region70: #{cnn_forward.3} parent=68 // pred_check
          %p426 = pneg %p35
        $region71: #{cnn_forward.3} parent=68 // pred_check_branch
          %428 = sbr.rel (%p426) target = $region73
        $region72: #{cnn_forward.3} parent=68 // pred_region
          _
        $region73: #{cnn_forward.3} parent=68 // pred_fallthru
          _
        %s429 = sand.u32 %s22, 1
        %s430 = sand.u32 %s22, 1
        %s431 = smul.addr %s430, 240
        %s432 = scalar_lea.vmem [#allocation2], %s431
        %p433 = pneg %p35
        %p434 = pneg %p32
        %p435 = pneg %p56
        %p436 = pneg %p53
        %p437 = pneg %p77
        %p438 = pneg %p74
        %p439 = pneg %p103
        %p440 = pneg %p100
        %s441 = smul.u32 15, %s14
        %p442 = scmp.lt.s32.totalorder %s441, 59
        %s443 = scalar_select %p442, %s441, 59
        %s444 = smul.addr %s443, 4
        %s445 = scalar_lea.vmem %s3, %s444
        %s446 = smul.u32 15, %s14
        %s447 = smul.u32 15, %s14
        %p448 = scmp.lt.s32.totalorder %s447, 59
        %s449 = scalar_select %p448, %s447, 59
        %s450 = smul.addr %s449, 4
        %s451 = scalar_lea.vmem %s3, %s450
        %s452 = smul.u32 15, %s14
        %v454 = vld [vmem:[%s425] sm:$0xf]
        %v455 = vld [vmem:[%s425 + $0x4] sm:$0xf]
        %v456 = vld [vmem:[%s425 + $0x8] sm:$0xf]
        %v457 = vld [vmem:[%s425 + $0xc] sm:$0xf]
        %v458 = vld [vmem:[%s425 + $0x10] sm:$0xf]
        %v459 = vld [vmem:[%s425 + $0x14] sm:$0xf]
        %v460 = vld [vmem:[%s425 + $0x18] sm:$0xf]
        %v461 = vld [vmem:[%s425 + $0x1c] sm:$0xf]
        %v462 = vld [vmem:[%s425 + $0x20] sm:$0xf]
        %v463 = vld [vmem:[%s425 + $0x24] sm:$0xf]
        %v464 = vld [vmem:[%s425 + $0x28] sm:$0xf]
        %v465 = vld [vmem:[%s425 + $0x2c] sm:$0xf]
        %v466 = vld [vmem:[%s425 + $0x30] sm:$0xf]
        %v467 = vld [vmem:[%s425 + $0x34] sm:$0xf]
        %v468 = vld [vmem:[%s425 + $0x38] sm:$0xf]
        %v469 = vld [vmem:[%s1] sm:$0xf]
        %v470 = vld [vmem:[%s1 + $0x4] sm:$0xf]
        %v486 = vunpack.c.l.b16 %v454
        %v487 = vunpack.c.l.b16 %v455
        %v488 = vunpack.c.l.b16 %v456
        %v489 = vunpack.c.l.b16 %v457
        %v490 = vunpack.c.l.b16 %v458
        %v491 = vunpack.c.l.b16 %v459
        %v492 = vunpack.c.l.b16 %v460
        %v493 = vunpack.c.l.b16 %v461
        %v494 = vunpack.c.l.b16 %v462
        %v495 = vunpack.c.l.b16 %v463
        %v496 = vunpack.c.l.b16 %v464
        %v497 = vunpack.c.l.b16 %v465
        %v498 = vunpack.c.l.b16 %v466
        %v499 = vunpack.c.l.b16 %v467
        %v500 = vunpack.c.l.b16 %v468
        %v501 = vpack.c.b16 %v487, %v486
        %v502 = vpack.c.b16 %v489, %v488
        %v503 = vpack.c.b16 %v491, %v490
        %v504 = vpack.c.b16 %v493, %v492
        %v505 = vpack.c.b16 %v495, %v494
        %v506 = vpack.c.b16 %v497, %v496
        %v507 = vpack.c.b16 %v499, %v498
        %v508 = vpack.c.b16 %v500, %v500
        %v511 = vunpack.c.l.b16 %v469
        %v512 = vunpack.c.l.b16 %v470
        %v513 = vpack.c.b16 %v512, %v511
        %vm515 = vcmask 130048
        %v517 = vsel %vm515, %v501, 0
        %v520 = vsel %vm515, %v502, 0
        %v523 = vsel %vm515, %v503, 0
        %v526 = vsel %vm515, %v504, 0
        %v529 = vsel %vm515, %v505, 0
        %v532 = vsel %vm515, %v506, 0
        %v535 = vsel %vm515, %v507, 0
        %v538 = vsel %vm515, %v508, 0
        %540 = vmatprep.subr.bf16.mxu0 0
        %541 = vmatpush1.bf16.msra.mxu0 0
        %542 = vmatprep.subr.bf16.mxu0 0
        %543 = vmatpush1.bf16.msra.mxu0 0
        %544 = vmatprep.subr.bf16.mxu0 0
        %545 = vmatpush1.bf16.msra.mxu0 0
        %546 = vmatprep.subr.bf16.mxu0 0
        %547 = vmatpush1.bf16.msra.mxu0 0
        %548 = vmatprep.subr.bf16.mxu0 0
        %549 = vmatpush1.bf16.msra.mxu0 0
        %550 = vmatprep.subr.bf16.mxu0 0
        %551 = vmatpush1.bf16.msra.mxu0 0
        %552 = vmatprep.subr.bf16.mxu0 0
        %553 = vmatpush1.bf16.msra.mxu0 0
        %554 = vmatprep.subr.bf16.mxu0 0
        %555 = vmatpush1.bf16.msra.mxu0 %v513
        %556 = vmatprep.subr.bf16.mxu0 0
        %557 = vmatpush2.bf16.msra.mxu0 0
        %558 = vmatprep.subr.bf16.mxu0 0
        %559 = vmatpush2.bf16.msra.mxu0 0
        %560 = vmatprep.subr.bf16.mxu0 0
        %561 = vmatpush2.bf16.msra.mxu0 0
        %562 = vmatprep.subr.bf16.mxu0 0
        %563 = vmatpush2.bf16.msra.mxu0 0
        %564 = vmatprep.subr.bf16.mxu0 0
        %565 = vmatpush2.bf16.msra.mxu0 0
        %566 = vmatprep.subr.bf16.mxu0 0
        %567 = vmatpush2.bf16.msra.mxu0 0
        %568 = vmatprep.subr.bf16.mxu0 0
        %569 = vmatpush2.bf16.msra.mxu0 0
        %570 = vmatprep.subr.bf16.mxu0 0
        %571 = vmatpush2.bf16.msra.mxu0 0
        %572 = vmatprep.mubr.bf16.mxu0 0
        %573 = vmatmul.mubr.bf16.gmra.mxu0 %v517
        %v574 = vpop.f32.mrf.mxu0
        %v575 = vadd.f32 0.0, %v574
        %v576 = vpop.f32.mrf.mxu0
        %v577 = vpop.f32.mrf.mxu0
        %v578 = vadd.f32 0.0, %v577
        %v579 = vpop.f32.mrf.mxu0
        %580 = vmatprep.mubr.bf16.mxu0 0
        %581 = vmatmul.mubr.bf16.gmra.mxu0 %v520
        %v582 = vpop.f32.mrf.mxu0
        %v583 = vadd.f32 0.0, %v582
        %v584 = vpop.f32.mrf.mxu0
        %v585 = vpop.f32.mrf.mxu0
        %v586 = vadd.f32 0.0, %v585
        %v587 = vpop.f32.mrf.mxu0
        %588 = vmatprep.mubr.bf16.mxu0 0
        %589 = vmatmul.mubr.bf16.gmra.mxu0 %v523
        %v590 = vpop.f32.mrf.mxu0
        %v591 = vadd.f32 0.0, %v590
        %v592 = vpop.f32.mrf.mxu0
        %v593 = vpop.f32.mrf.mxu0
        %v594 = vadd.f32 0.0, %v593
        %v595 = vpop.f32.mrf.mxu0
        %596 = vmatprep.mubr.bf16.mxu0 0
        %597 = vmatmul.mubr.bf16.gmra.mxu0 %v526
        %v598 = vpop.f32.mrf.mxu0
        %v599 = vadd.f32 0.0, %v598
        %v600 = vpop.f32.mrf.mxu0
        %v601 = vpop.f32.mrf.mxu0
        %v602 = vadd.f32 0.0, %v601
        %v603 = vpop.f32.mrf.mxu0
        %604 = vmatprep.mubr.bf16.mxu0 0
        %605 = vmatmul.mubr.bf16.gmra.mxu0 %v529
        %v606 = vpop.f32.mrf.mxu0
        %v607 = vadd.f32 0.0, %v606
        %v608 = vpop.f32.mrf.mxu0
        %v609 = vpop.f32.mrf.mxu0
        %v610 = vadd.f32 0.0, %v609
        %v611 = vpop.f32.mrf.mxu0
        %612 = vmatprep.mubr.bf16.mxu0 0
        %613 = vmatmul.mubr.bf16.gmra.mxu0 %v532
        %v614 = vpop.f32.mrf.mxu0
        %v615 = vadd.f32 0.0, %v614
        %v616 = vpop.f32.mrf.mxu0
        %v617 = vpop.f32.mrf.mxu0
        %v618 = vadd.f32 0.0, %v617
        %v619 = vpop.f32.mrf.mxu0
        %620 = vmatprep.mubr.bf16.mxu0 0
        %621 = vmatmul.mubr.bf16.gmra.mxu0 %v535
        %v622 = vpop.f32.mrf.mxu0
        %v623 = vadd.f32 0.0, %v622
        %v624 = vpop.f32.mrf.mxu0
        %v625 = vpop.f32.mrf.mxu0
        %v626 = vadd.f32 0.0, %v625
        %v627 = vpop.f32.mrf.mxu0
        %628 = vmatprep.mubr.bf16.mxu0 0
        %629 = vmatmul.mubr.bf16.gmra.mxu0 %v538
        %v630 = vpop.f32.mrf.mxu0
        %v631 = vadd.f32 0.0, %v630
        %v632 = vpop.f32.mrf.mxu0
        %v633 = vpop.f32.mrf.mxu0
        %v634 = vpop.f32.mrf.mxu0
        %635 = vdwg.mxu0
        %s636 = scalar_lea.vmem %s425, 60 [#allocation2]
        %v637 = vld [vmem:[%s636] sm:$0xf]
        %v638 = vld [vmem:[%s636 + $0x4] sm:$0xf]
        %v639 = vld [vmem:[%s636 + $0x8] sm:$0xf]
        %v640 = vld [vmem:[%s636 + $0xc] sm:$0xf]
        %v641 = vld [vmem:[%s636 + $0x10] sm:$0xf]
        %v642 = vld [vmem:[%s636 + $0x14] sm:$0xf]
        %v643 = vld [vmem:[%s636 + $0x18] sm:$0xf]
        %v644 = vld [vmem:[%s636 + $0x1c] sm:$0xf]
        %v645 = vld [vmem:[%s636 + $0x20] sm:$0xf]
        %v646 = vld [vmem:[%s636 + $0x24] sm:$0xf]
        %v647 = vld [vmem:[%s636 + $0x28] sm:$0xf]
        %v648 = vld [vmem:[%s636 + $0x2c] sm:$0xf]
        %v649 = vld [vmem:[%s636 + $0x30] sm:$0xf]
        %v650 = vld [vmem:[%s636 + $0x34] sm:$0xf]
        %v651 = vld [vmem:[%s636 + $0x38] sm:$0xf]
        %v667 = vunpack.c.l.b16 %v637
        %v668 = vunpack.c.l.b16 %v638
        %v669 = vunpack.c.l.b16 %v639
        %v670 = vunpack.c.l.b16 %v640
        %v671 = vunpack.c.l.b16 %v641
        %v672 = vunpack.c.l.b16 %v642
        %v673 = vunpack.c.l.b16 %v643
        %v674 = vunpack.c.l.b16 %v644
        %v675 = vunpack.c.l.b16 %v645
        %v676 = vunpack.c.l.b16 %v646
        %v677 = vunpack.c.l.b16 %v647
        %v678 = vunpack.c.l.b16 %v648
        %v679 = vunpack.c.l.b16 %v649
        %v680 = vunpack.c.l.b16 %v650
        %v681 = vunpack.c.l.b16 %v651
        %v682 = vpack.c.b16 %v668, %v667
        %v683 = vpack.c.b16 %v670, %v669
        %v684 = vpack.c.b16 %v672, %v671
        %v685 = vpack.c.b16 %v674, %v673
        %v686 = vpack.c.b16 %v676, %v675
        %v687 = vpack.c.b16 %v678, %v677
        %v688 = vpack.c.b16 %v680, %v679
        %v689 = vpack.c.b16 %v681, %v681
        %v691 = vsel %vm515, %v682, 0
        %v694 = vsel %vm515, %v683, 0
        %v697 = vsel %vm515, %v684, 0
        %v700 = vsel %vm515, %v685, 0
        %v703 = vsel %vm515, %v686, 0
        %v706 = vsel %vm515, %v687, 0
        %v709 = vsel %vm515, %v688, 0
        %v712 = vsel %vm515, %v689, 0
        %714 = vmatprep.subr.bf16.mxu0 0
        %715 = vmatpush1.bf16.msra.mxu0 0
        %716 = vmatprep.subr.bf16.mxu0 0
        %717 = vmatpush1.bf16.msra.mxu0 0
        %718 = vmatprep.subr.bf16.mxu0 0
        %719 = vmatpush1.bf16.msra.mxu0 0
        %720 = vmatprep.subr.bf16.mxu0 0
        %721 = vmatpush1.bf16.msra.mxu0 0
        %722 = vmatprep.subr.bf16.mxu0 0
        %723 = vmatpush1.bf16.msra.mxu0 0
        %724 = vmatprep.subr.bf16.mxu0 0
        %725 = vmatpush1.bf16.msra.mxu0 0
        %726 = vmatprep.subr.bf16.mxu0 0
        %727 = vmatpush1.bf16.msra.mxu0 0
        %728 = vmatprep.subr.bf16.mxu0 0
        %729 = vmatpush1.bf16.msra.mxu0 %v513
        %730 = vmatprep.subr.bf16.mxu0 0
        %731 = vmatpush2.bf16.msra.mxu0 0
        %732 = vmatprep.subr.bf16.mxu0 0
        %733 = vmatpush2.bf16.msra.mxu0 0
        %734 = vmatprep.subr.bf16.mxu0 0
        %735 = vmatpush2.bf16.msra.mxu0 0
        %736 = vmatprep.subr.bf16.mxu0 0
        %737 = vmatpush2.bf16.msra.mxu0 0
        %738 = vmatprep.subr.bf16.mxu0 0
        %739 = vmatpush2.bf16.msra.mxu0 0
        %740 = vmatprep.subr.bf16.mxu0 0
        %741 = vmatpush2.bf16.msra.mxu0 0
        %742 = vmatprep.subr.bf16.mxu0 0
        %743 = vmatpush2.bf16.msra.mxu0 0
        %744 = vmatprep.subr.bf16.mxu0 0
        %745 = vmatpush2.bf16.msra.mxu0 0
        %746 = vmatprep.mubr.bf16.mxu0 0
        %747 = vmatmul.mubr.bf16.gmra.mxu0 %v691
        %v748 = vpop.f32.mrf.mxu0
        %v749 = vadd.f32 0.0, %v748
        %v750 = vpop.f32.mrf.mxu0
        %v751 = vpop.f32.mrf.mxu0
        %v752 = vadd.f32 0.0, %v751
        %v753 = vpop.f32.mrf.mxu0
        %754 = vmatprep.mubr.bf16.mxu0 0
        %755 = vmatmul.mubr.bf16.gmra.mxu0 %v694
        %v756 = vpop.f32.mrf.mxu0
        %v757 = vadd.f32 0.0, %v756
        %v758 = vpop.f32.mrf.mxu0
        %v759 = vpop.f32.mrf.mxu0
        %v760 = vadd.f32 0.0, %v759
        %v761 = vpop.f32.mrf.mxu0
        %762 = vmatprep.mubr.bf16.mxu0 0
        %763 = vmatmul.mubr.bf16.gmra.mxu0 %v697
        %v764 = vpop.f32.mrf.mxu0
        %v765 = vadd.f32 0.0, %v764
        %v766 = vpop.f32.mrf.mxu0
        %v767 = vpop.f32.mrf.mxu0
        %v768 = vadd.f32 0.0, %v767
        %v769 = vpop.f32.mrf.mxu0
        %770 = vmatprep.mubr.bf16.mxu0 0
        %771 = vmatmul.mubr.bf16.gmra.mxu0 %v700
        %v772 = vpop.f32.mrf.mxu0
        %v773 = vadd.f32 0.0, %v772
        %v774 = vpop.f32.mrf.mxu0
        %v775 = vpop.f32.mrf.mxu0
        %v776 = vadd.f32 0.0, %v775
        %v777 = vpop.f32.mrf.mxu0
        %778 = vmatprep.mubr.bf16.mxu0 0
        %779 = vmatmul.mubr.bf16.gmra.mxu0 %v703
        %v780 = vpop.f32.mrf.mxu0
        %v781 = vadd.f32 0.0, %v780
        %v782 = vpop.f32.mrf.mxu0
        %v783 = vpop.f32.mrf.mxu0
        %v784 = vadd.f32 0.0, %v783
        %v785 = vpop.f32.mrf.mxu0
        %786 = vmatprep.mubr.bf16.mxu0 0
        %787 = vmatmul.mubr.bf16.gmra.mxu0 %v706
        %v788 = vpop.f32.mrf.mxu0
        %v789 = vadd.f32 0.0, %v788
        %v790 = vpop.f32.mrf.mxu0
        %v791 = vpop.f32.mrf.mxu0
        %v792 = vadd.f32 0.0, %v791
        %v793 = vpop.f32.mrf.mxu0
        %794 = vmatprep.mubr.bf16.mxu0 0
        %795 = vmatmul.mubr.bf16.gmra.mxu0 %v709
        %v796 = vpop.f32.mrf.mxu0
        %v797 = vadd.f32 0.0, %v796
        %v798 = vpop.f32.mrf.mxu0
        %v799 = vpop.f32.mrf.mxu0
        %v800 = vadd.f32 0.0, %v799
        %v801 = vpop.f32.mrf.mxu0
        %802 = vmatprep.mubr.bf16.mxu0 0
        %803 = vmatmul.mubr.bf16.gmra.mxu0 %v712
        %v804 = vpop.f32.mrf.mxu0
        %v805 = vadd.f32 0.0, %v804
        %v806 = vpop.f32.mrf.mxu0
        %v807 = vpop.f32.mrf.mxu0
        %v808 = vpop.f32.mrf.mxu0
        %809 = vdwg.mxu0
        %v810 = vmax.f32 %v575, %v749
        %v811 = vmax.f32 %v578, %v752
        %v812 = vmax.f32 %v583, %v757
        %v813 = vmax.f32 %v586, %v760
        %v814 = vmax.f32 %v591, %v765
        %v815 = vmax.f32 %v594, %v768
        %v816 = vmax.f32 %v599, %v773
        %v817 = vmax.f32 %v602, %v776
        %v818 = vmax.f32 %v607, %v781
        %v819 = vmax.f32 %v610, %v784
        %v820 = vmax.f32 %v615, %v789
        %v821 = vmax.f32 %v618, %v792
        %v822 = vmax.f32 %v623, %v797
        %v823 = vmax.f32 %v626, %v800
        %v824 = vmax.f32 %v631, %v805
        %s825 = scalar_lea.vmem %s425, 120 [#allocation2]
        %v826 = vld [vmem:[%s825] sm:$0xf]
        %v827 = vld [vmem:[%s825 + $0x4] sm:$0xf]
        %v828 = vld [vmem:[%s825 + $0x8] sm:$0xf]
        %v829 = vld [vmem:[%s825 + $0xc] sm:$0xf]
        %v830 = vld [vmem:[%s825 + $0x10] sm:$0xf]
        %v831 = vld [vmem:[%s825 + $0x14] sm:$0xf]
        %v832 = vld [vmem:[%s825 + $0x18] sm:$0xf]
        %v833 = vld [vmem:[%s825 + $0x1c] sm:$0xf]
        %v834 = vld [vmem:[%s825 + $0x20] sm:$0xf]
        %v835 = vld [vmem:[%s825 + $0x24] sm:$0xf]
        %v836 = vld [vmem:[%s825 + $0x28] sm:$0xf]
        %v837 = vld [vmem:[%s825 + $0x2c] sm:$0xf]
        %v838 = vld [vmem:[%s825 + $0x30] sm:$0xf]
        %v839 = vld [vmem:[%s825 + $0x34] sm:$0xf]
        %v840 = vld [vmem:[%s825 + $0x38] sm:$0xf]
        %v856 = vunpack.c.l.b16 %v826
        %v857 = vunpack.c.l.b16 %v827
        %v858 = vunpack.c.l.b16 %v828
        %v859 = vunpack.c.l.b16 %v829
        %v860 = vunpack.c.l.b16 %v830
        %v861 = vunpack.c.l.b16 %v831
        %v862 = vunpack.c.l.b16 %v832
        %v863 = vunpack.c.l.b16 %v833
        %v864 = vunpack.c.l.b16 %v834
        %v865 = vunpack.c.l.b16 %v835
        %v866 = vunpack.c.l.b16 %v836
        %v867 = vunpack.c.l.b16 %v837
        %v868 = vunpack.c.l.b16 %v838
        %v869 = vunpack.c.l.b16 %v839
        %v870 = vunpack.c.l.b16 %v840
        %v871 = vpack.c.b16 %v857, %v856
        %v872 = vpack.c.b16 %v859, %v858
        %v873 = vpack.c.b16 %v861, %v860
        %v874 = vpack.c.b16 %v863, %v862
        %v875 = vpack.c.b16 %v865, %v864
        %v876 = vpack.c.b16 %v867, %v866
        %v877 = vpack.c.b16 %v869, %v868
        %v878 = vpack.c.b16 %v870, %v870
        %v880 = vsel %vm515, %v871, 0
        %v883 = vsel %vm515, %v872, 0
        %v886 = vsel %vm515, %v873, 0
        %v889 = vsel %vm515, %v874, 0
        %v892 = vsel %vm515, %v875, 0
        %v895 = vsel %vm515, %v876, 0
        %v898 = vsel %vm515, %v877, 0
        %v901 = vsel %vm515, %v878, 0
        %903 = vmatprep.subr.bf16.mxu0 0
        %904 = vmatpush1.bf16.msra.mxu0 0
        %905 = vmatprep.subr.bf16.mxu0 0
        %906 = vmatpush1.bf16.msra.mxu0 0
        %907 = vmatprep.subr.bf16.mxu0 0
        %908 = vmatpush1.bf16.msra.mxu0 0
        %909 = vmatprep.subr.bf16.mxu0 0
        %910 = vmatpush1.bf16.msra.mxu0 0
        %911 = vmatprep.subr.bf16.mxu0 0
        %912 = vmatpush1.bf16.msra.mxu0 0
        %913 = vmatprep.subr.bf16.mxu0 0
        %914 = vmatpush1.bf16.msra.mxu0 0
        %915 = vmatprep.subr.bf16.mxu0 0
        %916 = vmatpush1.bf16.msra.mxu0 0
        %917 = vmatprep.subr.bf16.mxu0 0
        %918 = vmatpush1.bf16.msra.mxu0 %v513
        %919 = vmatprep.subr.bf16.mxu0 0
        %920 = vmatpush2.bf16.msra.mxu0 0
        %921 = vmatprep.subr.bf16.mxu0 0
        %922 = vmatpush2.bf16.msra.mxu0 0
        %923 = vmatprep.subr.bf16.mxu0 0
        %924 = vmatpush2.bf16.msra.mxu0 0
        %925 = vmatprep.subr.bf16.mxu0 0
        %926 = vmatpush2.bf16.msra.mxu0 0
        %927 = vmatprep.subr.bf16.mxu0 0
        %928 = vmatpush2.bf16.msra.mxu0 0
        %929 = vmatprep.subr.bf16.mxu0 0
        %930 = vmatpush2.bf16.msra.mxu0 0
        %931 = vmatprep.subr.bf16.mxu0 0
        %932 = vmatpush2.bf16.msra.mxu0 0
        %933 = vmatprep.subr.bf16.mxu0 0
        %934 = vmatpush2.bf16.msra.mxu0 0
        %935 = vmatprep.mubr.bf16.mxu0 0
        %936 = vmatmul.mubr.bf16.gmra.mxu0 %v880
        %v937 = vpop.f32.mrf.mxu0
        %v938 = vadd.f32 0.0, %v937
        %v939 = vpop.f32.mrf.mxu0
        %v940 = vpop.f32.mrf.mxu0
        %v941 = vadd.f32 0.0, %v940
        %v942 = vpop.f32.mrf.mxu0
        %943 = vmatprep.mubr.bf16.mxu0 0
        %944 = vmatmul.mubr.bf16.gmra.mxu0 %v883
        %v945 = vpop.f32.mrf.mxu0
        %v946 = vadd.f32 0.0, %v945
        %v947 = vpop.f32.mrf.mxu0
        %v948 = vpop.f32.mrf.mxu0
        %v949 = vadd.f32 0.0, %v948
        %v950 = vpop.f32.mrf.mxu0
        %951 = vmatprep.mubr.bf16.mxu0 0
        %952 = vmatmul.mubr.bf16.gmra.mxu0 %v886
        %v953 = vpop.f32.mrf.mxu0
        %v954 = vadd.f32 0.0, %v953
        %v955 = vpop.f32.mrf.mxu0
        %v956 = vpop.f32.mrf.mxu0
        %v957 = vadd.f32 0.0, %v956
        %v958 = vpop.f32.mrf.mxu0
        %959 = vmatprep.mubr.bf16.mxu0 0
        %960 = vmatmul.mubr.bf16.gmra.mxu0 %v889
        %v961 = vpop.f32.mrf.mxu0
        %v962 = vadd.f32 0.0, %v961
        %v963 = vpop.f32.mrf.mxu0
        %v964 = vpop.f32.mrf.mxu0
        %v965 = vadd.f32 0.0, %v964
        %v966 = vpop.f32.mrf.mxu0
        %967 = vmatprep.mubr.bf16.mxu0 0
        %968 = vmatmul.mubr.bf16.gmra.mxu0 %v892
        %v969 = vpop.f32.mrf.mxu0
        %v970 = vadd.f32 0.0, %v969
        %v971 = vpop.f32.mrf.mxu0
        %v972 = vpop.f32.mrf.mxu0
        %v973 = vadd.f32 0.0, %v972
        %v974 = vpop.f32.mrf.mxu0
        %975 = vmatprep.mubr.bf16.mxu0 0
        %976 = vmatmul.mubr.bf16.gmra.mxu0 %v895
        %v977 = vpop.f32.mrf.mxu0
        %v978 = vadd.f32 0.0, %v977
        %v979 = vpop.f32.mrf.mxu0
        %v980 = vpop.f32.mrf.mxu0
        %v981 = vadd.f32 0.0, %v980
        %v982 = vpop.f32.mrf.mxu0
        %983 = vmatprep.mubr.bf16.mxu0 0
        %984 = vmatmul.mubr.bf16.gmra.mxu0 %v898
        %v985 = vpop.f32.mrf.mxu0
        %v986 = vadd.f32 0.0, %v985
        %v987 = vpop.f32.mrf.mxu0
        %v988 = vpop.f32.mrf.mxu0
        %v989 = vadd.f32 0.0, %v988
        %v990 = vpop.f32.mrf.mxu0
        %991 = vmatprep.mubr.bf16.mxu0 0
        %992 = vmatmul.mubr.bf16.gmra.mxu0 %v901
        %v993 = vpop.f32.mrf.mxu0
        %v994 = vadd.f32 0.0, %v993
        %v995 = vpop.f32.mrf.mxu0
        %v996 = vpop.f32.mrf.mxu0
        %v997 = vpop.f32.mrf.mxu0
        %998 = vdwg.mxu0
        %v999 = vmax.f32 %v810, %v938
        %v1000 = vmax.f32 %v811, %v941
        %v1001 = vmax.f32 %v812, %v946
        %v1002 = vmax.f32 %v813, %v949
        %v1003 = vmax.f32 %v814, %v954
        %v1004 = vmax.f32 %v815, %v957
        %v1005 = vmax.f32 %v816, %v962
        %v1006 = vmax.f32 %v817, %v965
        %v1007 = vmax.f32 %v818, %v970
        %v1008 = vmax.f32 %v819, %v973
        %v1009 = vmax.f32 %v820, %v978
        %v1010 = vmax.f32 %v821, %v981
        %v1011 = vmax.f32 %v822, %v986
        %v1012 = vmax.f32 %v823, %v989
        %v1013 = vmax.f32 %v824, %v994
        %s1014 = scalar_lea.vmem %s425, 180 [#allocation2]
        %v1015 = vld [vmem:[%s1014] sm:$0xf]
        %v1016 = vld [vmem:[%s1014 + $0x4] sm:$0xf]
        %v1017 = vld [vmem:[%s1014 + $0x8] sm:$0xf]
        %v1018 = vld [vmem:[%s1014 + $0xc] sm:$0xf]
        %v1019 = vld [vmem:[%s1014 + $0x10] sm:$0xf]
        %v1020 = vld [vmem:[%s1014 + $0x14] sm:$0xf]
        %v1021 = vld [vmem:[%s1014 + $0x18] sm:$0xf]
        %v1022 = vld [vmem:[%s1014 + $0x1c] sm:$0xf]
        %v1023 = vld [vmem:[%s1014 + $0x20] sm:$0xf]
        %v1024 = vld [vmem:[%s1014 + $0x24] sm:$0xf]
        %v1025 = vld [vmem:[%s1014 + $0x28] sm:$0xf]
        %v1026 = vld [vmem:[%s1014 + $0x2c] sm:$0xf]
        %v1027 = vld [vmem:[%s1014 + $0x30] sm:$0xf]
        %v1028 = vld [vmem:[%s1014 + $0x34] sm:$0xf]
        %v1029 = vld [vmem:[%s1014 + $0x38] sm:$0xf]
        %v1045 = vunpack.c.l.b16 %v1015
        %v1046 = vunpack.c.l.b16 %v1016
        %v1047 = vunpack.c.l.b16 %v1017
        %v1048 = vunpack.c.l.b16 %v1018
        %v1049 = vunpack.c.l.b16 %v1019
        %v1050 = vunpack.c.l.b16 %v1020
        %v1051 = vunpack.c.l.b16 %v1021
        %v1052 = vunpack.c.l.b16 %v1022
        %v1053 = vunpack.c.l.b16 %v1023
        %v1054 = vunpack.c.l.b16 %v1024
        %v1055 = vunpack.c.l.b16 %v1025
        %v1056 = vunpack.c.l.b16 %v1026
        %v1057 = vunpack.c.l.b16 %v1027
        %v1058 = vunpack.c.l.b16 %v1028
        %v1059 = vunpack.c.l.b16 %v1029
        %v1060 = vpack.c.b16 %v1046, %v1045
        %v1061 = vpack.c.b16 %v1048, %v1047
        %v1062 = vpack.c.b16 %v1050, %v1049
        %v1063 = vpack.c.b16 %v1052, %v1051
        %v1064 = vpack.c.b16 %v1054, %v1053
        %v1065 = vpack.c.b16 %v1056, %v1055
        %v1066 = vpack.c.b16 %v1058, %v1057
        %v1067 = vpack.c.b16 %v1059, %v1059
        %v1069 = vsel %vm515, %v1060, 0
        %v1072 = vsel %vm515, %v1061, 0
        %v1075 = vsel %vm515, %v1062, 0
        %v1078 = vsel %vm515, %v1063, 0
        %v1081 = vsel %vm515, %v1064, 0
        %v1084 = vsel %vm515, %v1065, 0
        %v1087 = vsel %vm515, %v1066, 0
        %v1090 = vsel %vm515, %v1067, 0
        %1092 = vmatprep.subr.bf16.mxu0 0
        %1093 = vmatpush1.bf16.msra.mxu0 0
        %1094 = vmatprep.subr.bf16.mxu0 0
        %1095 = vmatpush1.bf16.msra.mxu0 0
        %1096 = vmatprep.subr.bf16.mxu0 0
        %1097 = vmatpush1.bf16.msra.mxu0 0
        %1098 = vmatprep.subr.bf16.mxu0 0
        %1099 = vmatpush1.bf16.msra.mxu0 0
        %1100 = vmatprep.subr.bf16.mxu0 0
        %1101 = vmatpush1.bf16.msra.mxu0 0
        %1102 = vmatprep.subr.bf16.mxu0 0
        %1103 = vmatpush1.bf16.msra.mxu0 0
        %1104 = vmatprep.subr.bf16.mxu0 0
        %1105 = vmatpush1.bf16.msra.mxu0 0
        %1106 = vmatprep.subr.bf16.mxu0 0
        %1107 = vmatpush1.bf16.msra.mxu0 %v513
        %1108 = vmatprep.subr.bf16.mxu0 0
        %1109 = vmatpush2.bf16.msra.mxu0 0
        %1110 = vmatprep.subr.bf16.mxu0 0
        %1111 = vmatpush2.bf16.msra.mxu0 0
        %1112 = vmatprep.subr.bf16.mxu0 0
        %1113 = vmatpush2.bf16.msra.mxu0 0
        %1114 = vmatprep.subr.bf16.mxu0 0
        %1115 = vmatpush2.bf16.msra.mxu0 0
        %1116 = vmatprep.subr.bf16.mxu0 0
        %1117 = vmatpush2.bf16.msra.mxu0 0
        %1118 = vmatprep.subr.bf16.mxu0 0
        %1119 = vmatpush2.bf16.msra.mxu0 0
        %1120 = vmatprep.subr.bf16.mxu0 0
        %1121 = vmatpush2.bf16.msra.mxu0 0
        %1122 = vmatprep.subr.bf16.mxu0 0
        %1123 = vmatpush2.bf16.msra.mxu0 0
        %1124 = vmatprep.mubr.bf16.mxu0 0
        %1125 = vmatmul.mubr.bf16.gmra.mxu0 %v1069
        %v1126 = vpop.f32.mrf.mxu0
        %v1127 = vadd.f32 0.0, %v1126
        %v1128 = vpop.f32.mrf.mxu0
        %v1129 = vpop.f32.mrf.mxu0
        %v1130 = vadd.f32 0.0, %v1129
        %v1131 = vpop.f32.mrf.mxu0
        %1132 = vmatprep.mubr.bf16.mxu0 0
        %1133 = vmatmul.mubr.bf16.gmra.mxu0 %v1072
        %v1134 = vpop.f32.mrf.mxu0
        %v1135 = vadd.f32 0.0, %v1134
        %v1136 = vpop.f32.mrf.mxu0
        %v1137 = vpop.f32.mrf.mxu0
        %v1138 = vadd.f32 0.0, %v1137
        %v1139 = vpop.f32.mrf.mxu0
        %1140 = vmatprep.mubr.bf16.mxu0 0
        %1141 = vmatmul.mubr.bf16.gmra.mxu0 %v1075
        %v1142 = vpop.f32.mrf.mxu0
        %v1143 = vadd.f32 0.0, %v1142
        %v1144 = vpop.f32.mrf.mxu0
        %v1145 = vpop.f32.mrf.mxu0
        %v1146 = vadd.f32 0.0, %v1145
        %v1147 = vpop.f32.mrf.mxu0
        %1148 = vmatprep.mubr.bf16.mxu0 0
        %1149 = vmatmul.mubr.bf16.gmra.mxu0 %v1078
        %v1150 = vpop.f32.mrf.mxu0
        %v1151 = vadd.f32 0.0, %v1150
        %v1152 = vpop.f32.mrf.mxu0
        %v1153 = vpop.f32.mrf.mxu0
        %v1154 = vadd.f32 0.0, %v1153
        %v1155 = vpop.f32.mrf.mxu0
        %1156 = vmatprep.mubr.bf16.mxu0 0
        %1157 = vmatmul.mubr.bf16.gmra.mxu0 %v1081
        %v1158 = vpop.f32.mrf.mxu0
        %v1159 = vadd.f32 0.0, %v1158
        %v1160 = vpop.f32.mrf.mxu0
        %v1161 = vpop.f32.mrf.mxu0
        %v1162 = vadd.f32 0.0, %v1161
        %v1163 = vpop.f32.mrf.mxu0
        %1164 = vmatprep.mubr.bf16.mxu0 0
        %1165 = vmatmul.mubr.bf16.gmra.mxu0 %v1084
        %v1166 = vpop.f32.mrf.mxu0
        %v1167 = vadd.f32 0.0, %v1166
        %v1168 = vpop.f32.mrf.mxu0
        %v1169 = vpop.f32.mrf.mxu0
        %v1170 = vadd.f32 0.0, %v1169
        %v1171 = vpop.f32.mrf.mxu0
        %1172 = vmatprep.mubr.bf16.mxu0 0
        %1173 = vmatmul.mubr.bf16.gmra.mxu0 %v1087
        %v1174 = vpop.f32.mrf.mxu0
        %v1175 = vadd.f32 0.0, %v1174
        %v1176 = vpop.f32.mrf.mxu0
        %v1177 = vpop.f32.mrf.mxu0
        %v1178 = vadd.f32 0.0, %v1177
        %v1179 = vpop.f32.mrf.mxu0
        %1180 = vmatprep.mubr.bf16.mxu0 0
        %1181 = vmatmul.mubr.bf16.gmra.mxu0 %v1090
        %v1182 = vpop.f32.mrf.mxu0
        %v1183 = vadd.f32 0.0, %v1182
        %v1184 = vpop.f32.mrf.mxu0
        %v1185 = vpop.f32.mrf.mxu0
        %v1186 = vpop.f32.mrf.mxu0
        %1187 = vdwg.mxu0
        %v1188 = vmax.f32 %v999, %v1127
        %v1189 = vmax.f32 %v1000, %v1130
        %v1190 = vmax.f32 %v1001, %v1135
        %v1191 = vmax.f32 %v1002, %v1138
        %v1192 = vmax.f32 %v1003, %v1143
        %v1193 = vmax.f32 %v1004, %v1146
        %v1194 = vmax.f32 %v1005, %v1151
        %v1195 = vmax.f32 %v1006, %v1154
        %v1196 = vmax.f32 %v1007, %v1159
        %v1197 = vmax.f32 %v1008, %v1162
        %v1198 = vmax.f32 %v1009, %v1167
        %v1199 = vmax.f32 %v1010, %v1170
        %v1200 = vmax.f32 %v1011, %v1175
        %v1201 = vmax.f32 %v1012, %v1178
        %v1202 = vmax.f32 %v1013, %v1183
        %v1203 = vld [vmem:[%s2] sm:$0x1]
        %v1205 = vlaneseq
        %v1206 = vshrl.u32 %v1205, 7
        %v1207 = vsub.s32 0, %v1206
        %v1208 = vrot.slane %v1203, %v1207
        %v1210 = vadd.f32 %v1188, %v1208
        %v1211 = vadd.f32 %v1189, %v1208
        %v1212 = vadd.f32 %v1190, %v1208
        %v1213 = vadd.f32 %v1191, %v1208
        %v1214 = vadd.f32 %v1192, %v1208
        %v1215 = vadd.f32 %v1193, %v1208
        %v1216 = vadd.f32 %v1194, %v1208
        %v1217 = vadd.f32 %v1195, %v1208
        %v1218 = vadd.f32 %v1196, %v1208
        %v1219 = vadd.f32 %v1197, %v1208
        %v1220 = vadd.f32 %v1198, %v1208
        %v1221 = vadd.f32 %v1199, %v1208
        %v1222 = vadd.f32 %v1200, %v1208
        %v1223 = vadd.f32 %v1201, %v1208
        %v1224 = vadd.f32 %v1202, %v1208
        %v1225 = vmax.f32 %v1210, 0.0
        %v1226 = vmax.f32 %v1211, 0.0
        %v1227 = vmax.f32 %v1212, 0.0
        %v1228 = vmax.f32 %v1213, 0.0
        %v1229 = vmax.f32 %v1214, 0.0
        %v1230 = vmax.f32 %v1215, 0.0
        %v1231 = vmax.f32 %v1216, 0.0
        %v1232 = vmax.f32 %v1217, 0.0
        %v1233 = vmax.f32 %v1218, 0.0
        %v1234 = vmax.f32 %v1219, 0.0
        %v1235 = vmax.f32 %v1220, 0.0
        %v1236 = vmax.f32 %v1221, 0.0
        %v1237 = vmax.f32 %v1222, 0.0
        %v1238 = vmax.f32 %v1223, 0.0
        %v1239 = vmax.f32 %v1224, 0.0
        %v1240 = vpack.c.bf16 %v1226, %v1225
        %v1241 = vpack.c.bf16 %v1228, %v1227
        %v1242 = vpack.c.bf16 %v1230, %v1229
        %v1243 = vpack.c.bf16 %v1232, %v1231
        %v1244 = vpack.c.bf16 %v1234, %v1233
        %v1245 = vpack.c.bf16 %v1236, %v1235
        %v1246 = vpack.c.bf16 %v1238, %v1237
        %v1247 = vpack.c.bf16 %v1239, %v1239
        %v1256 = vunpack.c.l.b16 %v1240
        %v1257 = vunpack.c.h.b16 %v1240
        %v1258 = vunpack.c.l.b16 %v1241
        %v1259 = vunpack.c.h.b16 %v1241
        %v1260 = vunpack.c.l.b16 %v1242
        %v1261 = vunpack.c.h.b16 %v1242
        %v1262 = vunpack.c.l.b16 %v1243
        %v1263 = vunpack.c.h.b16 %v1243
        %v1264 = vunpack.c.l.b16 %v1244
        %v1265 = vunpack.c.h.b16 %v1244
        %v1266 = vunpack.c.l.b16 %v1245
        %v1267 = vunpack.c.h.b16 %v1245
        %v1268 = vunpack.c.l.b16 %v1246
        %v1269 = vunpack.c.h.b16 %v1246
        %v1270 = vunpack.c.l.b16 %v1247
        %v1271 = vpack.c.b16 %v1256, %v1256
        %v1272 = vpack.c.b16 %v1257, %v1257
        %v1273 = vpack.c.b16 %v1258, %v1258
        %v1274 = vpack.c.b16 %v1259, %v1259
        %v1275 = vpack.c.b16 %v1260, %v1260
        %v1276 = vpack.c.b16 %v1261, %v1261
        %v1277 = vpack.c.b16 %v1262, %v1262
        %v1278 = vpack.c.b16 %v1263, %v1263
        %v1279 = vpack.c.b16 %v1264, %v1264
        %v1280 = vpack.c.b16 %v1265, %v1265
        %v1281 = vpack.c.b16 %v1266, %v1266
        %v1282 = vpack.c.b16 %v1267, %v1267
        %v1283 = vpack.c.b16 %v1268, %v1268
        %v1284 = vpack.c.b16 %v1269, %v1269
        %v1285 = vpack.c.b16 %v1270, %v1270
        %1301 = vst [vmem:[%s451] sm:$0xf] %v1271
        %1302 = vst [vmem:[%s451 + $0x4] sm:$0xf] %v1272
        %1303 = vst [vmem:[%s451 + $0x8] sm:$0xf] %v1273
        %1304 = vst [vmem:[%s451 + $0xc] sm:$0xf] %v1274
        %1305 = vst [vmem:[%s451 + $0x10] sm:$0xf] %v1275
        %1306 = vst [vmem:[%s451 + $0x14] sm:$0xf] %v1276
        %1307 = vst [vmem:[%s451 + $0x18] sm:$0xf] %v1277
        %1308 = vst [vmem:[%s451 + $0x1c] sm:$0xf] %v1278
        %1309 = vst [vmem:[%s451 + $0x20] sm:$0xf] %v1279
        %1310 = vst [vmem:[%s451 + $0x24] sm:$0xf] %v1280
        %1311 = vst [vmem:[%s451 + $0x28] sm:$0xf] %v1281
        %1312 = vst [vmem:[%s451 + $0x2c] sm:$0xf] %v1282
        %1313 = vst [vmem:[%s451 + $0x30] sm:$0xf] %v1283
        %1314 = vst [vmem:[%s451 + $0x34] sm:$0xf] %v1284
        %1315 = vst [vmem:[%s451 + $0x38] sm:$0xf] %v1285
        %s1316 = smul.u32 15, %s14
        %p1317 = scmp.lt.s32.totalorder %s1316, 59
        %s1318 = scalar_select %p1317, %s1316, 59
        %s1319 = smul.addr %s1318, 4
        %s1320 = scalar_lea.vmem %s3, %s1319
        // Predicated region
        $region74: #{cnn_forward.3} parent=68 // pred_check
          %p1321 = pneg %p100
        $region75: #{cnn_forward.3} parent=68 // pred_check_branch
          %1323 = sbr.rel (%p1321) target = $region77
        $region76: #{cnn_forward.3} parent=68 // pred_region
          %s1324 = smul.u32 15, %s14
        $region77: #{cnn_forward.3} parent=68 // pred_fallthru
          _
      $region69: #{cnn_forward.3} parent=5 // pred_fallthru
        _
      %p1325 = scmp.le.s32.totalorder 2, %s9
      // Predicated region
      $region78: #{cnn_forward.3} parent=5 // pred_check
        %p1326 = pneg %p1325
      $region79: #{cnn_forward.3} parent=5 // pred_check_branch
        %1328 = sbr.rel (%p1326) target = $region81
      $region80: #{cnn_forward.3} parent=5 // pred_region
        %s1329 = ssub.s32 %s9, 2
        // Predicated region
        $region82: #{cnn_forward.3} parent=80 // pred_check
          %p1330 = pneg %p106
        $region83: #{cnn_forward.3} parent=80 // pred_check_branch
          %1332 = sbr.rel (%p1330) target = $region85
        $region84: #{cnn_forward.3} parent=80 // pred_region
          %s1333 = smul.u32 15, %s15
          %p1334 = scmp.lt.s32.totalorder %s1333, 59
          %s1335 = scalar_select %p1334, %s1333, 59
          %s1336 = smul.addr %s1335, 4
          %s1337 = scalar_lea.vmem %s3, %s1336
        $region85: #{cnn_forward.3} parent=80 // pred_fallthru
          _
      $region81: #{cnn_forward.3} parent=5 // pred_fallthru
        _
    $region6: #{cnn_forward.3} parent=1 // loop_footer
      %s13 = sadd.s32 1, %s9
    $region7: #{cnn_forward.3} parent=1 // loop_footer_branch
      %8 = sbr.rel target = $region3
    $region8: #{cnn_forward.3} parent=1 // loop_exit
      _

// kernel: cnn_forward.4
$region0: #{cnn_forward.4}
  #allocation0 [shape = 'u32[]', space=smem, size = 0x4, offset = 0x4, fixed_abs, tag = 'smem constant byte address 0x4 - core index']
  #allocation1 [shape = 'u32[144,128]{1,0:T(1,128)}', space=vmem, size = 0x12000, scoped, tag = 'internal scratch']
  #allocation2 [shape = 'bf16[32,384]{1,0:T(8,128)(2,1)}', space=vmem, size = 0x6000, scoped, tag = 'scratch operand']
  %s0 = inlined_call_operand.vmem [shape: bf16[4,128,128], index: 0, kind: input, shape index: {}]
  %s1 = inlined_call_operand.vmem [shape: bf16[2,384,128], index: 1, kind: input, shape index: {}]
  %s2 = inlined_call_operand.vmem [shape: f32[1,128], index: 2, kind: input, shape index: {}]
  %s3 = inlined_call_operand.vmem [shape: bf16[128,128], index: 3, kind: output, shape index: {}]
  %s4 = sld [smem:[#allocation0]]
  $region86: #{cnn_forward.4} parent=0
    _
  %s6 = ssub.s32 1, %s4
  %s7 = scalar_select 0, %s6, %s4
  $region1: #{cnn_forward.4} parent=0
    #allocation3 [shape = 'u8[65536]{0}', space=vmem, size = 0x10000, scoped, tag = 'input window, operand 0']
    loop: start=0, step=1, limit=6
    $region2: #{cnn_forward.4} parent=1 // loop_pre_header
      _
    $region3: #{cnn_forward.4} parent=1 // loop_header
      %s9 = sphi 0, %s13
      %p10 = scmp.ge.s32.totalorder %s9, 6
      %s19 = sphi 0, %s21
      %s22 = sphi 0, %s19
      %s23 = sphi 0, %s22
      %s39 = sphi 0, %s23
      %s43 = sphi 0, %s43
      %s45 = sphi 0, %s43
      %s46 = sphi 0, %s45
      %s60 = sphi 0, %s46
      %s64 = sphi 0, %s64
      %s66 = sphi 0, %s64
      %s67 = sphi 0, %s66
      %s81 = sphi 0, %s67
      %s87 = sphi 0, %s89
      %s90 = sphi 0, %s87
      %s91 = sphi 0, %s90
      %s107 = sphi 0, %s91
    $region4: #{cnn_forward.4} parent=1 // loop_header_branch
      %12 = sbr.rel (%p10) target = $region8
    $region5: #{cnn_forward.4} parent=1 // loop_body
      %s14 = ssub.s32 %s9, 1
      %s15 = ssub.s32 %s9, 2
      %s16 = sadd.s32 %s9, 1
      %s17 = ssub.s32 %s9, %s16
      %p18 = scmp.eq.s32.totalorder %s17, 0
      %s20 = sadd.s32 %s19, 1
      %s21 = scalar_select %p18, %s19, %s20
      %p24 = pneg %p18
      %p25 = scmp.eq.s32.totalorder %s9, 3
      %p26 = por %p24, %p25
      %p27 = scmp.ne.s32.totalorder %s19, %s22
      %p28 = scmp.eq.s32.totalorder %s9, 0
      %p29 = por %p27, %p28
      %p30 = scmp.ne.s32.totalorder %s19, %s22
      %p31 = scmp.eq.s32.totalorder %s14, 3
      %p32 = por %p30, %p31
      %p33 = scmp.ne.s32.totalorder %s22, %s23
      %p34 = scmp.eq.s32.totalorder %s14, 0
      %p35 = por %p33, %p34
      %p36 = scmp.ne.s32.totalorder %s22, %s23
      %p37 = scmp.eq.s32.totalorder %s15, 3
      %p38 = por %p36, %p37
      %p40 = scmp.ne.s32.totalorder %s23, %s39
      %p41 = scmp.eq.s32.totalorder %s15, 0
      %p42 = por %p40, %p41
      %s44 = sadd.s32 %s43, 1
      %p47 = scmp.eq.s32.totalorder %s9, 3
      %p48 = scmp.ne.s32.totalorder %s43, %s45
      %p49 = scmp.eq.s32.totalorder %s9, 0
      %p50 = por %p48, %p49
      %p51 = scmp.ne.s32.totalorder %s43, %s45
      %p52 = scmp.eq.s32.totalorder %s14, 3
      %p53 = por %p51, %p52
      %p54 = scmp.ne.s32.totalorder %s45, %s46
      %p55 = scmp.eq.s32.totalorder %s14, 0
      %p56 = por %p54, %p55
      %p57 = scmp.ne.s32.totalorder %s45, %s46
      %p58 = scmp.eq.s32.totalorder %s15, 3
      %p59 = por %p57, %p58
      %p61 = scmp.ne.s32.totalorder %s46, %s60
      %p62 = scmp.eq.s32.totalorder %s15, 0
      %p63 = por %p61, %p62
      %s65 = sadd.s32 %s64, 1
      %p68 = scmp.eq.s32.totalorder %s9, 3
      %p69 = scmp.ne.s32.totalorder %s64, %s66
      %p70 = scmp.eq.s32.totalorder %s9, 0
      %p71 = por %p69, %p70
      %p72 = scmp.ne.s32.totalorder %s64, %s66
      %p73 = scmp.eq.s32.totalorder %s14, 3
      %p74 = por %p72, %p73
      %p75 = scmp.ne.s32.totalorder %s66, %s67
      %p76 = scmp.eq.s32.totalorder %s14, 0
      %p77 = por %p75, %p76
      %p78 = scmp.ne.s32.totalorder %s66, %s67
      %p79 = scmp.eq.s32.totalorder %s15, 3
      %p80 = por %p78, %p79
      %p82 = scmp.ne.s32.totalorder %s67, %s81
      %p83 = scmp.eq.s32.totalorder %s15, 0
      %p84 = por %p82, %p83
      %s85 = ssub.s32 %s9, %s16
      %p86 = scmp.eq.s32.totalorder %s85, 0
      %s88 = sadd.s32 %s87, 1
      %s89 = scalar_select %p86, %s87, %s88
      %p92 = pneg %p86
      %p93 = scmp.eq.s32.totalorder %s9, 3
      %p94 = por %p92, %p93
      %p95 = scmp.ne.s32.totalorder %s87, %s90
      %p96 = scmp.eq.s32.totalorder %s9, 0
      %p97 = por %p95, %p96
      %p98 = scmp.ne.s32.totalorder %s87, %s90
      %p99 = scmp.eq.s32.totalorder %s14, 3
      %p100 = por %p98, %p99
      %p101 = scmp.ne.s32.totalorder %s90, %s91
      %p102 = scmp.eq.s32.totalorder %s14, 0
      %p103 = por %p101, %p102
      %p104 = scmp.ne.s32.totalorder %s90, %s91
      %p105 = scmp.eq.s32.totalorder %s15, 3
      %p106 = por %p104, %p105
      %p108 = scmp.ne.s32.totalorder %s91, %s107
      %p109 = scmp.eq.s32.totalorder %s15, 0
      %p110 = por %p108, %p109
      %p111 = scmp.le.s32.totalorder 1, %s9
      %p112 = scmp.lt.s32.totalorder %s9, 5
      %p113 = pnand %p111, %p112
      %p114 = pneg %p113
      // Predicated region
      $region9: #{cnn_forward.4} parent=5 // pred_check
        _
      $region10: #{cnn_forward.4} parent=5 // pred_check_branch
        %116 = sbr.rel (%p113) target = $region12
      $region11: #{cnn_forward.4} parent=5 // pred_region
        %s117 = ssub.s32 %s9, 1
        // Predicated region
        $region13: #{cnn_forward.4} parent=11 // pred_check
          %p118 = pneg %p56
        $region14: #{cnn_forward.4} parent=11 // pred_check_branch
          %120 = sbr.rel (%p118) target = $region16
        $region15: #{cnn_forward.4} parent=11 // pred_region
          _
        $region16: #{cnn_forward.4} parent=11 // pred_fallthru
          _
        // Predicated region
        $region17: #{cnn_forward.4} parent=11 // pred_check
          %p121 = pneg %p77
        $region18: #{cnn_forward.4} parent=11 // pred_check_branch
          %123 = sbr.rel (%p121) target = $region20
        $region19: #{cnn_forward.4} parent=11 // pred_region
          _
        $region20: #{cnn_forward.4} parent=11 // pred_fallthru
          _
      $region12: #{cnn_forward.4} parent=5 // pred_fallthru
        _
      %p124 = scmp.lt.s32.totalorder %s9, 4
      // Predicated region
      $region21: #{cnn_forward.4} parent=5 // pred_check
        %p125 = pneg %p124
      $region22: #{cnn_forward.4} parent=5 // pred_check_branch
        %127 = sbr.rel (%p125) target = $region24
      $region23: #{cnn_forward.4} parent=5 // pred_region
        // Predicated region
        $region25: #{cnn_forward.4} parent=23 // pred_check
          %p128 = pneg %p29
        $region26: #{cnn_forward.4} parent=23 // pred_check_branch
          %130 = sbr.rel (%p128) target = $region28
        $region27: #{cnn_forward.4} parent=23 // pred_region
          %s131 = sand.u32 %s19, 1
          %s132 = sand.u32 %s19, 1
          %s133 = smul.addr %s132, 64
          %s134 = scalar_lea.vmem [#allocation3], %s133
          %s135 = smul.u32 4, %s9
          %s136 = smul.addr %s135, 4
          %s137 = scalar_lea.vmem %s0, %s136
          // Predicated region
          $region29: #{cnn_forward.4} parent=27 // pred_check
            _
          $region30: #{cnn_forward.4} parent=27 // pred_check_branch
            %139 = sbr.rel (0) target = $region32
          $region31: #{cnn_forward.4} parent=27 // pred_region
            // Predicated region
            $region33: #{cnn_forward.4} parent=31 // pred_check
              _
            $region34: #{cnn_forward.4} parent=31 // pred_check_branch
              %141 = sbr.rel target = $region36
            $region35: #{cnn_forward.4} parent=31 // pred_region
              // Predicated region
              $region48: #{cnn_forward.4} parent=35 // pred_check
                _
              $region49: #{cnn_forward.4} parent=35 // pred_check_branch
                %187 = sbr.rel (0) target = $region51
              $region50: #{cnn_forward.4} parent=35 // pred_region
                loop: start=0, step=1, limit=1
                $region52: #{cnn_forward.4} parent=50 // loop_pre_header
                  _
                $region53: #{cnn_forward.4} parent=50 // loop_header
                  %s189 = sphi 0, %s193
                  %p190 = scmp.ge.s32.totalorder %s189, 1
                  %s194 = sphi %s137, %s137
                  %s195 = sphi %s134, %s134
                $region54: #{cnn_forward.4} parent=50 // loop_header_branch
                  %192 = sbr.rel (%p190) target = $region58
                $region55: #{cnn_forward.4} parent=50 // loop_body
                  _
                $region56: #{cnn_forward.4} parent=50 // loop_footer
                  %s193 = sadd.s32 1, %s189
                $region57: #{cnn_forward.4} parent=50 // loop_footer_branch
                  %188 = sbr.rel target = $region53
                $region58: #{cnn_forward.4} parent=50 // loop_exit
                  _
                %s197 = ssub.s32 16, 1
                loop: start=0, step=1, limit=1
                $region59: #{cnn_forward.4} parent=50 // loop_pre_header
                  _
                $region60: #{cnn_forward.4} parent=50 // loop_header
                  %s199 = sphi 0, %s203
                  %p200 = scmp.ge.s32.totalorder %s199, 1
                  %s204 = sphi %s137, %s137
                  %s205 = sphi %s134, %s134
                $region61: #{cnn_forward.4} parent=50 // loop_header_branch
                  %202 = sbr.rel (%p200) target = $region65
                $region62: #{cnn_forward.4} parent=50 // loop_body
                  %v206 = vld [vmem:[%s204] sm:%s197]
                  %207 = vst [vmem:[%s205] sm:%s197] %v206
                  %v208 = vld [vmem:[%s204 + $0x4] sm:%s197]
                  %209 = vst [vmem:[%s205 + $0x4] sm:%s197] %v208
                  %v210 = vld [vmem:[%s204 + $0x8] sm:%s197]
                  %211 = vst [vmem:[%s205 + $0x8] sm:%s197] %v210
                  %v212 = vld [vmem:[%s204 + $0xc] sm:%s197]
                  %213 = vst [vmem:[%s205 + $0xc] sm:%s197] %v212
                  %v214 = vld [vmem:[%s204 + $0x40] sm:%s197]
                  %215 = vst [vmem:[%s205 + $0x10] sm:%s197] %v214
                  %v216 = vld [vmem:[%s204 + $0x44] sm:%s197]
                  %217 = vst [vmem:[%s205 + $0x14] sm:%s197] %v216
                  %v218 = vld [vmem:[%s204 + $0x48] sm:%s197]
                  %219 = vst [vmem:[%s205 + $0x18] sm:%s197] %v218
                  %v220 = vld [vmem:[%s204 + $0x4c] sm:%s197]
                  %221 = vst [vmem:[%s205 + $0x1c] sm:%s197] %v220
                  %v222 = vld [vmem:[%s204 + $0x80] sm:%s197]
                  %223 = vst [vmem:[%s205 + $0x20] sm:%s197] %v222
                  %v224 = vld [vmem:[%s204 + $0x84] sm:%s197]
                  %225 = vst [vmem:[%s205 + $0x24] sm:%s197] %v224
                  %v226 = vld [vmem:[%s204 + $0x88] sm:%s197]
                  %227 = vst [vmem:[%s205 + $0x28] sm:%s197] %v226
                  %v228 = vld [vmem:[%s204 + $0x8c] sm:%s197]
                  %229 = vst [vmem:[%s205 + $0x2c] sm:%s197] %v228
                  %v230 = vld [vmem:[%s204 + $0xc0] sm:%s197]
                  %231 = vst [vmem:[%s205 + $0x30] sm:%s197] %v230
                  %v232 = vld [vmem:[%s204 + $0xc4] sm:%s197]
                  %233 = vst [vmem:[%s205 + $0x34] sm:%s197] %v232
                  %v234 = vld [vmem:[%s204 + $0xc8] sm:%s197]
                  %235 = vst [vmem:[%s205 + $0x38] sm:%s197] %v234
                  %v236 = vld [vmem:[%s204 + $0xcc] sm:%s197]
                  %237 = vst [vmem:[%s205 + $0x3c] sm:%s197] %v236
                $region63: #{cnn_forward.4} parent=50 // loop_footer
                  %s203 = sadd.s32 1, %s199
                $region64: #{cnn_forward.4} parent=50 // loop_footer_branch
                  %198 = sbr.rel target = $region60
                $region65: #{cnn_forward.4} parent=50 // loop_exit
                  _
              $region51: #{cnn_forward.4} parent=35 // pred_fallthru
                _
            $region36: #{cnn_forward.4} parent=31 // pred_fallthru
              _
            // Predicated region
            $region37: #{cnn_forward.4} parent=31 // pred_check
              _
            $region38: #{cnn_forward.4} parent=31 // pred_check_branch
              %143 = sbr.rel (0) target = $region40
            $region39: #{cnn_forward.4} parent=31 // pred_region
              %s145 = ssub.s32 16, 1
              loop: start=0, step=1, limit=1
              $region41: #{cnn_forward.4} parent=39 // loop_pre_header
                _
              $region42: #{cnn_forward.4} parent=39 // loop_header
                %s147 = sphi 0, %s151
                %p148 = scmp.ge.s32.totalorder %s147, 1
                %s152 = sphi %s137, %s137
                %s153 = sphi %s134, %s134
              $region43: #{cnn_forward.4} parent=39 // loop_header_branch
                %150 = sbr.rel (%p148) target = $region47
              $region44: #{cnn_forward.4} parent=39 // loop_body
                %v154 = vld [vmem:[%s152] sm:%s145]
                %155 = vst [vmem:[%s153] sm:%s145] %v154
                %v156 = vld [vmem:[%s152 + $0x4] sm:%s145]
                %157 = vst [vmem:[%s153 + $0x4] sm:%s145] %v156
                %v158 = vld [vmem:[%s152 + $0x8] sm:%s145]
                %159 = vst [vmem:[%s153 + $0x8] sm:%s145] %v158
                %v160 = vld [vmem:[%s152 + $0xc] sm:%s145]
                %161 = vst [vmem:[%s153 + $0xc] sm:%s145] %v160
                %v162 = vld [vmem:[%s152 + $0x40] sm:%s145]
                %163 = vst [vmem:[%s153 + $0x10] sm:%s145] %v162
                %v164 = vld [vmem:[%s152 + $0x44] sm:%s145]
                %165 = vst [vmem:[%s153 + $0x14] sm:%s145] %v164
                %v166 = vld [vmem:[%s152 + $0x48] sm:%s145]
                %167 = vst [vmem:[%s153 + $0x18] sm:%s145] %v166
                %v168 = vld [vmem:[%s152 + $0x4c] sm:%s145]
                %169 = vst [vmem:[%s153 + $0x1c] sm:%s145] %v168
                %v170 = vld [vmem:[%s152 + $0x80] sm:%s145]
                %171 = vst [vmem:[%s153 + $0x20] sm:%s145] %v170
                %v172 = vld [vmem:[%s152 + $0x84] sm:%s145]
                %173 = vst [vmem:[%s153 + $0x24] sm:%s145] %v172
                %v174 = vld [vmem:[%s152 + $0x88] sm:%s145]
                %175 = vst [vmem:[%s153 + $0x28] sm:%s145] %v174
                %v176 = vld [vmem:[%s152 + $0x8c] sm:%s145]
                %177 = vst [vmem:[%s153 + $0x2c] sm:%s145] %v176
                %v178 = vld [vmem:[%s152 + $0xc0] sm:%s145]
                %179 = vst [vmem:[%s153 + $0x30] sm:%s145] %v178
                %v180 = vld [vmem:[%s152 + $0xc4] sm:%s145]
                %181 = vst [vmem:[%s153 + $0x34] sm:%s145] %v180
                %v182 = vld [vmem:[%s152 + $0xc8] sm:%s145]
                %183 = vst [vmem:[%s153 + $0x38] sm:%s145] %v182
                %v184 = vld [vmem:[%s152 + $0xcc] sm:%s145]
                %185 = vst [vmem:[%s153 + $0x3c] sm:%s145] %v184
              $region45: #{cnn_forward.4} parent=39 // loop_footer
                %s151 = sadd.s32 1, %s147
              $region46: #{cnn_forward.4} parent=39 // loop_footer_branch
                %146 = sbr.rel target = $region42
              $region47: #{cnn_forward.4} parent=39 // loop_exit
                _
            $region40: #{cnn_forward.4} parent=31 // pred_fallthru
              _
          $region32: #{cnn_forward.4} parent=27 // pred_fallthru
            _
          %238 = vnop
        $region28: #{cnn_forward.4} parent=23 // pred_fallthru
          _
      $region24: #{cnn_forward.4} parent=5 // pred_fallthru
        _
      %p239 = scmp.le.s32.totalorder 1, %s9
      %p240 = scmp.lt.s32.totalorder %s9, 5
      %p241 = pnand %p239, %p240
      %p242 = pneg %p241
      // Predicated region
      $region66: #{cnn_forward.4} parent=5 // pred_check
        _
      $region67: #{cnn_forward.4} parent=5 // pred_check_branch
        %244 = sbr.rel (%p241) target = $region69
      $region68: #{cnn_forward.4} parent=5 // pred_region
        %s245 = ssub.s32 %s9, 1
        %s246 = sand.u32 %s22, 1
        %s247 = sand.u32 %s22, 1
        %s248 = smul.addr %s247, 64
        %s249 = scalar_lea.vmem [#allocation3], %s248
        // Predicated region
        $region70: #{cnn_forward.4} parent=68 // pred_check
          %p250 = pneg %p35
        $region71: #{cnn_forward.4} parent=68 // pred_check_branch
          %252 = sbr.rel (%p250) target = $region73
        $region72: #{cnn_forward.4} parent=68 // pred_region
          _
        $region73: #{cnn_forward.4} parent=68 // pred_fallthru
          _
        %s253 = sand.u32 %s22, 1
        %s254 = sand.u32 %s22, 1
        %s255 = smul.addr %s254, 64
        %s256 = scalar_lea.vmem [#allocation3], %s255
        %p257 = pneg %p35
        %p258 = pneg %p32
        %p259 = pneg %p56
        %p260 = pneg %p53
        %p261 = pneg %p77
        %p262 = pneg %p74
        %p263 = pneg %p103
        %p264 = pneg %p100
        %s265 = smul.u32 4, %s14
        %p266 = scmp.lt.s32.totalorder %s265, 15
        %s267 = scalar_select %p266, %s265, 15
        %s268 = smul.addr %s267, 4
        %s269 = scalar_lea.vmem %s3, %s268
        %s270 = smul.u32 4, %s14
        %s271 = smul.u32 4, %s14
        %p272 = scmp.lt.s32.totalorder %s271, 15
        %s273 = scalar_select %p272, %s271, 15
        %s274 = smul.addr %s273, 4
        %s275 = scalar_lea.vmem %s3, %s274
        %s276 = smul.u32 4, %s14
        %v278 = vld [vmem:[%s249] sm:$0xf]
        %v279 = vld [vmem:[%s249 + $0x4] sm:$0xf]
        %v280 = vld [vmem:[%s249 + $0x8] sm:$0xf]
        %v281 = vld [vmem:[%s249 + $0xc] sm:$0xf]
        %282 = vst [vmem:[#allocation2] sm:$0xf] %v278
        %283 = vst [vmem:[#allocation2 + $0xc] sm:$0xf] %v279
        %284 = vst [vmem:[#allocation2 + $0x18] sm:$0xf] %v280
        %285 = vst [vmem:[#allocation2 + $0x24] sm:$0xf] %v281
        %s286 = scalar_lea.vmem %s249, 32 [#allocation3]
        %v287 = vld [vmem:[%s286] sm:$0xf]
        %v288 = vld [vmem:[%s286 + $0x4] sm:$0xf]
        %v289 = vld [vmem:[%s286 + $0x8] sm:$0xf]
        %v290 = vld [vmem:[%s286 + $0xc] sm:$0xf]
        %291 = vst [vmem:[#allocation2 + $0x4] sm:$0xf] %v287
        %292 = vst [vmem:[#allocation2 + $0x10] sm:$0xf] %v288
        %293 = vst [vmem:[#allocation2 + $0x1c] sm:$0xf] %v289
        %294 = vst [vmem:[#allocation2 + $0x28] sm:$0xf] %v290
        %s295 = scalar_lea.vmem %s249, 16 [#allocation3]
        %v296 = vld [vmem:[%s295] sm:$0xf]
        %v297 = vld [vmem:[%s295 + $0x4] sm:$0xf]
        %v298 = vld [vmem:[%s295 + $0x8] sm:$0xf]
        %v299 = vld [vmem:[%s295 + $0xc] sm:$0xf]
        %300 = vst [vmem:[#allocation2 + $0x8] sm:$0xf] %v296
        %301 = vst [vmem:[#allocation2 + $0x14] sm:$0xf] %v297
        %302 = vst [vmem:[#allocation2 + $0x20] sm:$0xf] %v298
        %303 = vst [vmem:[#allocation2 + $0x2c] sm:$0xf] %v299
        %v304 = vld [vmem:[#allocation2] sm:$0xff]
        %v305 = vld [vmem:[#allocation2 + $0x8] sm:$0xf]
        %v306 = vld [vmem:[#allocation2 + $0xc] sm:$0xff]
        %v307 = vld [vmem:[#allocation2 + $0x14] sm:$0xf]
        %v308 = vld [vmem:[#allocation2 + $0x18] sm:$0xff]
        %v309 = vld [vmem:[#allocation2 + $0x20] sm:$0xf]
        %v310 = vld [vmem:[#allocation2 + $0x24] sm:$0xff]
        %v311 = vld [vmem:[#allocation2 + $0x2c] sm:$0xf]
        %v312 = vld [vmem:[%s1] sm:$0xf]
        %v313 = vld [vmem:[%s1 + $0x4] sm:$0xf]
        %v314 = vld [vmem:[%s1 + $0x8] sm:$0xf]
        %v315 = vld [vmem:[%s1 + $0xc] sm:$0xf]
        %v316 = vld [vmem:[%s1 + $0x10] sm:$0xf]
        %v317 = vld [vmem:[%s1 + $0x14] sm:$0xf]
        %v318 = vld [vmem:[%s1 + $0x18] sm:$0xf]
        %v319 = vld [vmem:[%s1 + $0x1c] sm:$0xf]
        %v320 = vld [vmem:[%s1 + $0x20] sm:$0xf]
        %v321 = vld [vmem:[%s1 + $0x24] sm:$0xf]
        %v322 = vld [vmem:[%s1 + $0x28] sm:$0xf]
        %v323 = vld [vmem:[%s1 + $0x2c] sm:$0xf]
        %v324 = vld [vmem:[%s1 + $0x30] sm:$0xf]
        %v325 = vld [vmem:[%s1 + $0x34] sm:$0xf]
        %v326 = vld [vmem:[%s1 + $0x38] sm:$0xf]
        %v327 = vld [vmem:[%s1 + $0x3c] sm:$0xf]
        %v328 = vld [vmem:[%s1 + $0x40] sm:$0xf]
        %v329 = vld [vmem:[%s1 + $0x44] sm:$0xf]
        %v330 = vld [vmem:[%s1 + $0x48] sm:$0xf]
        %v331 = vld [vmem:[%s1 + $0x4c] sm:$0xf]
        %v332 = vld [vmem:[%s1 + $0x50] sm:$0xf]
        %v333 = vld [vmem:[%s1 + $0x54] sm:$0xf]
        %v334 = vld [vmem:[%s1 + $0x58] sm:$0xf]
        %v335 = vld [vmem:[%s1 + $0x5c] sm:$0xf]
        %v336 = vld [vmem:[%s1 + $0x60] sm:$0xf]
        %v337 = vld [vmem:[%s1 + $0x64] sm:$0xf]
        %v338 = vld [vmem:[%s1 + $0x68] sm:$0xf]
        %v339 = vld [vmem:[%s1 + $0x6c] sm:$0xf]
        %v340 = vld [vmem:[%s1 + $0x70] sm:$0xf]
        %v341 = vld [vmem:[%s1 + $0x74] sm:$0xf]
        %v342 = vld [vmem:[%s1 + $0x78] sm:$0xf]
        %v343 = vld [vmem:[%s1 + $0x7c] sm:$0xf]
        %v344 = vld [vmem:[%s1 + $0x80] sm:$0xf]
        %v345 = vld [vmem:[%s1 + $0x84] sm:$0xf]
        %v346 = vld [vmem:[%s1 + $0x88] sm:$0xf]
        %v347 = vld [vmem:[%s1 + $0x8c] sm:$0xf]
        %v348 = vld [vmem:[%s1 + $0x90] sm:$0xf]
        %v349 = vld [vmem:[%s1 + $0x94] sm:$0xf]
        %v350 = vld [vmem:[%s1 + $0x98] sm:$0xf]
        %v351 = vld [vmem:[%s1 + $0x9c] sm:$0xf]
        %v352 = vld [vmem:[%s1 + $0xa0] sm:$0xf]
        %v353 = vld [vmem:[%s1 + $0xa4] sm:$0xf]
        %v354 = vld [vmem:[%s1 + $0xa8] sm:$0xf]
        %v355 = vld [vmem:[%s1 + $0xac] sm:$0xf]
        %v356 = vld [vmem:[%s1 + $0xb0] sm:$0xf]
        %v357 = vld [vmem:[%s1 + $0xb4] sm:$0xf]
        %v358 = vld [vmem:[%s1 + $0xb8] sm:$0xf]
        %v359 = vld [vmem:[%s1 + $0xbc] sm:$0xf]
        %v368 = vunpack.c.l.b16 %v304
        %v369 = vunpack.c.h.b16 %v304
        %v370 = vunpack.c.l.b16 %v305
        %v371 = vunpack.c.l.b16 %v306
        %v372 = vunpack.c.h.b16 %v306
        %v373 = vunpack.c.l.b16 %v307
        %v374 = vunpack.c.l.b16 %v308
        %v375 = vunpack.c.h.b16 %v308
        %v376 = vunpack.c.l.b16 %v309
        %v377 = vunpack.c.l.b16 %v310
        %v378 = vunpack.c.h.b16 %v310
        %v379 = vunpack.c.l.b16 %v311
        %v380 = vpack.c.b16 %v371, %v368
        %v381 = vpack.c.b16 %v372, %v369
        %v382 = vpack.c.b16 %v373, %v370
        %v383 = vpack.c.b16 %v377, %v374
        %v384 = vpack.c.b16 %v378, %v375
        %v385 = vpack.c.b16 %v379, %v376
        %v440 = vunpack.c.l.b16 %v312
        %v441 = vunpack.c.l.b16 %v313
        %v442 = vunpack.c.l.b16 %v314
        %v443 = vunpack.c.l.b16 %v315
        %v444 = vunpack.c.l.b16 %v316
        %v445 = vunpack.c.l.b16 %v317
        %v446 = vunpack.c.l.b16 %v318
        %v447 = vunpack.c.l.b16 %v319
        %v448 = vunpack.c.l.b16 %v320
        %v449 = vunpack.c.l.b16 %v321
        %v450 = vunpack.c.l.b16 %v322
        %v451 = vunpack.c.l.b16 %v323
        %v452 = vunpack.c.l.b16 %v324
        %v453 = vunpack.c.l.b16 %v325
        %v454 = vunpack.c.l.b16 %v326
        %v455 = vunpack.c.l.b16 %v327
        %v456 = vunpack.c.l.b16 %v328
        %v457 = vunpack.c.l.b16 %v329
        %v458 = vunpack.c.l.b16 %v330
        %v459 = vunpack.c.l.b16 %v331
        %v460 = vunpack.c.l.b16 %v332
        %v461 = vunpack.c.l.b16 %v333
        %v462 = vunpack.c.l.b16 %v334
        %v463 = vunpack.c.l.b16 %v335
        %v464 = vunpack.c.l.b16 %v336
        %v465 = vunpack.c.l.b16 %v337
        %v466 = vunpack.c.l.b16 %v338
        %v467 = vunpack.c.l.b16 %v339
        %v468 = vunpack.c.l.b16 %v340
        %v469 = vunpack.c.l.b16 %v341
        %v470 = vunpack.c.l.b16 %v342
        %v471 = vunpack.c.l.b16 %v343
        %v472 = vunpack.c.l.b16 %v344
        %v473 = vunpack.c.l.b16 %v345
        %v474 = vunpack.c.l.b16 %v346
        %v475 = vunpack.c.l.b16 %v347
        %v476 = vunpack.c.l.b16 %v348
        %v477 = vunpack.c.l.b16 %v349
        %v478 = vunpack.c.l.b16 %v350
        %v479 = vunpack.c.l.b16 %v351
        %v480 = vunpack.c.l.b16 %v352
        %v481 = vunpack.c.l.b16 %v353
        %v482 = vunpack.c.l.b16 %v354
        %v483 = vunpack.c.l.b16 %v355
        %v484 = vunpack.c.l.b16 %v356
        %v485 = vunpack.c.l.b16 %v357
        %v486 = vunpack.c.l.b16 %v358
        %v487 = vunpack.c.l.b16 %v359
        %v488 = vpack.c.b16 %v441, %v440
        %v489 = vpack.c.b16 %v443, %v442
        %v490 = vpack.c.b16 %v445, %v444
        %v491 = vpack.c.b16 %v447, %v446
        %v492 = vpack.c.b16 %v449, %v448
        %v493 = vpack.c.b16 %v451, %v450
        %v494 = vpack.c.b16 %v453, %v452
        %v495 = vpack.c.b16 %v455, %v454
        %v496 = vpack.c.b16 %v457, %v456
        %v497 = vpack.c.b16 %v459, %v458
        %v498 = vpack.c.b16 %v461, %v460
        %v499 = vpack.c.b16 %v463, %v462
        %v500 = vpack.c.b16 %v465, %v464
        %v501 = vpack.c.b16 %v467, %v466
        %v502 = vpack.c.b16 %v469, %v468
        %v503 = vpack.c.b16 %v471, %v470
        %v504 = vpack.c.b16 %v473, %v472
        %v505 = vpack.c.b16 %v475, %v474
        %v506 = vpack.c.b16 %v477, %v476
        %v507 = vpack.c.b16 %v479, %v478
        %v508 = vpack.c.b16 %v481, %v480
        %v509 = vpack.c.b16 %v483, %v482
        %v510 = vpack.c.b16 %v485, %v484
        %v511 = vpack.c.b16 %v487, %v486
        %536 = vmatprep.subr.bf16.mxu0 0
        %537 = vmatpush1.bf16.msra.mxu0 %v495
        %538 = vmatprep.subr.bf16.mxu0 0
        %539 = vmatpush1.bf16.msra.mxu0 %v494
        %540 = vmatprep.subr.bf16.mxu0 0
        %541 = vmatpush1.bf16.msra.mxu0 %v493
        %542 = vmatprep.subr.bf16.mxu0 0
        %543 = vmatpush1.bf16.msra.mxu0 %v492
        %544 = vmatprep.subr.bf16.mxu0 0
        %545 = vmatpush1.bf16.msra.mxu0 %v491
        %546 = vmatprep.subr.bf16.mxu0 0
        %547 = vmatpush1.bf16.msra.mxu0 %v490
        %548 = vmatprep.subr.bf16.mxu0 0
        %549 = vmatpush1.bf16.msra.mxu0 %v489
        %550 = vmatprep.subr.bf16.mxu0 0
        %551 = vmatpush1.bf16.msra.mxu0 %v488
        %552 = vmatprep.subr.bf16.mxu0 0
        %553 = vmatpush2.bf16.msra.mxu0 %v503
        %554 = vmatprep.subr.bf16.mxu0 0
        %555 = vmatpush2.bf16.msra.mxu0 %v502
        %556 = vmatprep.subr.bf16.mxu0 0
        %557 = vmatpush2.bf16.msra.mxu0 %v501
        %558 = vmatprep.subr.bf16.mxu0 0
        %559 = vmatpush2.bf16.msra.mxu0 %v500
        %560 = vmatprep.subr.bf16.mxu0 0
        %561 = vmatpush2.bf16.msra.mxu0 %v499
        %562 = vmatprep.subr.bf16.mxu0 0
        %563 = vmatpush2.bf16.msra.mxu0 %v498
        %564 = vmatprep.subr.bf16.mxu0 0
        %565 = vmatpush2.bf16.msra.mxu0 %v497
        %566 = vmatprep.subr.bf16.mxu0 0
        %567 = vmatpush2.bf16.msra.mxu0 %v496
        %568 = vmatprep.mubr.bf16.mxu0 %v381
        %569 = vmatmul.mubr.bf16.gmra.mxu0 %v380
        %v570 = vpop.f32.mrf.mxu0
        %v571 = vadd.f32 0.0, %v570
        %v572 = vpop.f32.mrf.mxu0
        %v573 = vpop.f32.mrf.mxu0
        %v574 = vadd.f32 0.0, %v573
        %v575 = vpop.f32.mrf.mxu0
        %576 = vmatprep.mubr.bf16.mxu0 %v384
        %577 = vmatmul.mubr.bf16.gmra.mxu0 %v383
        %v578 = vpop.f32.mrf.mxu0
        %v579 = vadd.f32 0.0, %v578
        %v580 = vpop.f32.mrf.mxu0
        %v581 = vpop.f32.mrf.mxu0
        %v582 = vadd.f32 0.0, %v581
        %v583 = vpop.f32.mrf.mxu0
        %584 = vdwg.mxu0
        %585 = vmatprep.subr.bf16.mxu0 0
        %586 = vmatpush1.bf16.msra.mxu0 %v511
        %587 = vmatprep.subr.bf16.mxu0 0
        %588 = vmatpush1.bf16.msra.mxu0 %v510
        %589 = vmatprep.subr.bf16.mxu0 0
        %590 = vmatpush1.bf16.msra.mxu0 %v509
        %591 = vmatprep.subr.bf16.mxu0 0
        %592 = vmatpush1.bf16.msra.mxu0 %v508
        %593 = vmatprep.subr.bf16.mxu0 0
        %594 = vmatpush1.bf16.msra.mxu0 %v507
        %595 = vmatprep.subr.bf16.mxu0 0
        %596 = vmatpush1.bf16.msra.mxu0 %v506
        %597 = vmatprep.subr.bf16.mxu0 0
        %598 = vmatpush1.bf16.msra.mxu0 %v505
        %599 = vmatprep.subr.bf16.mxu0 0
        %600 = vmatpush1.bf16.msra.mxu0 %v504
        %601 = vmatprep.subr.bf16.mxu0 0
        %602 = vmatpush2.bf16.msra.mxu0 0
        %603 = vmatprep.subr.bf16.mxu0 0
        %604 = vmatpush2.bf16.msra.mxu0 0
        %605 = vmatprep.subr.bf16.mxu0 0
        %606 = vmatpush2.bf16.msra.mxu0 0
        %607 = vmatprep.subr.bf16.mxu0 0
        %608 = vmatpush2.bf16.msra.mxu0 0
        %609 = vmatprep.subr.bf16.mxu0 0
        %610 = vmatpush2.bf16.msra.mxu0 0
        %611 = vmatprep.subr.bf16.mxu0 0
        %612 = vmatpush2.bf16.msra.mxu0 0
        %613 = vmatprep.subr.bf16.mxu0 0
        %614 = vmatpush2.bf16.msra.mxu0 0
        %615 = vmatprep.subr.bf16.mxu0 0
        %616 = vmatpush2.bf16.msra.mxu0 0
        %617 = vmatprep.mubr.bf16.mxu0 0
        %618 = vmatmul.mubr.bf16.gmra.mxu0 %v382
        %v619 = vpop.f32.mrf.mxu0
        %v620 = vadd.f32 %v571, %v619
        %v621 = vpop.f32.mrf.mxu0
        %v622 = vpop.f32.mrf.mxu0
        %v623 = vadd.f32 %v574, %v622
        %v624 = vpop.f32.mrf.mxu0
        %625 = vmatprep.mubr.bf16.mxu0 0
        %626 = vmatmul.mubr.bf16.gmra.mxu0 %v385
        %v627 = vpop.f32.mrf.mxu0
        %v628 = vadd.f32 %v579, %v627
        %v629 = vpop.f32.mrf.mxu0
        %v630 = vpop.f32.mrf.mxu0
        %v631 = vadd.f32 %v582, %v630
        %v632 = vpop.f32.mrf.mxu0
        %633 = vdwg.mxu0
        %s634 = scalar_lea.vmem %s1, 192
        %v635 = vld [vmem:[%s634] sm:$0xf]
        %v636 = vld [vmem:[%s634 + $0x4] sm:$0xf]
        %v637 = vld [vmem:[%s634 + $0x8] sm:$0xf]
        %v638 = vld [vmem:[%s634 + $0xc] sm:$0xf]
        %v639 = vld [vmem:[%s634 + $0x10] sm:$0xf]
        %v640 = vld [vmem:[%s634 + $0x14] sm:$0xf]
        %v641 = vld [vmem:[%s634 + $0x18] sm:$0xf]
        %v642 = vld [vmem:[%s634 + $0x1c] sm:$0xf]
        %v643 = vld [vmem:[%s634 + $0x20] sm:$0xf]
        %v644 = vld [vmem:[%s634 + $0x24] sm:$0xf]
        %v645 = vld [vmem:[%s634 + $0x28] sm:$0xf]
        %v646 = vld [vmem:[%s634 + $0x2c] sm:$0xf]
        %v647 = vld [vmem:[%s634 + $0x30] sm:$0xf]
        %v648 = vld [vmem:[%s634 + $0x34] sm:$0xf]
        %v649 = vld [vmem:[%s634 + $0x38] sm:$0xf]
        %v650 = vld [vmem:[%s634 + $0x3c] sm:$0xf]
        %v651 = vld [vmem:[%s634 + $0x40] sm:$0xf]
        %v652 = vld [vmem:[%s634 + $0x44] sm:$0xf]
        %v653 = vld [vmem:[%s634 + $0x48] sm:$0xf]
        %v654 = vld [vmem:[%s634 + $0x4c] sm:$0xf]
        %v655 = vld [vmem:[%s634 + $0x50] sm:$0xf]
        %v656 = vld [vmem:[%s634 + $0x54] sm:$0xf]
        %v657 = vld [vmem:[%s634 + $0x58] sm:$0xf]
        %v658 = vld [vmem:[%s634 + $0x5c] sm:$0xf]
        %v659 = vld [vmem:[%s634 + $0x60] sm:$0xf]
        %v660 = vld [vmem:[%s634 + $0x64] sm:$0xf]
        %v661 = vld [vmem:[%s634 + $0x68] sm:$0xf]
        %v662 = vld [vmem:[%s634 + $0x6c] sm:$0xf]
        %v663 = vld [vmem:[%s634 + $0x70] sm:$0xf]
        %v664 = vld [vmem:[%s634 + $0x74] sm:$0xf]
        %v665 = vld [vmem:[%s634 + $0x78] sm:$0xf]
        %v666 = vld [vmem:[%s634 + $0x7c] sm:$0xf]
        %v667 = vld [vmem:[%s634 + $0x80] sm:$0xf]
        %v668 = vld [vmem:[%s634 + $0x84] sm:$0xf]
        %v669 = vld [vmem:[%s634 + $0x88] sm:$0xf]
        %v670 = vld [vmem:[%s634 + $0x8c] sm:$0xf]
        %v671 = vld [vmem:[%s634 + $0x90] sm:$0xf]
        %v672 = vld [vmem:[%s634 + $0x94] sm:$0xf]
        %v673 = vld [vmem:[%s634 + $0x98] sm:$0xf]
        %v674 = vld [vmem:[%s634 + $0x9c] sm:$0xf]
        %v675 = vld [vmem:[%s634 + $0xa0] sm:$0xf]
        %v676 = vld [vmem:[%s634 + $0xa4] sm:$0xf]
        %v677 = vld [vmem:[%s634 + $0xa8] sm:$0xf]
        %v678 = vld [vmem:[%s634 + $0xac] sm:$0xf]
        %v679 = vld [vmem:[%s634 + $0xb0] sm:$0xf]
        %v680 = vld [vmem:[%s634 + $0xb4] sm:$0xf]
        %v681 = vld [vmem:[%s634 + $0xb8] sm:$0xf]
        %v682 = vld [vmem:[%s634 + $0xbc] sm:$0xf]
        %v731 = vunpack.c.l.b16 %v635
        %v732 = vunpack.c.l.b16 %v636
        %v733 = vunpack.c.l.b16 %v637
        %v734 = vunpack.c.l.b16 %v638
        %v735 = vunpack.c.l.b16 %v639
        %v736 = vunpack.c.l.b16 %v640
        %v737 = vunpack.c.l.b16 %v641
        %v738 = vunpack.c.l.b16 %v642
        %v739 = vunpack.c.l.b16 %v643
        %v740 = vunpack.c.l.b16 %v644
        %v741 = vunpack.c.l.b16 %v645
        %v742 = vunpack.c.l.b16 %v646
        %v743 = vunpack.c.l.b16 %v647
        %v744 = vunpack.c.l.b16 %v648
        %v745 = vunpack.c.l.b16 %v649
        %v746 = vunpack.c.l.b16 %v650
        %v747 = vunpack.c.l.b16 %v651
        %v748 = vunpack.c.l.b16 %v652
        %v749 = vunpack.c.l.b16 %v653
        %v750 = vunpack.c.l.b16 %v654
        %v751 = vunpack.c.l.b16 %v655
        %v752 = vunpack.c.l.b16 %v656
        %v753 = vunpack.c.l.b16 %v657
        %v754 = vunpack.c.l.b16 %v658
        %v755 = vunpack.c.l.b16 %v659
        %v756 = vunpack.c.l.b16 %v660
        %v757 = vunpack.c.l.b16 %v661
        %v758 = vunpack.c.l.b16 %v662
        %v759 = vunpack.c.l.b16 %v663
        %v760 = vunpack.c.l.b16 %v664
        %v761 = vunpack.c.l.b16 %v665
        %v762 = vunpack.c.l.b16 %v666
        %v763 = vunpack.c.l.b16 %v667
        %v764 = vunpack.c.l.b16 %v668
        %v765 = vunpack.c.l.b16 %v669
        %v766 = vunpack.c.l.b16 %v670
        %v767 = vunpack.c.l.b16 %v671
        %v768 = vunpack.c.l.b16 %v672
        %v769 = vunpack.c.l.b16 %v673
        %v770 = vunpack.c.l.b16 %v674
        %v771 = vunpack.c.l.b16 %v675
        %v772 = vunpack.c.l.b16 %v676
        %v773 = vunpack.c.l.b16 %v677
        %v774 = vunpack.c.l.b16 %v678
        %v775 = vunpack.c.l.b16 %v679
        %v776 = vunpack.c.l.b16 %v680
        %v777 = vunpack.c.l.b16 %v681
        %v778 = vunpack.c.l.b16 %v682
        %v779 = vpack.c.b16 %v732, %v731
        %v780 = vpack.c.b16 %v734, %v733
        %v781 = vpack.c.b16 %v736, %v735
        %v782 = vpack.c.b16 %v738, %v737
        %v783 = vpack.c.b16 %v740, %v739
        %v784 = vpack.c.b16 %v742, %v741
        %v785 = vpack.c.b16 %v744, %v743
        %v786 = vpack.c.b16 %v746, %v745
        %v787 = vpack.c.b16 %v748, %v747
        %v788 = vpack.c.b16 %v750, %v749
        %v789 = vpack.c.b16 %v752, %v751
        %v790 = vpack.c.b16 %v754, %v753
        %v791 = vpack.c.b16 %v756, %v755
        %v792 = vpack.c.b16 %v758, %v757
        %v793 = vpack.c.b16 %v760, %v759
        %v794 = vpack.c.b16 %v762, %v761
        %v795 = vpack.c.b16 %v764, %v763
        %v796 = vpack.c.b16 %v766, %v765
        %v797 = vpack.c.b16 %v768, %v767
        %v798 = vpack.c.b16 %v770, %v769
        %v799 = vpack.c.b16 %v772, %v771
        %v800 = vpack.c.b16 %v774, %v773
        %v801 = vpack.c.b16 %v776, %v775
        %v802 = vpack.c.b16 %v778, %v777
        %827 = vmatprep.subr.bf16.mxu0 0
        %828 = vmatpush1.bf16.msra.mxu0 %v786
        %829 = vmatprep.subr.bf16.mxu0 0
        %830 = vmatpush1.bf16.msra.mxu0 %v785
        %831 = vmatprep.subr.bf16.mxu0 0
        %832 = vmatpush1.bf16.msra.mxu0 %v784
        %833 = vmatprep.subr.bf16.mxu0 0
        %834 = vmatpush1.bf16.msra.mxu0 %v783
        %835 = vmatprep.subr.bf16.mxu0 0
        %836 = vmatpush1.bf16.msra.mxu0 %v782
        %837 = vmatprep.subr.bf16.mxu0 0
        %838 = vmatpush1.bf16.msra.mxu0 %v781
        %839 = vmatprep.subr.bf16.mxu0 0
        %840 = vmatpush1.bf16.msra.mxu0 %v780
        %841 = vmatprep.subr.bf16.mxu0 0
        %842 = vmatpush1.bf16.msra.mxu0 %v779
        %843 = vmatprep.subr.bf16.mxu0 0
        %844 = vmatpush2.bf16.msra.mxu0 %v794
        %845 = vmatprep.subr.bf16.mxu0 0
        %846 = vmatpush2.bf16.msra.mxu0 %v793
        %847 = vmatprep.subr.bf16.mxu0 0
        %848 = vmatpush2.bf16.msra.mxu0 %v792
        %849 = vmatprep.subr.bf16.mxu0 0
        %850 = vmatpush2.bf16.msra.mxu0 %v791
        %851 = vmatprep.subr.bf16.mxu0 0
        %852 = vmatpush2.bf16.msra.mxu0 %v790
        %853 = vmatprep.subr.bf16.mxu0 0
        %854 = vmatpush2.bf16.msra.mxu0 %v789
        %855 = vmatprep.subr.bf16.mxu0 0
        %856 = vmatpush2.bf16.msra.mxu0 %v788
        %857 = vmatprep.subr.bf16.mxu0 0
        %858 = vmatpush2.bf16.msra.mxu0 %v787
        %859 = vmatprep.mubr.bf16.mxu0 %v381
        %860 = vmatmul.mubr.bf16.gmra.mxu0 %v380
        %v861 = vpop.f32.mrf.mxu0
        %v862 = vadd.f32 0.0, %v861
        %v863 = vpop.f32.mrf.mxu0
        %v864 = vpop.f32.mrf.mxu0
        %v865 = vadd.f32 0.0, %v864
        %v866 = vpop.f32.mrf.mxu0
        %867 = vmatprep.mubr.bf16.mxu0 %v384
        %868 = vmatmul.mubr.bf16.gmra.mxu0 %v383
        %v869 = vpop.f32.mrf.mxu0
        %v870 = vadd.f32 0.0, %v869
        %v871 = vpop.f32.mrf.mxu0
        %v872 = vpop.f32.mrf.mxu0
        %v873 = vadd.f32 0.0, %v872
        %v874 = vpop.f32.mrf.mxu0
        %875 = vdwg.mxu0
        %876 = vmatprep.subr.bf16.mxu0 0
        %877 = vmatpush1.bf16.msra.mxu0 %v802
        %878 = vmatprep.subr.bf16.mxu0 0
        %879 = vmatpush1.bf16.msra.mxu0 %v801
        %880 = vmatprep.subr.bf16.mxu0 0
        %881 = vmatpush1.bf16.msra.mxu0 %v800
        %882 = vmatprep.subr.bf16.mxu0 0
        %883 = vmatpush1.bf16.msra.mxu0 %v799
        %884 = vmatprep.subr.bf16.mxu0 0
        %885 = vmatpush1.bf16.msra.mxu0 %v798
        %886 = vmatprep.subr.bf16.mxu0 0
        %887 = vmatpush1.bf16.msra.mxu0 %v797
        %888 = vmatprep.subr.bf16.mxu0 0
        %889 = vmatpush1.bf16.msra.mxu0 %v796
        %890 = vmatprep.subr.bf16.mxu0 0
        %891 = vmatpush1.bf16.msra.mxu0 %v795
        %892 = vmatprep.subr.bf16.mxu0 0
        %893 = vmatpush2.bf16.msra.mxu0 0
        %894 = vmatprep.subr.bf16.mxu0 0
        %895 = vmatpush2.bf16.msra.mxu0 0
        %896 = vmatprep.subr.bf16.mxu0 0
        %897 = vmatpush2.bf16.msra.mxu0 0
        %898 = vmatprep.subr.bf16.mxu0 0
        %899 = vmatpush2.bf16.msra.mxu0 0
        %900 = vmatprep.subr.bf16.mxu0 0
        %901 = vmatpush2.bf16.msra.mxu0 0
        %902 = vmatprep.subr.bf16.mxu0 0
        %903 = vmatpush2.bf16.msra.mxu0 0
        %904 = vmatprep.subr.bf16.mxu0 0
        %905 = vmatpush2.bf16.msra.mxu0 0
        %906 = vmatprep.subr.bf16.mxu0 0
        %907 = vmatpush2.bf16.msra.mxu0 0
        %908 = vmatprep.mubr.bf16.mxu0 0
        %909 = vmatmul.mubr.bf16.gmra.mxu0 %v382
        %v910 = vpop.f32.mrf.mxu0
        %v911 = vadd.f32 %v862, %v910
        %v912 = vpop.f32.mrf.mxu0
        %v913 = vpop.f32.mrf.mxu0
        %v914 = vadd.f32 %v865, %v913
        %v915 = vpop.f32.mrf.mxu0
        %916 = vmatprep.mubr.bf16.mxu0 0
        %917 = vmatmul.mubr.bf16.gmra.mxu0 %v385
        %v918 = vpop.f32.mrf.mxu0
        %v919 = vadd.f32 %v870, %v918
        %v920 = vpop.f32.mrf.mxu0
        %v921 = vpop.f32.mrf.mxu0
        %v922 = vadd.f32 %v873, %v921
        %v923 = vpop.f32.mrf.mxu0
        %924 = vdwg.mxu0
        %v925 = vmax.f32 %v620, %v911
        %v926 = vmax.f32 %v623, %v914
        %v927 = vmax.f32 %v628, %v919
        %v928 = vmax.f32 %v631, %v922
        %v929 = vld [vmem:[%s286] sm:$0xf]
        %v930 = vld [vmem:[%s286 + $0x4] sm:$0xf]
        %v931 = vld [vmem:[%s286 + $0x8] sm:$0xf]
        %v932 = vld [vmem:[%s286 + $0xc] sm:$0xf]
        %933 = vst [vmem:[#allocation2] sm:$0xf] %v929
        %934 = vst [vmem:[#allocation2 + $0xc] sm:$0xf] %v930
        %935 = vst [vmem:[#allocation2 + $0x18] sm:$0xf] %v931
        %936 = vst [vmem:[#allocation2 + $0x24] sm:$0xf] %v932
        %v937 = vld [vmem:[%s295] sm:$0xf]
        %v938 = vld [vmem:[%s295 + $0x4] sm:$0xf]
        %v939 = vld [vmem:[%s295 + $0x8] sm:$0xf]
        %v940 = vld [vmem:[%s295 + $0xc] sm:$0xf]
        %941 = vst [vmem:[#allocation2 + $0x4] sm:$0xf] %v937
        %942 = vst [vmem:[#allocation2 + $0x10] sm:$0xf] %v938
        %943 = vst [vmem:[#allocation2 + $0x1c] sm:$0xf] %v939
        %944 = vst [vmem:[#allocation2 + $0x28] sm:$0xf] %v940
        %s945 = scalar_lea.vmem %s249, 48 [#allocation3]
        %v946 = vld [vmem:[%s945] sm:$0xf]
        %v947 = vld [vmem:[%s945 + $0x4] sm:$0xf]
        %v948 = vld [vmem:[%s945 + $0x8] sm:$0xf]
        %v949 = vld [vmem:[%s945 + $0xc] sm:$0xf]
        %950 = vst [vmem:[#allocation2 + $0x8] sm:$0xf] %v946
        %951 = vst [vmem:[#allocation2 + $0x14] sm:$0xf] %v947
        %952 = vst [vmem:[#allocation2 + $0x20] sm:$0xf] %v948
        %953 = vst [vmem:[#allocation2 + $0x2c] sm:$0xf] %v949
        %v954 = vld [vmem:[#allocation2] sm:$0xff]
        %v955 = vld [vmem:[#allocation2 + $0x8] sm:$0xf]
        %v956 = vld [vmem:[#allocation2 + $0xc] sm:$0xff]
        %v957 = vld [vmem:[#allocation2 + $0x14] sm:$0xf]
        %v958 = vld [vmem:[#allocation2 + $0x18] sm:$0xff]
        %v959 = vld [vmem:[#allocation2 + $0x20] sm:$0xf]
        %v960 = vld [vmem:[#allocation2 + $0x24] sm:$0xff]
        %v961 = vld [vmem:[#allocation2 + $0x2c] sm:$0xf]
        %v962 = vld [vmem:[%s1] sm:$0xf]
        %v963 = vld [vmem:[%s1 + $0x4] sm:$0xf]
        %v964 = vld [vmem:[%s1 + $0x8] sm:$0xf]
        %v965 = vld [vmem:[%s1 + $0xc] sm:$0xf]
        %v966 = vld [vmem:[%s1 + $0x10] sm:$0xf]
        %v967 = vld [vmem:[%s1 + $0x14] sm:$0xf]
        %v968 = vld [vmem:[%s1 + $0x18] sm:$0xf]
        %v969 = vld [vmem:[%s1 + $0x1c] sm:$0xf]
        %v970 = vld [vmem:[%s1 + $0x20] sm:$0xf]
        %v971 = vld [vmem:[%s1 + $0x24] sm:$0xf]
        %v972 = vld [vmem:[%s1 + $0x28] sm:$0xf]
        %v973 = vld [vmem:[%s1 + $0x2c] sm:$0xf]
        %v974 = vld [vmem:[%s1 + $0x30] sm:$0xf]
        %v975 = vld [vmem:[%s1 + $0x34] sm:$0xf]
        %v976 = vld [vmem:[%s1 + $0x38] sm:$0xf]
        %v977 = vld [vmem:[%s1 + $0x3c] sm:$0xf]
        %v978 = vld [vmem:[%s1 + $0x40] sm:$0xf]
        %v979 = vld [vmem:[%s1 + $0x44] sm:$0xf]
        %v980 = vld [vmem:[%s1 + $0x48] sm:$0xf]
        %v981 = vld [vmem:[%s1 + $0x4c] sm:$0xf]
        %v982 = vld [vmem:[%s1 + $0x50] sm:$0xf]
        %v983 = vld [vmem:[%s1 + $0x54] sm:$0xf]
        %v984 = vld [vmem:[%s1 + $0x58] sm:$0xf]
        %v985 = vld [vmem:[%s1 + $0x5c] sm:$0xf]
        %v986 = vld [vmem:[%s1 + $0x60] sm:$0xf]
        %v987 = vld [vmem:[%s1 + $0x64] sm:$0xf]
        %v988 = vld [vmem:[%s1 + $0x68] sm:$0xf]
        %v989 = vld [vmem:[%s1 + $0x6c] sm:$0xf]
        %v990 = vld [vmem:[%s1 + $0x70] sm:$0xf]
        %v991 = vld [vmem:[%s1 + $0x74] sm:$0xf]
        %v992 = vld [vmem:[%s1 + $0x78] sm:$0xf]
        %v993 = vld [vmem:[%s1 + $0x7c] sm:$0xf]
        %v994 = vld [vmem:[%s1 + $0x80] sm:$0xf]
        %v995 = vld [vmem:[%s1 + $0x84] sm:$0xf]
        %v996 = vld [vmem:[%s1 + $0x88] sm:$0xf]
        %v997 = vld [vmem:[%s1 + $0x8c] sm:$0xf]
        %v998 = vld [vmem:[%s1 + $0x90] sm:$0xf]
        %v999 = vld [vmem:[%s1 + $0x94] sm:$0xf]
        %v1000 = vld [vmem:[%s1 + $0x98] sm:$0xf]
        %v1001 = vld [vmem:[%s1 + $0x9c] sm:$0xf]
        %v1002 = vld [vmem:[%s1 + $0xa0] sm:$0xf]
        %v1003 = vld [vmem:[%s1 + $0xa4] sm:$0xf]
        %v1004 = vld [vmem:[%s1 + $0xa8] sm:$0xf]
        %v1005 = vld [vmem:[%s1 + $0xac] sm:$0xf]
        %v1006 = vld [vmem:[%s1 + $0xb0] sm:$0xf]
        %v1007 = vld [vmem:[%s1 + $0xb4] sm:$0xf]
        %v1008 = vld [vmem:[%s1 + $0xb8] sm:$0xf]
        %v1009 = vld [vmem:[%s1 + $0xbc] sm:$0xf]
        %v1018 = vunpack.c.l.b16 %v954
        %v1019 = vunpack.c.h.b16 %v954
        %v1020 = vunpack.c.l.b16 %v955
        %v1021 = vunpack.c.l.b16 %v956
        %v1022 = vunpack.c.h.b16 %v956
        %v1023 = vunpack.c.l.b16 %v957
        %v1024 = vunpack.c.l.b16 %v958
        %v1025 = vunpack.c.h.b16 %v958
        %v1026 = vunpack.c.l.b16 %v959
        %v1027 = vunpack.c.l.b16 %v960
        %v1028 = vunpack.c.h.b16 %v960
        %v1029 = vunpack.c.l.b16 %v961
        %v1030 = vpack.c.b16 %v1021, %v1018
        %v1031 = vpack.c.b16 %v1022, %v1019
        %v1032 = vpack.c.b16 %v1023, %v1020
        %v1033 = vpack.c.b16 %v1027, %v1024
        %v1034 = vpack.c.b16 %v1028, %v1025
        %v1035 = vpack.c.b16 %v1029, %v1026
        %v1090 = vunpack.c.l.b16 %v962
        %v1091 = vunpack.c.l.b16 %v963
        %v1092 = vunpack.c.l.b16 %v964
        %v1093 = vunpack.c.l.b16 %v965
        %v1094 = vunpack.c.l.b16 %v966
        %v1095 = vunpack.c.l.b16 %v967
        %v1096 = vunpack.c.l.b16 %v968
        %v1097 = vunpack.c.l.b16 %v969
        %v1098 = vunpack.c.l.b16 %v970
        %v1099 = vunpack.c.l.b16 %v971
        %v1100 = vunpack.c.l.b16 %v972
        %v1101 = vunpack.c.l.b16 %v973
        %v1102 = vunpack.c.l.b16 %v974
        %v1103 = vunpack.c.l.b16 %v975
        %v1104 = vunpack.c.l.b16 %v976
        %v1105 = vunpack.c.l.b16 %v977
        %v1106 = vunpack.c.l.b16 %v978
        %v1107 = vunpack.c.l.b16 %v979
        %v1108 = vunpack.c.l.b16 %v980
        %v1109 = vunpack.c.l.b16 %v981
        %v1110 = vunpack.c.l.b16 %v982
        %v1111 = vunpack.c.l.b16 %v983
        %v1112 = vunpack.c.l.b16 %v984
        %v1113 = vunpack.c.l.b16 %v985
        %v1114 = vunpack.c.l.b16 %v986
        %v1115 = vunpack.c.l.b16 %v987
        %v1116 = vunpack.c.l.b16 %v988
        %v1117 = vunpack.c.l.b16 %v989
        %v1118 = vunpack.c.l.b16 %v990
        %v1119 = vunpack.c.l.b16 %v991
        %v1120 = vunpack.c.l.b16 %v992
        %v1121 = vunpack.c.l.b16 %v993
        %v1122 = vunpack.c.l.b16 %v994
        %v1123 = vunpack.c.l.b16 %v995
        %v1124 = vunpack.c.l.b16 %v996
        %v1125 = vunpack.c.l.b16 %v997
        %v1126 = vunpack.c.l.b16 %v998
        %v1127 = vunpack.c.l.b16 %v999
        %v1128 = vunpack.c.l.b16 %v1000
        %v1129 = vunpack.c.l.b16 %v1001
        %v1130 = vunpack.c.l.b16 %v1002
        %v1131 = vunpack.c.l.b16 %v1003
        %v1132 = vunpack.c.l.b16 %v1004
        %v1133 = vunpack.c.l.b16 %v1005
        %v1134 = vunpack.c.l.b16 %v1006
        %v1135 = vunpack.c.l.b16 %v1007
        %v1136 = vunpack.c.l.b16 %v1008
        %v1137 = vunpack.c.l.b16 %v1009
        %v1138 = vpack.c.b16 %v1091, %v1090
        %v1139 = vpack.c.b16 %v1093, %v1092
        %v1140 = vpack.c.b16 %v1095, %v1094
        %v1141 = vpack.c.b16 %v1097, %v1096
        %v1142 = vpack.c.b16 %v1099, %v1098
        %v1143 = vpack.c.b16 %v1101, %v1100
        %v1144 = vpack.c.b16 %v1103, %v1102
        %v1145 = vpack.c.b16 %v1105, %v1104
        %v1146 = vpack.c.b16 %v1107, %v1106
        %v1147 = vpack.c.b16 %v1109, %v1108
        %v1148 = vpack.c.b16 %v1111, %v1110
        %v1149 = vpack.c.b16 %v1113, %v1112
        %v1150 = vpack.c.b16 %v1115, %v1114
        %v1151 = vpack.c.b16 %v1117, %v1116
        %v1152 = vpack.c.b16 %v1119, %v1118
        %v1153 = vpack.c.b16 %v1121, %v1120
        %v1154 = vpack.c.b16 %v1123, %v1122
        %v1155 = vpack.c.b16 %v1125, %v1124
        %v1156 = vpack.c.b16 %v1127, %v1126
        %v1157 = vpack.c.b16 %v1129, %v1128
        %v1158 = vpack.c.b16 %v1131, %v1130
        %v1159 = vpack.c.b16 %v1133, %v1132
        %v1160 = vpack.c.b16 %v1135, %v1134
        %v1161 = vpack.c.b16 %v1137, %v1136
        %1186 = vmatprep.subr.bf16.mxu0 0
        %1187 = vmatpush1.bf16.msra.mxu0 %v1145
        %1188 = vmatprep.subr.bf16.mxu0 0
        %1189 = vmatpush1.bf16.msra.mxu0 %v1144
        %1190 = vmatprep.subr.bf16.mxu0 0
        %1191 = vmatpush1.bf16.msra.mxu0 %v1143
        %1192 = vmatprep.subr.bf16.mxu0 0
        %1193 = vmatpush1.bf16.msra.mxu0 %v1142
        %1194 = vmatprep.subr.bf16.mxu0 0
        %1195 = vmatpush1.bf16.msra.mxu0 %v1141
        %1196 = vmatprep.subr.bf16.mxu0 0
        %1197 = vmatpush1.bf16.msra.mxu0 %v1140
        %1198 = vmatprep.subr.bf16.mxu0 0
        %1199 = vmatpush1.bf16.msra.mxu0 %v1139
        %1200 = vmatprep.subr.bf16.mxu0 0
        %1201 = vmatpush1.bf16.msra.mxu0 %v1138
        %1202 = vmatprep.subr.bf16.mxu0 0
        %1203 = vmatpush2.bf16.msra.mxu0 %v1153
        %1204 = vmatprep.subr.bf16.mxu0 0
        %1205 = vmatpush2.bf16.msra.mxu0 %v1152
        %1206 = vmatprep.subr.bf16.mxu0 0
        %1207 = vmatpush2.bf16.msra.mxu0 %v1151
        %1208 = vmatprep.subr.bf16.mxu0 0
        %1209 = vmatpush2.bf16.msra.mxu0 %v1150
        %1210 = vmatprep.subr.bf16.mxu0 0
        %1211 = vmatpush2.bf16.msra.mxu0 %v1149
        %1212 = vmatprep.subr.bf16.mxu0 0
        %1213 = vmatpush2.bf16.msra.mxu0 %v1148
        %1214 = vmatprep.subr.bf16.mxu0 0
        %1215 = vmatpush2.bf16.msra.mxu0 %v1147
        %1216 = vmatprep.subr.bf16.mxu0 0
        %1217 = vmatpush2.bf16.msra.mxu0 %v1146
        %1218 = vmatprep.mubr.bf16.mxu0 %v1031
        %1219 = vmatmul.mubr.bf16.gmra.mxu0 %v1030
        %v1220 = vpop.f32.mrf.mxu0
        %v1221 = vadd.f32 0.0, %v1220
        %v1222 = vpop.f32.mrf.mxu0
        %v1223 = vpop.f32.mrf.mxu0
        %v1224 = vadd.f32 0.0, %v1223
        %v1225 = vpop.f32.mrf.mxu0
        %1226 = vmatprep.mubr.bf16.mxu0 %v1034
        %1227 = vmatmul.mubr.bf16.gmra.mxu0 %v1033
        %v1228 = vpop.f32.mrf.mxu0
        %v1229 = vadd.f32 0.0, %v1228
        %v1230 = vpop.f32.mrf.mxu0
        %v1231 = vpop.f32.mrf.mxu0
        %v1232 = vadd.f32 0.0, %v1231
        %v1233 = vpop.f32.mrf.mxu0
        %1234 = vdwg.mxu0
        %1235 = vmatprep.subr.bf16.mxu0 0
        %1236 = vmatpush1.bf16.msra.mxu0 %v1161
        %1237 = vmatprep.subr.bf16.mxu0 0
        %1238 = vmatpush1.bf16.msra.mxu0 %v1160
        %1239 = vmatprep.subr.bf16.mxu0 0
        %1240 = vmatpush1.bf16.msra.mxu0 %v1159
        %1241 = vmatprep.subr.bf16.mxu0 0
        %1242 = vmatpush1.bf16.msra.mxu0 %v1158
        %1243 = vmatprep.subr.bf16.mxu0 0
        %1244 = vmatpush1.bf16.msra.mxu0 %v1157
        %1245 = vmatprep.subr.bf16.mxu0 0
        %1246 = vmatpush1.bf16.msra.mxu0 %v1156
        %1247 = vmatprep.subr.bf16.mxu0 0
        %1248 = vmatpush1.bf16.msra.mxu0 %v1155
        %1249 = vmatprep.subr.bf16.mxu0 0
        %1250 = vmatpush1.bf16.msra.mxu0 %v1154
        %1251 = vmatprep.subr.bf16.mxu0 0
        %1252 = vmatpush2.bf16.msra.mxu0 0
        %1253 = vmatprep.subr.bf16.mxu0 0
        %1254 = vmatpush2.bf16.msra.mxu0 0
        %1255 = vmatprep.subr.bf16.mxu0 0
        %1256 = vmatpush2.bf16.msra.mxu0 0
        %1257 = vmatprep.subr.bf16.mxu0 0
        %1258 = vmatpush2.bf16.msra.mxu0 0
        %1259 = vmatprep.subr.bf16.mxu0 0
        %1260 = vmatpush2.bf16.msra.mxu0 0
        %1261 = vmatprep.subr.bf16.mxu0 0
        %1262 = vmatpush2.bf16.msra.mxu0 0
        %1263 = vmatprep.subr.bf16.mxu0 0
        %1264 = vmatpush2.bf16.msra.mxu0 0
        %1265 = vmatprep.subr.bf16.mxu0 0
        %1266 = vmatpush2.bf16.msra.mxu0 0
        %1267 = vmatprep.mubr.bf16.mxu0 0
        %1268 = vmatmul.mubr.bf16.gmra.mxu0 %v1032
        %v1269 = vpop.f32.mrf.mxu0
        %v1270 = vadd.f32 %v1221, %v1269
        %v1271 = vpop.f32.mrf.mxu0
        %v1272 = vpop.f32.mrf.mxu0
        %v1273 = vadd.f32 %v1224, %v1272
        %v1274 = vpop.f32.mrf.mxu0
        %1275 = vmatprep.mubr.bf16.mxu0 0
        %1276 = vmatmul.mubr.bf16.gmra.mxu0 %v1035
        %v1277 = vpop.f32.mrf.mxu0
        %v1278 = vadd.f32 %v1229, %v1277
        %v1279 = vpop.f32.mrf.mxu0
        %v1280 = vpop.f32.mrf.mxu0
        %v1281 = vadd.f32 %v1232, %v1280
        %v1282 = vpop.f32.mrf.mxu0
        %1283 = vdwg.mxu0
        %v1284 = vmax.f32 %v925, %v1270
        %v1285 = vmax.f32 %v926, %v1273
        %v1286 = vmax.f32 %v927, %v1278
        %v1287 = vmax.f32 %v928, %v1281
        %v1288 = vld [vmem:[%s634] sm:$0xf]
        %v1289 = vld [vmem:[%s634 + $0x4] sm:$0xf]
        %v1290 = vld [vmem:[%s634 + $0x8] sm:$0xf]
        %v1291 = vld [vmem:[%s634 + $0xc] sm:$0xf]
        %v1292 = vld [vmem:[%s634 + $0x10] sm:$0xf]
        %v1293 = vld [vmem:[%s634 + $0x14] sm:$0xf]
        %v1294 = vld [vmem:[%s634 + $0x18] sm:$0xf]
        %v1295 = vld [vmem:[%s634 + $0x1c] sm:$0xf]
        %v1296 = vld [vmem:[%s634 + $0x20] sm:$0xf]
        %v1297 = vld [vmem:[%s634 + $0x24] sm:$0xf]
        %v1298 = vld [vmem:[%s634 + $0x28] sm:$0xf]
        %v1299 = vld [vmem:[%s634 + $0x2c] sm:$0xf]
        %v1300 = vld [vmem:[%s634 + $0x30] sm:$0xf]
        %v1301 = vld [vmem:[%s634 + $0x34] sm:$0xf]
        %v1302 = vld [vmem:[%s634 + $0x38] sm:$0xf]
        %v1303 = vld [vmem:[%s634 + $0x3c] sm:$0xf]
        %v1304 = vld [vmem:[%s634 + $0x40] sm:$0xf]
        %v1305 = vld [vmem:[%s634 + $0x44] sm:$0xf]
        %v1306 = vld [vmem:[%s634 + $0x48] sm:$0xf]
        %v1307 = vld [vmem:[%s634 + $0x4c] sm:$0xf]
        %v1308 = vld [vmem:[%s634 + $0x50] sm:$0xf]
        %v1309 = vld [vmem:[%s634 + $0x54] sm:$0xf]
        %v1310 = vld [vmem:[%s634 + $0x58] sm:$0xf]
        %v1311 = vld [vmem:[%s634 + $0x5c] sm:$0xf]
        %v1312 = vld [vmem:[%s634 + $0x60] sm:$0xf]
        %v1313 = vld [vmem:[%s634 + $0x64] sm:$0xf]
        %v1314 = vld [vmem:[%s634 + $0x68] sm:$0xf]
        %v1315 = vld [vmem:[%s634 + $0x6c] sm:$0xf]
        %v1316 = vld [vmem:[%s634 + $0x70] sm:$0xf]
        %v1317 = vld [vmem:[%s634 + $0x74] sm:$0xf]
        %v1318 = vld [vmem:[%s634 + $0x78] sm:$0xf]
        %v1319 = vld [vmem:[%s634 + $0x7c] sm:$0xf]
        %v1320 = vld [vmem:[%s634 + $0x80] sm:$0xf]
        %v1321 = vld [vmem:[%s634 + $0x84] sm:$0xf]
        %v1322 = vld [vmem:[%s634 + $0x88] sm:$0xf]
        %v1323 = vld [vmem:[%s634 + $0x8c] sm:$0xf]
        %v1324 = vld [vmem:[%s634 + $0x90] sm:$0xf]
        %v1325 = vld [vmem:[%s634 + $0x94] sm:$0xf]
        %v1326 = vld [vmem:[%s634 + $0x98] sm:$0xf]
        %v1327 = vld [vmem:[%s634 + $0x9c] sm:$0xf]
        %v1328 = vld [vmem:[%s634 + $0xa0] sm:$0xf]
        %v1329 = vld [vmem:[%s634 + $0xa4] sm:$0xf]
        %v1330 = vld [vmem:[%s634 + $0xa8] sm:$0xf]
        %v1331 = vld [vmem:[%s634 + $0xac] sm:$0xf]
        %v1332 = vld [vmem:[%s634 + $0xb0] sm:$0xf]
        %v1333 = vld [vmem:[%s634 + $0xb4] sm:$0xf]
        %v1334 = vld [vmem:[%s634 + $0xb8] sm:$0xf]
        %v1335 = vld [vmem:[%s634 + $0xbc] sm:$0xf]
        %v1384 = vunpack.c.l.b16 %v1288
        %v1385 = vunpack.c.l.b16 %v1289
        %v1386 = vunpack.c.l.b16 %v1290
        %v1387 = vunpack.c.l.b16 %v1291
        %v1388 = vunpack.c.l.b16 %v1292
        %v1389 = vunpack.c.l.b16 %v1293
        %v1390 = vunpack.c.l.b16 %v1294
        %v1391 = vunpack.c.l.b16 %v1295
        %v1392 = vunpack.c.l.b16 %v1296
        %v1393 = vunpack.c.l.b16 %v1297
        %v1394 = vunpack.c.l.b16 %v1298
        %v1395 = vunpack.c.l.b16 %v1299
        %v1396 = vunpack.c.l.b16 %v1300
        %v1397 = vunpack.c.l.b16 %v1301
        %v1398 = vunpack.c.l.b16 %v1302
        %v1399 = vunpack.c.l.b16 %v1303
        %v1400 = vunpack.c.l.b16 %v1304
        %v1401 = vunpack.c.l.b16 %v1305
        %v1402 = vunpack.c.l.b16 %v1306
        %v1403 = vunpack.c.l.b16 %v1307
        %v1404 = vunpack.c.l.b16 %v1308
        %v1405 = vunpack.c.l.b16 %v1309
        %v1406 = vunpack.c.l.b16 %v1310
        %v1407 = vunpack.c.l.b16 %v1311
        %v1408 = vunpack.c.l.b16 %v1312
        %v1409 = vunpack.c.l.b16 %v1313
        %v1410 = vunpack.c.l.b16 %v1314
        %v1411 = vunpack.c.l.b16 %v1315
        %v1412 = vunpack.c.l.b16 %v1316
        %v1413 = vunpack.c.l.b16 %v1317
        %v1414 = vunpack.c.l.b16 %v1318
        %v1415 = vunpack.c.l.b16 %v1319
        %v1416 = vunpack.c.l.b16 %v1320
        %v1417 = vunpack.c.l.b16 %v1321
        %v1418 = vunpack.c.l.b16 %v1322
        %v1419 = vunpack.c.l.b16 %v1323
        %v1420 = vunpack.c.l.b16 %v1324
        %v1421 = vunpack.c.l.b16 %v1325
        %v1422 = vunpack.c.l.b16 %v1326
        %v1423 = vunpack.c.l.b16 %v1327
        %v1424 = vunpack.c.l.b16 %v1328
        %v1425 = vunpack.c.l.b16 %v1329
        %v1426 = vunpack.c.l.b16 %v1330
        %v1427 = vunpack.c.l.b16 %v1331
        %v1428 = vunpack.c.l.b16 %v1332
        %v1429 = vunpack.c.l.b16 %v1333
        %v1430 = vunpack.c.l.b16 %v1334
        %v1431 = vunpack.c.l.b16 %v1335
        %v1432 = vpack.c.b16 %v1385, %v1384
        %v1433 = vpack.c.b16 %v1387, %v1386
        %v1434 = vpack.c.b16 %v1389, %v1388
        %v1435 = vpack.c.b16 %v1391, %v1390
        %v1436 = vpack.c.b16 %v1393, %v1392
        %v1437 = vpack.c.b16 %v1395, %v1394
        %v1438 = vpack.c.b16 %v1397, %v1396
        %v1439 = vpack.c.b16 %v1399, %v1398
        %v1440 = vpack.c.b16 %v1401, %v1400
        %v1441 = vpack.c.b16 %v1403, %v1402
        %v1442 = vpack.c.b16 %v1405, %v1404
        %v1443 = vpack.c.b16 %v1407, %v1406
        %v1444 = vpack.c.b16 %v1409, %v1408
        %v1445 = vpack.c.b16 %v1411, %v1410
        %v1446 = vpack.c.b16 %v1413, %v1412
        %v1447 = vpack.c.b16 %v1415, %v1414
        %v1448 = vpack.c.b16 %v1417, %v1416
        %v1449 = vpack.c.b16 %v1419, %v1418
        %v1450 = vpack.c.b16 %v1421, %v1420
        %v1451 = vpack.c.b16 %v1423, %v1422
        %v1452 = vpack.c.b16 %v1425, %v1424
        %v1453 = vpack.c.b16 %v1427, %v1426
        %v1454 = vpack.c.b16 %v1429, %v1428
        %v1455 = vpack.c.b16 %v1431, %v1430
        %1480 = vmatprep.subr.bf16.mxu0 0
        %1481 = vmatpush1.bf16.msra.mxu0 %v1439
        %1482 = vmatprep.subr.bf16.mxu0 0
        %1483 = vmatpush1.bf16.msra.mxu0 %v1438
        %1484 = vmatprep.subr.bf16.mxu0 0
        %1485 = vmatpush1.bf16.msra.mxu0 %v1437
        %1486 = vmatprep.subr.bf16.mxu0 0
        %1487 = vmatpush1.bf16.msra.mxu0 %v1436
        %1488 = vmatprep.subr.bf16.mxu0 0
        %1489 = vmatpush1.bf16.msra.mxu0 %v1435
        %1490 = vmatprep.subr.bf16.mxu0 0
        %1491 = vmatpush1.bf16.msra.mxu0 %v1434
        %1492 = vmatprep.subr.bf16.mxu0 0
        %1493 = vmatpush1.bf16.msra.mxu0 %v1433
        %1494 = vmatprep.subr.bf16.mxu0 0
        %1495 = vmatpush1.bf16.msra.mxu0 %v1432
        %1496 = vmatprep.subr.bf16.mxu0 0
        %1497 = vmatpush2.bf16.msra.mxu0 %v1447
        %1498 = vmatprep.subr.bf16.mxu0 0
        %1499 = vmatpush2.bf16.msra.mxu0 %v1446
        %1500 = vmatprep.subr.bf16.mxu0 0
        %1501 = vmatpush2.bf16.msra.mxu0 %v1445
        %1502 = vmatprep.subr.bf16.mxu0 0
        %1503 = vmatpush2.bf16.msra.mxu0 %v1444
        %1504 = vmatprep.subr.bf16.mxu0 0
        %1505 = vmatpush2.bf16.msra.mxu0 %v1443
        %1506 = vmatprep.subr.bf16.mxu0 0
        %1507 = vmatpush2.bf16.msra.mxu0 %v1442
        %1508 = vmatprep.subr.bf16.mxu0 0
        %1509 = vmatpush2.bf16.msra.mxu0 %v1441
        %1510 = vmatprep.subr.bf16.mxu0 0
        %1511 = vmatpush2.bf16.msra.mxu0 %v1440
        %1512 = vmatprep.mubr.bf16.mxu0 %v1031
        %1513 = vmatmul.mubr.bf16.gmra.mxu0 %v1030
        %v1514 = vpop.f32.mrf.mxu0
        %v1515 = vadd.f32 0.0, %v1514
        %v1516 = vpop.f32.mrf.mxu0
        %v1517 = vpop.f32.mrf.mxu0
        %v1518 = vadd.f32 0.0, %v1517
        %v1519 = vpop.f32.mrf.mxu0
        %1520 = vmatprep.mubr.bf16.mxu0 %v1034
        %1521 = vmatmul.mubr.bf16.gmra.mxu0 %v1033
        %v1522 = vpop.f32.mrf.mxu0
        %v1523 = vadd.f32 0.0, %v1522
        %v1524 = vpop.f32.mrf.mxu0
        %v1525 = vpop.f32.mrf.mxu0
        %v1526 = vadd.f32 0.0, %v1525
        %v1527 = vpop.f32.mrf.mxu0
        %1528 = vdwg.mxu0
        %1529 = vmatprep.subr.bf16.mxu0 0
        %1530 = vmatpush1.bf16.msra.mxu0 %v1455
        %1531 = vmatprep.subr.bf16.mxu0 0
        %1532 = vmatpush1.bf16.msra.mxu0 %v1454
        %1533 = vmatprep.subr.bf16.mxu0 0
        %1534 = vmatpush1.bf16.msra.mxu0 %v1453
        %1535 = vmatprep.subr.bf16.mxu0 0
        %1536 = vmatpush1.bf16.msra.mxu0 %v1452
        %1537 = vmatprep.subr.bf16.mxu0 0
        %1538 = vmatpush1.bf16.msra.mxu0 %v1451
        %1539 = vmatprep.subr.bf16.mxu0 0
        %1540 = vmatpush1.bf16.msra.mxu0 %v1450
        %1541 = vmatprep.subr.bf16.mxu0 0
        %1542 = vmatpush1.bf16.msra.mxu0 %v1449
        %1543 = vmatprep.subr.bf16.mxu0 0
        %1544 = vmatpush1.bf16.msra.mxu0 %v1448
        %1545 = vmatprep.subr.bf16.mxu0 0
        %1546 = vmatpush2.bf16.msra.mxu0 0
        %1547 = vmatprep.subr.bf16.mxu0 0
        %1548 = vmatpush2.bf16.msra.mxu0 0
        %1549 = vmatprep.subr.bf16.mxu0 0
        %1550 = vmatpush2.bf16.msra.mxu0 0
        %1551 = vmatprep.subr.bf16.mxu0 0
        %1552 = vmatpush2.bf16.msra.mxu0 0
        %1553 = vmatprep.subr.bf16.mxu0 0
        %1554 = vmatpush2.bf16.msra.mxu0 0
        %1555 = vmatprep.subr.bf16.mxu0 0
        %1556 = vmatpush2.bf16.msra.mxu0 0
        %1557 = vmatprep.subr.bf16.mxu0 0
        %1558 = vmatpush2.bf16.msra.mxu0 0
        %1559 = vmatprep.subr.bf16.mxu0 0
        %1560 = vmatpush2.bf16.msra.mxu0 0
        %1561 = vmatprep.mubr.bf16.mxu0 0
        %1562 = vmatmul.mubr.bf16.gmra.mxu0 %v1032
        %v1563 = vpop.f32.mrf.mxu0
        %v1564 = vadd.f32 %v1515, %v1563
        %v1565 = vpop.f32.mrf.mxu0
        %v1566 = vpop.f32.mrf.mxu0
        %v1567 = vadd.f32 %v1518, %v1566
        %v1568 = vpop.f32.mrf.mxu0
        %1569 = vmatprep.mubr.bf16.mxu0 0
        %1570 = vmatmul.mubr.bf16.gmra.mxu0 %v1035
        %v1571 = vpop.f32.mrf.mxu0
        %v1572 = vadd.f32 %v1523, %v1571
        %v1573 = vpop.f32.mrf.mxu0
        %v1574 = vpop.f32.mrf.mxu0
        %v1575 = vadd.f32 %v1526, %v1574
        %v1576 = vpop.f32.mrf.mxu0
        %1577 = vdwg.mxu0
        %v1578 = vmax.f32 %v1284, %v1564
        %v1579 = vmax.f32 %v1285, %v1567
        %v1580 = vmax.f32 %v1286, %v1572
        %v1581 = vmax.f32 %v1287, %v1575
        %v1582 = vld [vmem:[%s2] sm:$0x1]
        %v1584 = vlaneseq
        %v1585 = vshrl.u32 %v1584, 7
        %v1586 = vsub.s32 0, %v1585
        %v1587 = vrot.slane %v1582, %v1586
        %v1589 = vadd.f32 %v1578, %v1587
        %v1590 = vadd.f32 %v1579, %v1587
        %v1591 = vadd.f32 %v1580, %v1587
        %v1592 = vadd.f32 %v1581, %v1587
        %v1593 = vmax.f32 %v1589, 0.0
        %v1594 = vmax.f32 %v1590, 0.0
        %v1595 = vmax.f32 %v1591, 0.0
        %v1596 = vmax.f32 %v1592, 0.0
        %v1597 = vpack.c.bf16 %v1594, %v1593
        %v1598 = vpack.c.bf16 %v1596, %v1595
        %v1601 = vunpack.c.l.b16 %v1597
        %v1602 = vunpack.c.h.b16 %v1597
        %v1603 = vunpack.c.l.b16 %v1598
        %v1604 = vunpack.c.h.b16 %v1598
        %v1605 = vpack.c.b16 %v1601, %v1601
        %v1606 = vpack.c.b16 %v1602, %v1602
        %v1607 = vpack.c.b16 %v1603, %v1603
        %v1608 = vpack.c.b16 %v1604, %v1604
        %1613 = vst [vmem:[%s275] sm:$0xf] %v1605
        %1614 = vst [vmem:[%s275 + $0x4] sm:$0xf] %v1606
        %1615 = vst [vmem:[%s275 + $0x8] sm:$0xf] %v1607
        %1616 = vst [vmem:[%s275 + $0xc] sm:$0xf] %v1608
        %s1617 = smul.u32 4, %s14
        %p1618 = scmp.lt.s32.totalorder %s1617, 15
        %s1619 = scalar_select %p1618, %s1617, 15
        %s1620 = smul.addr %s1619, 4
        %s1621 = scalar_lea.vmem %s3, %s1620
        // Predicated region
        $region74: #{cnn_forward.4} parent=68 // pred_check
          %p1622 = pneg %p100
        $region75: #{cnn_forward.4} parent=68 // pred_check_branch
          %1624 = sbr.rel (%p1622) target = $region77
        $region76: #{cnn_forward.4} parent=68 // pred_region
          %s1625 = smul.u32 4, %s14
        $region77: #{cnn_forward.4} parent=68 // pred_fallthru
          _
      $region69: #{cnn_forward.4} parent=5 // pred_fallthru
        _
      %p1626 = scmp.le.s32.totalorder 2, %s9
      // Predicated region
      $region78: #{cnn_forward.4} parent=5 // pred_check
        %p1627 = pneg %p1626
      $region79: #{cnn_forward.4} parent=5 // pred_check_branch
        %1629 = sbr.rel (%p1627) target = $region81
      $region80: #{cnn_forward.4} parent=5 // pred_region
        %s1630 = ssub.s32 %s9, 2
        // Predicated region
        $region82: #{cnn_forward.4} parent=80 // pred_check
          %p1631 = pneg %p106
        $region83: #{cnn_forward.4} parent=80 // pred_check_branch
          %1633 = sbr.rel (%p1631) target = $region85
        $region84: #{cnn_forward.4} parent=80 // pred_region
          %s1634 = smul.u32 4, %s15
          %p1635 = scmp.lt.s32.totalorder %s1634, 15
          %s1636 = scalar_select %p1635, %s1634, 15
          %s1637 = smul.addr %s1636, 4
          %s1638 = scalar_lea.vmem %s3, %s1637
        $region85: #{cnn_forward.4} parent=80 // pred_fallthru
          _
      $region81: #{cnn_forward.4} parent=5 // pred_fallthru
        _
    $region6: #{cnn_forward.4} parent=1 // loop_footer
      %s13 = sadd.s32 1, %s9
    $region7: #{cnn_forward.4} parent=1 // loop_footer_branch
      %8 = sbr.rel target = $region3
    $region8: #{cnn_forward.4} parent=1 // loop_exit
      _

// kernel: cnn_forward.5
$region0: #{cnn_forward.5}
  #allocation0 [shape = 'u32[]', space=smem, size = 0x4, offset = 0x4, fixed_abs, tag = 'smem constant byte address 0x4 - core index']
  #allocation1 [shape = 'u32[144,128]{1,0:T(1,128)}', space=vmem, size = 0x12000, scoped, tag = 'internal scratch']
  %s0 = inlined_call_operand.vmem [shape: bf16[8,3136], index: 0, kind: input, shape index: {}]
  %s1 = inlined_call_operand.vmem [shape: bf16[3136,128], index: 1, kind: input, shape index: {}]
  %s2 = inlined_call_operand.vmem [shape: f32[1,128], index: 2, kind: input, shape index: {}]
  %s3 = inlined_call_operand.vmem [shape: f32[8,128], index: 3, kind: output, shape index: {}]
  %s4 = sld [smem:[#allocation0]]
  $region22: #{cnn_forward.5} parent=0
    _
  %s6 = ssub.s32 1, %s4
  %s7 = scalar_select 0, %s6, %s4
  // Predicated region
  $region2: #{cnn_forward.5} parent=0 // pred_check
    _
  $region3: #{cnn_forward.5} parent=0 // pred_check_branch
    %9 = sbr.rel (0) target = $region5
  $region4: #{cnn_forward.5} parent=0 // pred_region
    _
  $region5: #{cnn_forward.5} parent=0 // pred_fallthru
    _
  // Predicated region
  $region6: #{cnn_forward.5} parent=0 // pred_check
    _
  $region7: #{cnn_forward.5} parent=0 // pred_check_branch
    %11 = sbr.rel (0) target = $region9
  $region8: #{cnn_forward.5} parent=0 // pred_region
    _
  $region9: #{cnn_forward.5} parent=0 // pred_fallthru
    _
  // Predicated region
  $region10: #{cnn_forward.5} parent=0 // pred_check
    _
  $region11: #{cnn_forward.5} parent=0 // pred_check_branch
    %13 = sbr.rel (0) target = $region13
  $region12: #{cnn_forward.5} parent=0 // pred_region
    _
  $region13: #{cnn_forward.5} parent=0 // pred_fallthru
    _
  %v15 = vld [vmem:[%s0] sm:$0xff]
  %v16 = vld [vmem:[%s0 + $0x8] sm:$0xff]
  %v17 = vld [vmem:[%s0 + $0x10] sm:$0xff]
  %v18 = vld [vmem:[%s0 + $0x18] sm:$0xff]
  %v19 = vld [vmem:[%s0 + $0x20] sm:$0xff]
  %v20 = vld [vmem:[%s0 + $0x28] sm:$0xff]
  %v21 = vld [vmem:[%s0 + $0x30] sm:$0xff]
  %v22 = vld [vmem:[%s0 + $0x38] sm:$0xff]
  %v23 = vld [vmem:[%s0 + $0x40] sm:$0xff]
  %v24 = vld [vmem:[%s0 + $0x48] sm:$0xff]
  %v25 = vld [vmem:[%s0 + $0x50] sm:$0xff]
  %v26 = vld [vmem:[%s0 + $0x58] sm:$0xff]
  %v27 = vld [vmem:[%s0 + $0x60] sm:$0xf]
  %v28 = vld [vmem:[%s1] sm:$0xf]
  %v29 = vld [vmem:[%s1 + $0x4] sm:$0xf]
  %v30 = vld [vmem:[%s1 + $0x8] sm:$0xf]
  %v31 = vld [vmem:[%s1 + $0xc] sm:$0xf]
  %v32 = vld [vmem:[%s1 + $0x10] sm:$0xf]
  %v33 = vld [vmem:[%s1 + $0x14] sm:$0xf]
  %v34 = vld [vmem:[%s1 + $0x18] sm:$0xf]
  %v35 = vld [vmem:[%s1 + $0x1c] sm:$0xf]
  %v36 = vld [vmem:[%s1 + $0x20] sm:$0xf]
  %v37 = vld [vmem:[%s1 + $0x24] sm:$0xf]
  %v38 = vld [vmem:[%s1 + $0x28] sm:$0xf]
  %v39 = vld [vmem:[%s1 + $0x2c] sm:$0xf]
  %v40 = vld [vmem:[%s1 + $0x30] sm:$0xf]
  %v41 = vld [vmem:[%s1 + $0x34] sm:$0xf]
  %v42 = vld [vmem:[%s1 + $0x38] sm:$0xf]
  %v43 = vld [vmem:[%s1 + $0x3c] sm:$0xf]
  %v44 = vld [vmem:[%s1 + $0x40] sm:$0xf]
  %v45 = vld [vmem:[%s1 + $0x44] sm:$0xf]
  %v46 = vld [vmem:[%s1 + $0x48] sm:$0xf]
  %v47 = vld [vmem:[%s1 + $0x4c] sm:$0xf]
  %v48 = vld [vmem:[%s1 + $0x50] sm:$0xf]
  %v49 = vld [vmem:[%s1 + $0x54] sm:$0xf]
  %v50 = vld [vmem:[%s1 + $0x58] sm:$0xf]
  %v51 = vld [vmem:[%s1 + $0x5c] sm:$0xf]
  %v52 = vld [vmem:[%s1 + $0x60] sm:$0xf]
  %v53 = vld [vmem:[%s1 + $0x64] sm:$0xf]
  %v54 = vld [vmem:[%s1 + $0x68] sm:$0xf]
  %v55 = vld [vmem:[%s1 + $0x6c] sm:$0xf]
  %v56 = vld [vmem:[%s1 + $0x70] sm:$0xf]
  %v57 = vld [vmem:[%s1 + $0x74] sm:$0xf]
  %v58 = vld [vmem:[%s1 + $0x78] sm:$0xf]
  %v59 = vld [vmem:[%s1 + $0x7c] sm:$0xf]
  %v60 = vld [vmem:[%s1 + $0x80] sm:$0xf]
  %v61 = vld [vmem:[%s1 + $0x84] sm:$0xf]
  %v62 = vld [vmem:[%s1 + $0x88] sm:$0xf]
  %v63 = vld [vmem:[%s1 + $0x8c] sm:$0xf]
  %v64 = vld [vmem:[%s1 + $0x90] sm:$0xf]
  %v65 = vld [vmem:[%s1 + $0x94] sm:$0xf]
  %v66 = vld [vmem:[%s1 + $0x98] sm:$0xf]
  %v67 = vld [vmem:[%s1 + $0x9c] sm:$0xf]
  %v68 = vld [vmem:[%s1 + $0xa0] sm:$0xf]
  %v69 = vld [vmem:[%s1 + $0xa4] sm:$0xf]
  %v70 = vld [vmem:[%s1 + $0xa8] sm:$0xf]
  %v71 = vld [vmem:[%s1 + $0xac] sm:$0xf]
  %v72 = vld [vmem:[%s1 + $0xb0] sm:$0xf]
  %v73 = vld [vmem:[%s1 + $0xb4] sm:$0xf]
  %v74 = vld [vmem:[%s1 + $0xb8] sm:$0xf]
  %v75 = vld [vmem:[%s1 + $0xbc] sm:$0xf]
  %v76 = vld [vmem:[%s1 + $0xc0] sm:$0xf]
  %v77 = vld [vmem:[%s1 + $0xc4] sm:$0xf]
  %v78 = vld [vmem:[%s1 + $0xc8] sm:$0xf]
  %v79 = vld [vmem:[%s1 + $0xcc] sm:$0xf]
  %v80 = vld [vmem:[%s1 + $0xd0] sm:$0xf]
  %v81 = vld [vmem:[%s1 + $0xd4] sm:$0xf]
  %v82 = vld [vmem:[%s1 + $0xd8] sm:$0xf]
  %v83 = vld [vmem:[%s1 + $0xdc] sm:$0xf]
  %v84 = vld [vmem:[%s1 + $0xe0] sm:$0xf]
  %v85 = vld [vmem:[%s1 + $0xe4] sm:$0xf]
  %v86 = vld [vmem:[%s1 + $0xe8] sm:$0xf]
  %v87 = vld [vmem:[%s1 + $0xec] sm:$0xf]
  %v88 = vld [vmem:[%s1 + $0xf0] sm:$0xf]
  %v89 = vld [vmem:[%s1 + $0xf4] sm:$0xf]
  %v90 = vld [vmem:[%s1 + $0xf8] sm:$0xf]
  %v91 = vld [vmem:[%s1 + $0xfc] sm:$0xf]
  %v92 = vld [vmem:[%s1 + $0x100] sm:$0xf]
  %v93 = vld [vmem:[%s1 + $0x104] sm:$0xf]
  %v94 = vld [vmem:[%s1 + $0x108] sm:$0xf]
  %v95 = vld [vmem:[%s1 + $0x10c] sm:$0xf]
  %v96 = vld [vmem:[%s1 + $0x110] sm:$0xf]
  %v97 = vld [vmem:[%s1 + $0x114] sm:$0xf]
  %v98 = vld [vmem:[%s1 + $0x118] sm:$0xf]
  %v99 = vld [vmem:[%s1 + $0x11c] sm:$0xf]
  %v100 = vld [vmem:[%s1 + $0x120] sm:$0xf]
  %v101 = vld [vmem:[%s1 + $0x124] sm:$0xf]
  %v102 = vld [vmem:[%s1 + $0x128] sm:$0xf]
  %v103 = vld [vmem:[%s1 + $0x12c] sm:$0xf]
  %v104 = vld [vmem:[%s1 + $0x130] sm:$0xf]
  %v105 = vld [vmem:[%s1 + $0x134] sm:$0xf]
  %v106 = vld [vmem:[%s1 + $0x138] sm:$0xf]
  %v107 = vld [vmem:[%s1 + $0x13c] sm:$0xf]
  %v108 = vld [vmem:[%s1 + $0x140] sm:$0xf]
  %v109 = vld [vmem:[%s1 + $0x144] sm:$0xf]
  %v110 = vld [vmem:[%s1 + $0x148] sm:$0xf]
  %v111 = vld [vmem:[%s1 + $0x14c] sm:$0xf]
  %v112 = vld [vmem:[%s1 + $0x150] sm:$0xf]
  %v113 = vld [vmem:[%s1 + $0x154] sm:$0xf]
  %v114 = vld [vmem:[%s1 + $0x158] sm:$0xf]
  %v115 = vld [vmem:[%s1 + $0x15c] sm:$0xf]
  %v116 = vld [vmem:[%s1 + $0x160] sm:$0xf]
  %v117 = vld [vmem:[%s1 + $0x164] sm:$0xf]
  %v118 = vld [vmem:[%s1 + $0x168] sm:$0xf]
  %v119 = vld [vmem:[%s1 + $0x16c] sm:$0xf]
  %v120 = vld [vmem:[%s1 + $0x170] sm:$0xf]
  %v121 = vld [vmem:[%s1 + $0x174] sm:$0xf]
  %v122 = vld [vmem:[%s1 + $0x178] sm:$0xf]
  %v123 = vld [vmem:[%s1 + $0x17c] sm:$0xf]
  %v124 = vld [vmem:[%s1 + $0x180] sm:$0xf]
  %v125 = vld [vmem:[%s1 + $0x184] sm:$0xf]
  %v126 = vld [vmem:[%s1 + $0x188] sm:$0xf]
  %v127 = vld [vmem:[%s1 + $0x18c] sm:$0xf]
  %v128 = vld [vmem:[%s1 + $0x190] sm:$0xf]
  %v129 = vld [vmem:[%s1 + $0x194] sm:$0xf]
  %v130 = vld [vmem:[%s1 + $0x198] sm:$0xf]
  %v131 = vld [vmem:[%s1 + $0x19c] sm:$0xf]
  %v132 = vld [vmem:[%s1 + $0x1a0] sm:$0xf]
  %v133 = vld [vmem:[%s1 + $0x1a4] sm:$0xf]
  %v134 = vld [vmem:[%s1 + $0x1a8] sm:$0xf]
  %v135 = vld [vmem:[%s1 + $0x1ac] sm:$0xf]
  %v136 = vld [vmem:[%s1 + $0x1b0] sm:$0xf]
  %v137 = vld [vmem:[%s1 + $0x1b4] sm:$0xf]
  %v138 = vld [vmem:[%s1 + $0x1b8] sm:$0xf]
  %v139 = vld [vmem:[%s1 + $0x1bc] sm:$0xf]
  %v140 = vld [vmem:[%s1 + $0x1c0] sm:$0xf]
  %v141 = vld [vmem:[%s1 + $0x1c4] sm:$0xf]
  %v142 = vld [vmem:[%s1 + $0x1c8] sm:$0xf]
  %v143 = vld [vmem:[%s1 + $0x1cc] sm:$0xf]
  %v144 = vld [vmem:[%s1 + $0x1d0] sm:$0xf]
  %v145 = vld [vmem:[%s1 + $0x1d4] sm:$0xf]
  %v146 = vld [vmem:[%s1 + $0x1d8] sm:$0xf]
  %v147 = vld [vmem:[%s1 + $0x1dc] sm:$0xf]
  %v148 = vld [vmem:[%s1 + $0x1e0] sm:$0xf]
  %v149 = vld [vmem:[%s1 + $0x1e4] sm:$0xf]
  %v150 = vld [vmem:[%s1 + $0x1e8] sm:$0xf]
  %v151 = vld [vmem:[%s1 + $0x1ec] sm:$0xf]
  %v152 = vld [vmem:[%s1 + $0x1f0] sm:$0xf]
  %v153 = vld [vmem:[%s1 + $0x1f4] sm:$0xf]
  %v154 = vld [vmem:[%s1 + $0x1f8] sm:$0xf]
  %v155 = vld [vmem:[%s1 + $0x1fc] sm:$0xf]
  %v156 = vld [vmem:[%s1 + $0x200] sm:$0xf]
  %v157 = vld [vmem:[%s1 + $0x204] sm:$0xf]
  %v158 = vld [vmem:[%s1 + $0x208] sm:$0xf]
  %v159 = vld [vmem:[%s1 + $0x20c] sm:$0xf]
  %v160 = vld [vmem:[%s1 + $0x210] sm:$0xf]
  %v161 = vld [vmem:[%s1 + $0x214] sm:$0xf]
  %v162 = vld [vmem:[%s1 + $0x218] sm:$0xf]
  %v163 = vld [vmem:[%s1 + $0x21c] sm:$0xf]
  %v164 = vld [vmem:[%s1 + $0x220] sm:$0xf]
  %v165 = vld [vmem:[%s1 + $0x224] sm:$0xf]
  %v166 = vld [vmem:[%s1 + $0x228] sm:$0xf]
  %v167 = vld [vmem:[%s1 + $0x22c] sm:$0xf]
  %v168 = vld [vmem:[%s1 + $0x230] sm:$0xf]
  %v169 = vld [vmem:[%s1 + $0x234] sm:$0xf]
  %v170 = vld [vmem:[%s1 + $0x238] sm:$0xf]
  %v171 = vld [vmem:[%s1 + $0x23c] sm:$0xf]
  %v172 = vld [vmem:[%s1 + $0x240] sm:$0xf]
  %v173 = vld [vmem:[%s1 + $0x244] sm:$0xf]
  %v174 = vld [vmem:[%s1 + $0x248] sm:$0xf]
  %v175 = vld [vmem:[%s1 + $0x24c] sm:$0xf]
  %v176 = vld [vmem:[%s1 + $0x250] sm:$0xf]
  %v177 = vld [vmem:[%s1 + $0x254] sm:$0xf]
  %v178 = vld [vmem:[%s1 + $0x258] sm:$0xf]
  %v179 = vld [vmem:[%s1 + $0x25c] sm:$0xf]
  %v180 = vld [vmem:[%s1 + $0x260] sm:$0xf]
  %v181 = vld [vmem:[%s1 + $0x264] sm:$0xf]
  %v182 = vld [vmem:[%s1 + $0x268] sm:$0xf]
  %v183 = vld [vmem:[%s1 + $0x26c] sm:$0xf]
  %v184 = vld [vmem:[%s1 + $0x270] sm:$0xf]
  %v185 = vld [vmem:[%s1 + $0x274] sm:$0xf]
  %v186 = vld [vmem:[%s1 + $0x278] sm:$0xf]
  %v187 = vld [vmem:[%s1 + $0x27c] sm:$0xf]
  %v188 = vld [vmem:[%s1 + $0x280] sm:$0xf]
  %v189 = vld [vmem:[%s1 + $0x284] sm:$0xf]
  %v190 = vld [vmem:[%s1 + $0x288] sm:$0xf]
  %v191 = vld [vmem:[%s1 + $0x28c] sm:$0xf]
  %v192 = vld [vmem:[%s1 + $0x290] sm:$0xf]
  %v193 = vld [vmem:[%s1 + $0x294] sm:$0xf]
  %v194 = vld [vmem:[%s1 + $0x298] sm:$0xf]
  %v195 = vld [vmem:[%s1 + $0x29c] sm:$0xf]
  %v196 = vld [vmem:[%s1 + $0x2a0] sm:$0xf]
  %v197 = vld [vmem:[%s1 + $0x2a4] sm:$0xf]
  %v198 = vld [vmem:[%s1 + $0x2a8] sm:$0xf]
  %v199 = vld [vmem:[%s1 + $0x2ac] sm:$0xf]
  %v200 = vld [vmem:[%s1 + $0x2b0] sm:$0xf]
  %v201 = vld [vmem:[%s1 + $0x2b4] sm:$0xf]
  %v202 = vld [vmem:[%s1 + $0x2b8] sm:$0xf]
  %v203 = vld [vmem:[%s1 + $0x2bc] sm:$0xf]
  %v204 = vld [vmem:[%s1 + $0x2c0] sm:$0xf]
  %v205 = vld [vmem:[%s1 + $0x2c4] sm:$0xf]
  %v206 = vld [vmem:[%s1 + $0x2c8] sm:$0xf]
  %v207 = vld [vmem:[%s1 + $0x2cc] sm:$0xf]
  %v208 = vld [vmem:[%s1 + $0x2d0] sm:$0xf]
  %v209 = vld [vmem:[%s1 + $0x2d4] sm:$0xf]
  %v210 = vld [vmem:[%s1 + $0x2d8] sm:$0xf]
  %v211 = vld [vmem:[%s1 + $0x2dc] sm:$0xf]
  %v212 = vld [vmem:[%s1 + $0x2e0] sm:$0xf]
  %v213 = vld [vmem:[%s1 + $0x2e4] sm:$0xf]
  %v214 = vld [vmem:[%s1 + $0x2e8] sm:$0xf]
  %v215 = vld [vmem:[%s1 + $0x2ec] sm:$0xf]
  %v216 = vld [vmem:[%s1 + $0x2f0] sm:$0xf]
  %v217 = vld [vmem:[%s1 + $0x2f4] sm:$0xf]
  %v218 = vld [vmem:[%s1 + $0x2f8] sm:$0xf]
  %v219 = vld [vmem:[%s1 + $0x2fc] sm:$0xf]
  %v220 = vld [vmem:[%s1 + $0x300] sm:$0xf]
  %v221 = vld [vmem:[%s1 + $0x304] sm:$0xf]
  %v222 = vld [vmem:[%s1 + $0x308] sm:$0xf]
  %v223 = vld [vmem:[%s1 + $0x30c] sm:$0xf]
  %v224 = vld [vmem:[%s1 + $0x310] sm:$0xf]
  %v225 = vld [vmem:[%s1 + $0x314] sm:$0xf]
  %v226 = vld [vmem:[%s1 + $0x318] sm:$0xf]
  %v227 = vld [vmem:[%s1 + $0x31c] sm:$0xf]
  %v228 = vld [vmem:[%s1 + $0x320] sm:$0xf]
  %v229 = vld [vmem:[%s1 + $0x324] sm:$0xf]
  %v230 = vld [vmem:[%s1 + $0x328] sm:$0xf]
  %v231 = vld [vmem:[%s1 + $0x32c] sm:$0xf]
  %v232 = vld [vmem:[%s1 + $0x330] sm:$0xf]
  %v233 = vld [vmem:[%s1 + $0x334] sm:$0xf]
  %v234 = vld [vmem:[%s1 + $0x338] sm:$0xf]
  %v235 = vld [vmem:[%s1 + $0x33c] sm:$0xf]
  %v236 = vld [vmem:[%s1 + $0x340] sm:$0xf]
  %v237 = vld [vmem:[%s1 + $0x344] sm:$0xf]
  %v238 = vld [vmem:[%s1 + $0x348] sm:$0xf]
  %v239 = vld [vmem:[%s1 + $0x34c] sm:$0xf]
  %v240 = vld [vmem:[%s1 + $0x350] sm:$0xf]
  %v241 = vld [vmem:[%s1 + $0x354] sm:$0xf]
  %v242 = vld [vmem:[%s1 + $0x358] sm:$0xf]
  %v243 = vld [vmem:[%s1 + $0x35c] sm:$0xf]
  %v244 = vld [vmem:[%s1 + $0x360] sm:$0xf]
  %v245 = vld [vmem:[%s1 + $0x364] sm:$0xf]
  %v246 = vld [vmem:[%s1 + $0x368] sm:$0xf]
  %v247 = vld [vmem:[%s1 + $0x36c] sm:$0xf]
  %v248 = vld [vmem:[%s1 + $0x370] sm:$0xf]
  %v249 = vld [vmem:[%s1 + $0x374] sm:$0xf]
  %v250 = vld [vmem:[%s1 + $0x378] sm:$0xf]
  %v251 = vld [vmem:[%s1 + $0x37c] sm:$0xf]
  %v252 = vld [vmem:[%s1 + $0x380] sm:$0xf]
  %v253 = vld [vmem:[%s1 + $0x384] sm:$0xf]
  %v254 = vld [vmem:[%s1 + $0x388] sm:$0xf]
  %v255 = vld [vmem:[%s1 + $0x38c] sm:$0xf]
  %v256 = vld [vmem:[%s1 + $0x390] sm:$0xf]
  %v257 = vld [vmem:[%s1 + $0x394] sm:$0xf]
  %v258 = vld [vmem:[%s1 + $0x398] sm:$0xf]
  %v259 = vld [vmem:[%s1 + $0x39c] sm:$0xf]
  %v260 = vld [vmem:[%s1 + $0x3a0] sm:$0xf]
  %v261 = vld [vmem:[%s1 + $0x3a4] sm:$0xf]
  %v262 = vld [vmem:[%s1 + $0x3a8] sm:$0xf]
  %v263 = vld [vmem:[%s1 + $0x3ac] sm:$0xf]
  %v264 = vld [vmem:[%s1 + $0x3b0] sm:$0xf]
  %v265 = vld [vmem:[%s1 + $0x3b4] sm:$0xf]
  %v266 = vld [vmem:[%s1 + $0x3b8] sm:$0xf]
  %v267 = vld [vmem:[%s1 + $0x3bc] sm:$0xf]
  %v268 = vld [vmem:[%s1 + $0x3c0] sm:$0xf]
  %v269 = vld [vmem:[%s1 + $0x3c4] sm:$0xf]
  %v270 = vld [vmem:[%s1 + $0x3c8] sm:$0xf]
  %v271 = vld [vmem:[%s1 + $0x3cc] sm:$0xf]
  %v272 = vld [vmem:[%s1 + $0x3d0] sm:$0xf]
  %v273 = vld [vmem:[%s1 + $0x3d4] sm:$0xf]
  %v274 = vld [vmem:[%s1 + $0x3d8] sm:$0xf]
  %v275 = vld [vmem:[%s1 + $0x3dc] sm:$0xf]
  %v276 = vld [vmem:[%s1 + $0x3e0] sm:$0xf]
  %v277 = vld [vmem:[%s1 + $0x3e4] sm:$0xf]
  %v278 = vld [vmem:[%s1 + $0x3e8] sm:$0xf]
  %v279 = vld [vmem:[%s1 + $0x3ec] sm:$0xf]
  %v280 = vld [vmem:[%s1 + $0x3f0] sm:$0xf]
  %v281 = vld [vmem:[%s1 + $0x3f4] sm:$0xf]
  %v282 = vld [vmem:[%s1 + $0x3f8] sm:$0xf]
  %v283 = vld [vmem:[%s1 + $0x3fc] sm:$0xf]
  %v284 = vld [vmem:[%s1 + $0x400] sm:$0xf]
  %v285 = vld [vmem:[%s1 + $0x404] sm:$0xf]
  %v286 = vld [vmem:[%s1 + $0x408] sm:$0xf]
  %v287 = vld [vmem:[%s1 + $0x40c] sm:$0xf]
  %v288 = vld [vmem:[%s1 + $0x410] sm:$0xf]
  %v289 = vld [vmem:[%s1 + $0x414] sm:$0xf]
  %v290 = vld [vmem:[%s1 + $0x418] sm:$0xf]
  %v291 = vld [vmem:[%s1 + $0x41c] sm:$0xf]
  %v292 = vld [vmem:[%s1 + $0x420] sm:$0xf]
  %v293 = vld [vmem:[%s1 + $0x424] sm:$0xf]
  %v294 = vld [vmem:[%s1 + $0x428] sm:$0xf]
  %v295 = vld [vmem:[%s1 + $0x42c] sm:$0xf]
  %v296 = vld [vmem:[%s1 + $0x430] sm:$0xf]
  %v297 = vld [vmem:[%s1 + $0x434] sm:$0xf]
  %v298 = vld [vmem:[%s1 + $0x438] sm:$0xf]
  %v299 = vld [vmem:[%s1 + $0x43c] sm:$0xf]
  %v300 = vld [vmem:[%s1 + $0x440] sm:$0xf]
  %v301 = vld [vmem:[%s1 + $0x444] sm:$0xf]
  %v302 = vld [vmem:[%s1 + $0x448] sm:$0xf]
  %v303 = vld [vmem:[%s1 + $0x44c] sm:$0xf]
  %v304 = vld [vmem:[%s1 + $0x450] sm:$0xf]
  %v305 = vld [vmem:[%s1 + $0x454] sm:$0xf]
  %v306 = vld [vmem:[%s1 + $0x458] sm:$0xf]
  %v307 = vld [vmem:[%s1 + $0x45c] sm:$0xf]
  %v308 = vld [vmem:[%s1 + $0x460] sm:$0xf]
  %v309 = vld [vmem:[%s1 + $0x464] sm:$0xf]
  %v310 = vld [vmem:[%s1 + $0x468] sm:$0xf]
  %v311 = vld [vmem:[%s1 + $0x46c] sm:$0xf]
  %v312 = vld [vmem:[%s1 + $0x470] sm:$0xf]
  %v313 = vld [vmem:[%s1 + $0x474] sm:$0xf]
  %v314 = vld [vmem:[%s1 + $0x478] sm:$0xf]
  %v315 = vld [vmem:[%s1 + $0x47c] sm:$0xf]
  %v316 = vld [vmem:[%s1 + $0x480] sm:$0xf]
  %v317 = vld [vmem:[%s1 + $0x484] sm:$0xf]
  %v318 = vld [vmem:[%s1 + $0x488] sm:$0xf]
  %v319 = vld [vmem:[%s1 + $0x48c] sm:$0xf]
  %v320 = vld [vmem:[%s1 + $0x490] sm:$0xf]
  %v321 = vld [vmem:[%s1 + $0x494] sm:$0xf]
  %v322 = vld [vmem:[%s1 + $0x498] sm:$0xf]
  %v323 = vld [vmem:[%s1 + $0x49c] sm:$0xf]
  %v324 = vld [vmem:[%s1 + $0x4a0] sm:$0xf]
  %v325 = vld [vmem:[%s1 + $0x4a4] sm:$0xf]
  %v326 = vld [vmem:[%s1 + $0x4a8] sm:$0xf]
  %v327 = vld [vmem:[%s1 + $0x4ac] sm:$0xf]
  %v328 = vld [vmem:[%s1 + $0x4b0] sm:$0xf]
  %v329 = vld [vmem:[%s1 + $0x4b4] sm:$0xf]
  %v330 = vld [vmem:[%s1 + $0x4b8] sm:$0xf]
  %v331 = vld [vmem:[%s1 + $0x4bc] sm:$0xf]
  %v332 = vld [vmem:[%s1 + $0x4c0] sm:$0xf]
  %v333 = vld [vmem:[%s1 + $0x4c4] sm:$0xf]
  %v334 = vld [vmem:[%s1 + $0x4c8] sm:$0xf]
  %v335 = vld [vmem:[%s1 + $0x4cc] sm:$0xf]
  %v336 = vld [vmem:[%s1 + $0x4d0] sm:$0xf]
  %v337 = vld [vmem:[%s1 + $0x4d4] sm:$0xf]
  %v338 = vld [vmem:[%s1 + $0x4d8] sm:$0xf]
  %v339 = vld [vmem:[%s1 + $0x4dc] sm:$0xf]
  %v340 = vld [vmem:[%s1 + $0x4e0] sm:$0xf]
  %v341 = vld [vmem:[%s1 + $0x4e4] sm:$0xf]
  %v342 = vld [vmem:[%s1 + $0x4e8] sm:$0xf]
  %v343 = vld [vmem:[%s1 + $0x4ec] sm:$0xf]
  %v344 = vld [vmem:[%s1 + $0x4f0] sm:$0xf]
  %v345 = vld [vmem:[%s1 + $0x4f4] sm:$0xf]
  %v346 = vld [vmem:[%s1 + $0x4f8] sm:$0xf]
  %v347 = vld [vmem:[%s1 + $0x4fc] sm:$0xf]
  %v348 = vld [vmem:[%s1 + $0x500] sm:$0xf]
  %v349 = vld [vmem:[%s1 + $0x504] sm:$0xf]
  %v350 = vld [vmem:[%s1 + $0x508] sm:$0xf]
  %v351 = vld [vmem:[%s1 + $0x50c] sm:$0xf]
  %v352 = vld [vmem:[%s1 + $0x510] sm:$0xf]
  %v353 = vld [vmem:[%s1 + $0x514] sm:$0xf]
  %v354 = vld [vmem:[%s1 + $0x518] sm:$0xf]
  %v355 = vld [vmem:[%s1 + $0x51c] sm:$0xf]
  %v356 = vld [vmem:[%s1 + $0x520] sm:$0xf]
  %v357 = vld [vmem:[%s1 + $0x524] sm:$0xf]
  %v358 = vld [vmem:[%s1 + $0x528] sm:$0xf]
  %v359 = vld [vmem:[%s1 + $0x52c] sm:$0xf]
  %v360 = vld [vmem:[%s1 + $0x530] sm:$0xf]
  %v361 = vld [vmem:[%s1 + $0x534] sm:$0xf]
  %v362 = vld [vmem:[%s1 + $0x538] sm:$0xf]
  %v363 = vld [vmem:[%s1 + $0x53c] sm:$0xf]
  %v364 = vld [vmem:[%s1 + $0x540] sm:$0xf]
  %v365 = vld [vmem:[%s1 + $0x544] sm:$0xf]
  %v366 = vld [vmem:[%s1 + $0x548] sm:$0xf]
  %v367 = vld [vmem:[%s1 + $0x54c] sm:$0xf]
  %v368 = vld [vmem:[%s1 + $0x550] sm:$0xf]
  %v369 = vld [vmem:[%s1 + $0x554] sm:$0xf]
  %v370 = vld [vmem:[%s1 + $0x558] sm:$0xf]
  %v371 = vld [vmem:[%s1 + $0x55c] sm:$0xf]
  %v372 = vld [vmem:[%s1 + $0x560] sm:$0xf]
  %v373 = vld [vmem:[%s1 + $0x564] sm:$0xf]
  %v374 = vld [vmem:[%s1 + $0x568] sm:$0xf]
  %v375 = vld [vmem:[%s1 + $0x56c] sm:$0xf]
  %v376 = vld [vmem:[%s1 + $0x570] sm:$0xf]
  %v377 = vld [vmem:[%s1 + $0x574] sm:$0xf]
  %v378 = vld [vmem:[%s1 + $0x578] sm:$0xf]
  %v379 = vld [vmem:[%s1 + $0x57c] sm:$0xf]
  %v380 = vld [vmem:[%s1 + $0x580] sm:$0xf]
  %v381 = vld [vmem:[%s1 + $0x584] sm:$0xf]
  %v382 = vld [vmem:[%s1 + $0x588] sm:$0xf]
  %v383 = vld [vmem:[%s1 + $0x58c] sm:$0xf]
  %v384 = vld [vmem:[%s1 + $0x590] sm:$0xf]
  %v385 = vld [vmem:[%s1 + $0x594] sm:$0xf]
  %v386 = vld [vmem:[%s1 + $0x598] sm:$0xf]
  %v387 = vld [vmem:[%s1 + $0x59c] sm:$0xf]
  %v388 = vld [vmem:[%s1 + $0x5a0] sm:$0xf]
  %v389 = vld [vmem:[%s1 + $0x5a4] sm:$0xf]
  %v390 = vld [vmem:[%s1 + $0x5a8] sm:$0xf]
  %v391 = vld [vmem:[%s1 + $0x5ac] sm:$0xf]
  %v392 = vld [vmem:[%s1 + $0x5b0] sm:$0xf]
  %v393 = vld [vmem:[%s1 + $0x5b4] sm:$0xf]
  %v394 = vld [vmem:[%s1 + $0x5b8] sm:$0xf]
  %v395 = vld [vmem:[%s1 + $0x5bc] sm:$0xf]
  %v396 = vld [vmem:[%s1 + $0x5c0] sm:$0xf]
  %v397 = vld [vmem:[%s1 + $0x5c4] sm:$0xf]
  %v398 = vld [vmem:[%s1 + $0x5c8] sm:$0xf]
  %v399 = vld [vmem:[%s1 + $0x5cc] sm:$0xf]
  %v400 = vld [vmem:[%s1 + $0x5d0] sm:$0xf]
  %v401 = vld [vmem:[%s1 + $0x5d4] sm:$0xf]
  %v402 = vld [vmem:[%s1 + $0x5d8] sm:$0xf]
  %v403 = vld [vmem:[%s1 + $0x5dc] sm:$0xf]
  %v404 = vld [vmem:[%s1 + $0x5e0] sm:$0xf]
  %v405 = vld [vmem:[%s1 + $0x5e4] sm:$0xf]
  %v406 = vld [vmem:[%s1 + $0x5e8] sm:$0xf]
  %v407 = vld [vmem:[%s1 + $0x5ec] sm:$0xf]
  %v408 = vld [vmem:[%s1 + $0x5f0] sm:$0xf]
  %v409 = vld [vmem:[%s1 + $0x5f4] sm:$0xf]
  %v410 = vld [vmem:[%s1 + $0x5f8] sm:$0xf]
  %v411 = vld [vmem:[%s1 + $0x5fc] sm:$0xf]
  %v412 = vld [vmem:[%s1 + $0x600] sm:$0xf]
  %v413 = vld [vmem:[%s1 + $0x604] sm:$0xf]
  %v414 = vld [vmem:[%s1 + $0x608] sm:$0xf]
  %v415 = vld [vmem:[%s1 + $0x60c] sm:$0xf]
  %v416 = vld [vmem:[%s1 + $0x610] sm:$0xf]
  %v417 = vld [vmem:[%s1 + $0x614] sm:$0xf]
  %v418 = vld [vmem:[%s1 + $0x618] sm:$0xf]
  %v419 = vld [vmem:[%s1 + $0x61c] sm:$0xf]
  %v420 = vld [vmem:[%s2] sm:$0x1]
  %v422 = vlaneseq
  %v423 = vshrl.u32 %v422, 7
  %v424 = vsub.s32 0, %v423
  %v425 = vrot.slane %v420, %v424
  %v440 = vunpack.c.l.b16 %v15
  %v441 = vunpack.c.h.b16 %v15
  %v442 = vunpack.c.l.b16 %v16
  %v443 = vunpack.c.h.b16 %v16
  %v444 = vunpack.c.l.b16 %v17
  %v445 = vunpack.c.h.b16 %v17
  %v446 = vunpack.c.l.b16 %v18
  %v447 = vunpack.c.h.b16 %v18
  %v448 = vunpack.c.l.b16 %v19
  %v449 = vunpack.c.h.b16 %v19
  %v450 = vunpack.c.l.b16 %v20
  %v451 = vunpack.c.h.b16 %v20
  %v452 = vunpack.c.l.b16 %v21
  %v453 = vunpack.c.h.b16 %v21
  %v454 = vunpack.c.l.b16 %v22
  %v455 = vunpack.c.h.b16 %v22
  %v456 = vunpack.c.l.b16 %v23
  %v457 = vunpack.c.h.b16 %v23
  %v458 = vunpack.c.l.b16 %v24
  %v459 = vunpack.c.h.b16 %v24
  %v460 = vunpack.c.l.b16 %v25
  %v461 = vunpack.c.h.b16 %v25
  %v462 = vunpack.c.l.b16 %v26
  %v463 = vunpack.c.h.b16 %v26
  %v464 = vunpack.c.l.b16 %v27
  %v465 = vpack.c.b16 %v440, %v440
  %v466 = vpack.c.b16 %v441, %v441
  %v467 = vpack.c.b16 %v442, %v442
  %v468 = vpack.c.b16 %v443, %v443
  %v469 = vpack.c.b16 %v444, %v444
  %v470 = vpack.c.b16 %v445, %v445
  %v471 = vpack.c.b16 %v446, %v446
  %v472 = vpack.c.b16 %v447, %v447
  %v473 = vpack.c.b16 %v448, %v448
  %v474 = vpack.c.b16 %v449, %v449
  %v475 = vpack.c.b16 %v450, %v450
  %v476 = vpack.c.b16 %v451, %v451
  %v477 = vpack.c.b16 %v452, %v452
  %v478 = vpack.c.b16 %v453, %v453
  %v479 = vpack.c.b16 %v454, %v454
  %v480 = vpack.c.b16 %v455, %v455
  %v481 = vpack.c.b16 %v456, %v456
  %v482 = vpack.c.b16 %v457, %v457
  %v483 = vpack.c.b16 %v458, %v458
  %v484 = vpack.c.b16 %v459, %v459
  %v485 = vpack.c.b16 %v460, %v460
  %v486 = vpack.c.b16 %v461, %v461
  %v487 = vpack.c.b16 %v462, %v462
  %v488 = vpack.c.b16 %v463, %v463
  %v489 = vpack.c.b16 %v464, %v464
  %v906 = vunpack.c.l.b16 %v28
  %v907 = vunpack.c.l.b16 %v29
  %v908 = vunpack.c.l.b16 %v30
  %v909 = vunpack.c.l.b16 %v31
  %v910 = vunpack.c.l.b16 %v32
  %v911 = vunpack.c.l.b16 %v33
  %v912 = vunpack.c.l.b16 %v34
  %v913 = vunpack.c.l.b16 %v35
  %v914 = vunpack.c.l.b16 %v36
  %v915 = vunpack.c.l.b16 %v37
  %v916 = vunpack.c.l.b16 %v38
  %v917 = vunpack.c.l.b16 %v39
  %v918 = vunpack.c.l.b16 %v40
  %v919 = vunpack.c.l.b16 %v41
  %v920 = vunpack.c.l.b16 %v42
  %v921 = vunpack.c.l.b16 %v43
  %v922 = vunpack.c.l.b16 %v44
  %v923 = vunpack.c.l.b16 %v45
  %v924 = vunpack.c.l.b16 %v46
  %v925 = vunpack.c.l.b16 %v47
  %v926 = vunpack.c.l.b16 %v48
  %v927 = vunpack.c.l.b16 %v49
  %v928 = vunpack.c.l.b16 %v50
  %v929 = vunpack.c.l.b16 %v51
  %v930 = vunpack.c.l.b16 %v52
  %v931 = vunpack.c.l.b16 %v53
  %v932 = vunpack.c.l.b16 %v54
  %v933 = vunpack.c.l.b16 %v55
  %v934 = vunpack.c.l.b16 %v56
  %v935 = vunpack.c.l.b16 %v57
  %v936 = vunpack.c.l.b16 %v58
  %v937 = vunpack.c.l.b16 %v59
  %v938 = vunpack.c.l.b16 %v60
  %v939 = vunpack.c.l.b16 %v61
  %v940 = vunpack.c.l.b16 %v62
  %v941 = vunpack.c.l.b16 %v63
  %v942 = vunpack.c.l.b16 %v64
  %v943 = vunpack.c.l.b16 %v65
  %v944 = vunpack.c.l.b16 %v66
  %v945 = vunpack.c.l.b16 %v67
  %v946 = vunpack.c.l.b16 %v68
  %v947 = vunpack.c.l.b16 %v69
  %v948 = vunpack.c.l.b16 %v70
  %v949 = vunpack.c.l.b16 %v71
  %v950 = vunpack.c.l.b16 %v72
  %v951 = vunpack.c.l.b16 %v73
  %v952 = vunpack.c.l.b16 %v74
  %v953 = vunpack.c.l.b16 %v75
  %v954 = vunpack.c.l.b16 %v76
  %v955 = vunpack.c.l.b16 %v77
  %v956 = vunpack.c.l.b16 %v78
  %v957 = vunpack.c.l.b16 %v79
  %v958 = vunpack.c.l.b16 %v80
  %v959 = vunpack.c.l.b16 %v81
  %v960 = vunpack.c.l.b16 %v82
  %v961 = vunpack.c.l.b16 %v83
  %v962 = vunpack.c.l.b16 %v84
  %v963 = vunpack.c.l.b16 %v85
  %v964 = vunpack.c.l.b16 %v86
  %v965 = vunpack.c.l.b16 %v87
  %v966 = vunpack.c.l.b16 %v88
  %v967 = vunpack.c.l.b16 %v89
  %v968 = vunpack.c.l.b16 %v90
  %v969 = vunpack.c.l.b16 %v91
  %v970 = vunpack.c.l.b16 %v92
  %v971 = vunpack.c.l.b16 %v93
  %v972 = vunpack.c.l.b16 %v94
  %v973 = vunpack.c.l.b16 %v95
  %v974 = vunpack.c.l.b16 %v96
  %v975 = vunpack.c.l.b16 %v97
  %v976 = vunpack.c.l.b16 %v98
  %v977 = vunpack.c.l.b16 %v99
  %v978 = vunpack.c.l.b16 %v100
  %v979 = vunpack.c.l.b16 %v101
  %v980 = vunpack.c.l.b16 %v102
  %v981 = vunpack.c.l.b16 %v103
  %v982 = vunpack.c.l.b16 %v104
  %v983 = vunpack.c.l.b16 %v105
  %v984 = vunpack.c.l.b16 %v106
  %v985 = vunpack.c.l.b16 %v107
  %v986 = vunpack.c.l.b16 %v108
  %v987 = vunpack.c.l.b16 %v109
  %v988 = vunpack.c.l.b16 %v110
  %v989 = vunpack.c.l.b16 %v111
  %v990 = vunpack.c.l.b16 %v112
  %v991 = vunpack.c.l.b16 %v113
  %v992 = vunpack.c.l.b16 %v114
  %v993 = vunpack.c.l.b16 %v115
  %v994 = vunpack.c.l.b16 %v116
  %v995 = vunpack.c.l.b16 %v117
  %v996 = vunpack.c.l.b16 %v118
  %v997 = vunpack.c.l.b16 %v119
  %v998 = vunpack.c.l.b16 %v120
  %v999 = vunpack.c.l.b16 %v121
  %v1000 = vunpack.c.l.b16 %v122
  %v1001 = vunpack.c.l.b16 %v123
  %v1002 = vunpack.c.l.b16 %v124
  %v1003 = vunpack.c.l.b16 %v125
  %v1004 = vunpack.c.l.b16 %v126
  %v1005 = vunpack.c.l.b16 %v127
  %v1006 = vunpack.c.l.b16 %v128
  %v1007 = vunpack.c.l.b16 %v129
  %v1008 = vunpack.c.l.b16 %v130
  %v1009 = vunpack.c.l.b16 %v131
  %v1010 = vunpack.c.l.b16 %v132
  %v1011 = vunpack.c.l.b16 %v133
  %v1012 = vunpack.c.l.b16 %v134
  %v1013 = vunpack.c.l.b16 %v135
  %v1014 = vunpack.c.l.b16 %v136
  %v1015 = vunpack.c.l.b16 %v137
  %v1016 = vunpack.c.l.b16 %v138
  %v1017 = vunpack.c.l.b16 %v139
  %v1018 = vunpack.c.l.b16 %v140
  %v1019 = vunpack.c.l.b16 %v141
  %v1020 = vunpack.c.l.b16 %v142
  %v1021 = vunpack.c.l.b16 %v143
  %v1022 = vunpack.c.l.b16 %v144
  %v1023 = vunpack.c.l.b16 %v145
  %v1024 = vunpack.c.l.b16 %v146
  %v1025 = vunpack.c.l.b16 %v147
  %v1026 = vunpack.c.l.b16 %v148
  %v1027 = vunpack.c.l.b16 %v149
  %v1028 = vunpack.c.l.b16 %v150
  %v1029 = vunpack.c.l.b16 %v151
  %v1030 = vunpack.c.l.b16 %v152
  %v1031 = vunpack.c.l.b16 %v153
  %v1032 = vunpack.c.l.b16 %v154
  %v1033 = vunpack.c.l.b16 %v155
  %v1034 = vunpack.c.l.b16 %v156
  %v1035 = vunpack.c.l.b16 %v157
  %v1036 = vunpack.c.l.b16 %v158
  %v1037 = vunpack.c.l.b16 %v159
  %v1038 = vunpack.c.l.b16 %v160
  %v1039 = vunpack.c.l.b16 %v161
  %v1040 = vunpack.c.l.b16 %v162
  %v1041 = vunpack.c.l.b16 %v163
  %v1042 = vunpack.c.l.b16 %v164
  %v1043 = vunpack.c.l.b16 %v165
  %v1044 = vunpack.c.l.b16 %v166
  %v1045 = vunpack.c.l.b16 %v167
  %v1046 = vunpack.c.l.b16 %v168
  %v1047 = vunpack.c.l.b16 %v169
  %v1048 = vunpack.c.l.b16 %v170
  %v1049 = vunpack.c.l.b16 %v171
  %v1050 = vunpack.c.l.b16 %v172
  %v1051 = vunpack.c.l.b16 %v173
  %v1052 = vunpack.c.l.b16 %v174
  %v1053 = vunpack.c.l.b16 %v175
  %v1054 = vunpack.c.l.b16 %v176
  %v1055 = vunpack.c.l.b16 %v177
  %v1056 = vunpack.c.l.b16 %v178
  %v1057 = vunpack.c.l.b16 %v179
  %v1058 = vunpack.c.l.b16 %v180
  %v1059 = vunpack.c.l.b16 %v181
  %v1060 = vunpack.c.l.b16 %v182
  %v1061 = vunpack.c.l.b16 %v183
  %v1062 = vunpack.c.l.b16 %v184
  %v1063 = vunpack.c.l.b16 %v185
  %v1064 = vunpack.c.l.b16 %v186
  %v1065 = vunpack.c.l.b16 %v187
  %v1066 = vunpack.c.l.b16 %v188
  %v1067 = vunpack.c.l.b16 %v189
  %v1068 = vunpack.c.l.b16 %v190
  %v1069 = vunpack.c.l.b16 %v191
  %v1070 = vunpack.c.l.b16 %v192
  %v1071 = vunpack.c.l.b16 %v193
  %v1072 = vunpack.c.l.b16 %v194
  %v1073 = vunpack.c.l.b16 %v195
  %v1074 = vunpack.c.l.b16 %v196
  %v1075 = vunpack.c.l.b16 %v197
  %v1076 = vunpack.c.l.b16 %v198
  %v1077 = vunpack.c.l.b16 %v199
  %v1078 = vunpack.c.l.b16 %v200
  %v1079 = vunpack.c.l.b16 %v201
  %v1080 = vunpack.c.l.b16 %v202
  %v1081 = vunpack.c.l.b16 %v203
  %v1082 = vunpack.c.l.b16 %v204
  %v1083 = vunpack.c.l.b16 %v205
  %v1084 = vunpack.c.l.b16 %v206
  %v1085 = vunpack.c.l.b16 %v207
  %v1086 = vunpack.c.l.b16 %v208
  %v1087 = vunpack.c.l.b16 %v209
  %v1088 = vunpack.c.l.b16 %v210
  %v1089 = vunpack.c.l.b16 %v211
  %v1090 = vunpack.c.l.b16 %v212
  %v1091 = vunpack.c.l.b16 %v213
  %v1092 = vunpack.c.l.b16 %v214
  %v1093 = vunpack.c.l.b16 %v215
  %v1094 = vunpack.c.l.b16 %v216
  %v1095 = vunpack.c.l.b16 %v217
  %v1096 = vunpack.c.l.b16 %v218
  %v1097 = vunpack.c.l.b16 %v219
  %v1098 = vunpack.c.l.b16 %v220
  %v1099 = vunpack.c.l.b16 %v221
  %v1100 = vunpack.c.l.b16 %v222
  %v1101 = vunpack.c.l.b16 %v223
  %v1102 = vunpack.c.l.b16 %v224
  %v1103 = vunpack.c.l.b16 %v225
  %v1104 = vunpack.c.l.b16 %v226
  %v1105 = vunpack.c.l.b16 %v227
  %v1106 = vunpack.c.l.b16 %v228
  %v1107 = vunpack.c.l.b16 %v229
  %v1108 = vunpack.c.l.b16 %v230
  %v1109 = vunpack.c.l.b16 %v231
  %v1110 = vunpack.c.l.b16 %v232
  %v1111 = vunpack.c.l.b16 %v233
  %v1112 = vunpack.c.l.b16 %v234
  %v1113 = vunpack.c.l.b16 %v235
  %v1114 = vunpack.c.l.b16 %v236
  %v1115 = vunpack.c.l.b16 %v237
  %v1116 = vunpack.c.l.b16 %v238
  %v1117 = vunpack.c.l.b16 %v239
  %v1118 = vunpack.c.l.b16 %v240
  %v1119 = vunpack.c.l.b16 %v241
  %v1120 = vunpack.c.l.b16 %v242
  %v1121 = vunpack.c.l.b16 %v243
  %v1122 = vunpack.c.l.b16 %v244
  %v1123 = vunpack.c.l.b16 %v245
  %v1124 = vunpack.c.l.b16 %v246
  %v1125 = vunpack.c.l.b16 %v247
  %v1126 = vunpack.c.l.b16 %v248
  %v1127 = vunpack.c.l.b16 %v249
  %v1128 = vunpack.c.l.b16 %v250
  %v1129 = vunpack.c.l.b16 %v251
  %v1130 = vunpack.c.l.b16 %v252
  %v1131 = vunpack.c.l.b16 %v253
  %v1132 = vunpack.c.l.b16 %v254
  %v1133 = vunpack.c.l.b16 %v255
  %v1134 = vunpack.c.l.b16 %v256
  %v1135 = vunpack.c.l.b16 %v257
  %v1136 = vunpack.c.l.b16 %v258
  %v1137 = vunpack.c.l.b16 %v259
  %v1138 = vunpack.c.l.b16 %v260
  %v1139 = vunpack.c.l.b16 %v261
  %v1140 = vunpack.c.l.b16 %v262
  %v1141 = vunpack.c.l.b16 %v263
  %v1142 = vunpack.c.l.b16 %v264
  %v1143 = vunpack.c.l.b16 %v265
  %v1144 = vunpack.c.l.b16 %v266
  %v1145 = vunpack.c.l.b16 %v267
  %v1146 = vunpack.c.l.b16 %v268
  %v1147 = vunpack.c.l.b16 %v269
  %v1148 = vunpack.c.l.b16 %v270
  %v1149 = vunpack.c.l.b16 %v271
  %v1150 = vunpack.c.l.b16 %v272
  %v1151 = vunpack.c.l.b16 %v273
  %v1152 = vunpack.c.l.b16 %v274
  %v1153 = vunpack.c.l.b16 %v275
  %v1154 = vunpack.c.l.b16 %v276
  %v1155 = vunpack.c.l.b16 %v277
  %v1156 = vunpack.c.l.b16 %v278
  %v1157 = vunpack.c.l.b16 %v279
  %v1158 = vunpack.c.l.b16 %v280
  %v1159 = vunpack.c.l.b16 %v281
  %v1160 = vunpack.c.l.b16 %v282
  %v1161 = vunpack.c.l.b16 %v283
  %v1162 = vunpack.c.l.b16 %v284
  %v1163 = vunpack.c.l.b16 %v285
  %v1164 = vunpack.c.l.b16 %v286
  %v1165 = vunpack.c.l.b16 %v287
  %v1166 = vunpack.c.l.b16 %v288
  %v1167 = vunpack.c.l.b16 %v289
  %v1168 = vunpack.c.l.b16 %v290
  %v1169 = vunpack.c.l.b16 %v291
  %v1170 = vunpack.c.l.b16 %v292
  %v1171 = vunpack.c.l.b16 %v293
  %v1172 = vunpack.c.l.b16 %v294
  %v1173 = vunpack.c.l.b16 %v295
  %v1174 = vunpack.c.l.b16 %v296
  %v1175 = vunpack.c.l.b16 %v297
  %v1176 = vunpack.c.l.b16 %v298
  %v1177 = vunpack.c.l.b16 %v299
  %v1178 = vunpack.c.l.b16 %v300
  %v1179 = vunpack.c.l.b16 %v301
  %v1180 = vunpack.c.l.b16 %v302
  %v1181 = vunpack.c.l.b16 %v303
  %v1182 = vunpack.c.l.b16 %v304
  %v1183 = vunpack.c.l.b16 %v305
  %v1184 = vunpack.c.l.b16 %v306
  %v1185 = vunpack.c.l.b16 %v307
  %v1186 = vunpack.c.l.b16 %v308
  %v1187 = vunpack.c.l.b16 %v309
  %v1188 = vunpack.c.l.b16 %v310
  %v1189 = vunpack.c.l.b16 %v311
  %v1190 = vunpack.c.l.b16 %v312
  %v1191 = vunpack.c.l.b16 %v313
  %v1192 = vunpack.c.l.b16 %v314
  %v1193 = vunpack.c.l.b16 %v315
  %v1194 = vunpack.c.l.b16 %v316
  %v1195 = vunpack.c.l.b16 %v317
  %v1196 = vunpack.c.l.b16 %v318
  %v1197 = vunpack.c.l.b16 %v319
  %v1198 = vunpack.c.l.b16 %v320
  %v1199 = vunpack.c.l.b16 %v321
  %v1200 = vunpack.c.l.b16 %v322
  %v1201 = vunpack.c.l.b16 %v323
  %v1202 = vunpack.c.l.b16 %v324
  %v1203 = vunpack.c.l.b16 %v325
  %v1204 = vunpack.c.l.b16 %v326
  %v1205 = vunpack.c.l.b16 %v327
  %v1206 = vunpack.c.l.b16 %v328
  %v1207 = vunpack.c.l.b16 %v329
  %v1208 = vunpack.c.l.b16 %v330
  %v1209 = vunpack.c.l.b16 %v331
  %v1210 = vunpack.c.l.b16 %v332
  %v1211 = vunpack.c.l.b16 %v333
  %v1212 = vunpack.c.l.b16 %v334
  %v1213 = vunpack.c.l.b16 %v335
  %v1214 = vunpack.c.l.b16 %v336
  %v1215 = vunpack.c.l.b16 %v337
  %v1216 = vunpack.c.l.b16 %v338
  %v1217 = vunpack.c.l.b16 %v339
  %v1218 = vunpack.c.l.b16 %v340
  %v1219 = vunpack.c.l.b16 %v341
  %v1220 = vunpack.c.l.b16 %v342
  %v1221 = vunpack.c.l.b16 %v343
  %v1222 = vunpack.c.l.b16 %v344
  %v1223 = vunpack.c.l.b16 %v345
  %v1224 = vunpack.c.l.b16 %v346
  %v1225 = vunpack.c.l.b16 %v347
  %v1226 = vunpack.c.l.b16 %v348
  %v1227 = vunpack.c.l.b16 %v349
  %v1228 = vunpack.c.l.b16 %v350
  %v1229 = vunpack.c.l.b16 %v351
  %v1230 = vunpack.c.l.b16 %v352
  %v1231 = vunpack.c.l.b16 %v353
  %v1232 = vunpack.c.l.b16 %v354
  %v1233 = vunpack.c.l.b16 %v355
  %v1234 = vunpack.c.l.b16 %v356
  %v1235 = vunpack.c.l.b16 %v357
  %v1236 = vunpack.c.l.b16 %v358
  %v1237 = vunpack.c.l.b16 %v359
  %v1238 = vunpack.c.l.b16 %v360
  %v1239 = vunpack.c.l.b16 %v361
  %v1240 = vunpack.c.l.b16 %v362
  %v1241 = vunpack.c.l.b16 %v363
  %v1242 = vunpack.c.l.b16 %v364
  %v1243 = vunpack.c.l.b16 %v365
  %v1244 = vunpack.c.l.b16 %v366
  %v1245 = vunpack.c.l.b16 %v367
  %v1246 = vunpack.c.l.b16 %v368
  %v1247 = vunpack.c.l.b16 %v369
  %v1248 = vunpack.c.l.b16 %v370
  %v1249 = vunpack.c.l.b16 %v371
  %v1250 = vunpack.c.l.b16 %v372
  %v1251 = vunpack.c.l.b16 %v373
  %v1252 = vunpack.c.l.b16 %v374
  %v1253 = vunpack.c.l.b16 %v375
  %v1254 = vunpack.c.l.b16 %v376
  %v1255 = vunpack.c.l.b16 %v377
  %v1256 = vunpack.c.l.b16 %v378
  %v1257 = vunpack.c.l.b16 %v379
  %v1258 = vunpack.c.l.b16 %v380
  %v1259 = vunpack.c.l.b16 %v381
  %v1260 = vunpack.c.l.b16 %v382
  %v1261 = vunpack.c.l.b16 %v383
  %v1262 = vunpack.c.l.b16 %v384
  %v1263 = vunpack.c.l.b16 %v385
  %v1264 = vunpack.c.l.b16 %v386
  %v1265 = vunpack.c.l.b16 %v387
  %v1266 = vunpack.c.l.b16 %v388
  %v1267 = vunpack.c.l.b16 %v389
  %v1268 = vunpack.c.l.b16 %v390
  %v1269 = vunpack.c.l.b16 %v391
  %v1270 = vunpack.c.l.b16 %v392
  %v1271 = vunpack.c.l.b16 %v393
  %v1272 = vunpack.c.l.b16 %v394
  %v1273 = vunpack.c.l.b16 %v395
  %v1274 = vunpack.c.l.b16 %v396
  %v1275 = vunpack.c.l.b16 %v397
  %v1276 = vunpack.c.l.b16 %v398
  %v1277 = vunpack.c.l.b16 %v399
  %v1278 = vunpack.c.l.b16 %v400
  %v1279 = vunpack.c.l.b16 %v401
  %v1280 = vunpack.c.l.b16 %v402
  %v1281 = vunpack.c.l.b16 %v403
  %v1282 = vunpack.c.l.b16 %v404
  %v1283 = vunpack.c.l.b16 %v405
  %v1284 = vunpack.c.l.b16 %v406
  %v1285 = vunpack.c.l.b16 %v407
  %v1286 = vunpack.c.l.b16 %v408
  %v1287 = vunpack.c.l.b16 %v409
  %v1288 = vunpack.c.l.b16 %v410
  %v1289 = vunpack.c.l.b16 %v411
  %v1290 = vunpack.c.l.b16 %v412
  %v1291 = vunpack.c.l.b16 %v413
  %v1292 = vunpack.c.l.b16 %v414
  %v1293 = vunpack.c.l.b16 %v415
  %v1294 = vunpack.c.l.b16 %v416
  %v1295 = vunpack.c.l.b16 %v417
  %v1296 = vunpack.c.l.b16 %v418
  %v1297 = vunpack.c.l.b16 %v419
  %v1298 = vpack.c.b16 %v907, %v906
  %v1299 = vpack.c.b16 %v909, %v908
  %v1300 = vpack.c.b16 %v911, %v910
  %v1301 = vpack.c.b16 %v913, %v912
  %v1302 = vpack.c.b16 %v915, %v914
  %v1303 = vpack.c.b16 %v917, %v916
  %v1304 = vpack.c.b16 %v919, %v918
  %v1305 = vpack.c.b16 %v921, %v920
  %v1306 = vpack.c.b16 %v923, %v922
  %v1307 = vpack.c.b16 %v925, %v924
  %v1308 = vpack.c.b16 %v927, %v926
  %v1309 = vpack.c.b16 %v929, %v928
  %v1310 = vpack.c.b16 %v931, %v930
  %v1311 = vpack.c.b16 %v933, %v932
  %v1312 = vpack.c.b16 %v935, %v934
  %v1313 = vpack.c.b16 %v937, %v936
  %v1314 = vpack.c.b16 %v939, %v938
  %v1315 = vpack.c.b16 %v941, %v940
  %v1316 = vpack.c.b16 %v943, %v942
  %v1317 = vpack.c.b16 %v945, %v944
  %v1318 = vpack.c.b16 %v947, %v946
  %v1319 = vpack.c.b16 %v949, %v948
  %v1320 = vpack.c.b16 %v951, %v950
  %v1321 = vpack.c.b16 %v953, %v952
  %v1322 = vpack.c.b16 %v955, %v954
  %v1323 = vpack.c.b16 %v957, %v956
  %v1324 = vpack.c.b16 %v959, %v958
  %v1325 = vpack.c.b16 %v961, %v960
  %v1326 = vpack.c.b16 %v963, %v962
  %v1327 = vpack.c.b16 %v965, %v964
  %v1328 = vpack.c.b16 %v967, %v966
  %v1329 = vpack.c.b16 %v969, %v968
  %v1330 = vpack.c.b16 %v971, %v970
  %v1331 = vpack.c.b16 %v973, %v972
  %v1332 = vpack.c.b16 %v975, %v974
  %v1333 = vpack.c.b16 %v977, %v976
  %v1334 = vpack.c.b16 %v979, %v978
  %v1335 = vpack.c.b16 %v981, %v980
  %v1336 = vpack.c.b16 %v983, %v982
  %v1337 = vpack.c.b16 %v985, %v984
  %v1338 = vpack.c.b16 %v987, %v986
  %v1339 = vpack.c.b16 %v989, %v988
  %v1340 = vpack.c.b16 %v991, %v990
  %v1341 = vpack.c.b16 %v993, %v992
  %v1342 = vpack.c.b16 %v995, %v994
  %v1343 = vpack.c.b16 %v997, %v996
  %v1344 = vpack.c.b16 %v999, %v998
  %v1345 = vpack.c.b16 %v1001, %v1000
  %v1346 = vpack.c.b16 %v1003, %v1002
  %v1347 = vpack.c.b16 %v1005, %v1004
  %v1348 = vpack.c.b16 %v1007, %v1006
  %v1349 = vpack.c.b16 %v1009, %v1008
  %v1350 = vpack.c.b16 %v1011, %v1010
  %v1351 = vpack.c.b16 %v1013, %v1012
  %v1352 = vpack.c.b16 %v1015, %v1014
  %v1353 = vpack.c.b16 %v1017, %v1016
  %v1354 = vpack.c.b16 %v1019, %v1018
  %v1355 = vpack.c.b16 %v1021, %v1020
  %v1356 = vpack.c.b16 %v1023, %v1022
  %v1357 = vpack.c.b16 %v1025, %v1024
  %v1358 = vpack.c.b16 %v1027, %v1026
  %v1359 = vpack.c.b16 %v1029, %v1028
  %v1360 = vpack.c.b16 %v1031, %v1030
  %v1361 = vpack.c.b16 %v1033, %v1032
  %v1362 = vpack.c.b16 %v1035, %v1034
  %v1363 = vpack.c.b16 %v1037, %v1036
  %v1364 = vpack.c.b16 %v1039, %v1038
  %v1365 = vpack.c.b16 %v1041, %v1040
  %v1366 = vpack.c.b16 %v1043, %v1042
  %v1367 = vpack.c.b16 %v1045, %v1044
  %v1368 = vpack.c.b16 %v1047, %v1046
  %v1369 = vpack.c.b16 %v1049, %v1048
  %v1370 = vpack.c.b16 %v1051, %v1050
  %v1371 = vpack.c.b16 %v1053, %v1052
  %v1372 = vpack.c.b16 %v1055, %v1054
  %v1373 = vpack.c.b16 %v1057, %v1056
  %v1374 = vpack.c.b16 %v1059, %v1058
  %v1375 = vpack.c.b16 %v1061, %v1060
  %v1376 = vpack.c.b16 %v1063, %v1062
  %v1377 = vpack.c.b16 %v1065, %v1064
  %v1378 = vpack.c.b16 %v1067, %v1066
  %v1379 = vpack.c.b16 %v1069, %v1068
  %v1380 = vpack.c.b16 %v1071, %v1070
  %v1381 = vpack.c.b16 %v1073, %v1072
  %v1382 = vpack.c.b16 %v1075, %v1074
  %v1383 = vpack.c.b16 %v1077, %v1076
  %v1384 = vpack.c.b16 %v1079, %v1078
  %v1385 = vpack.c.b16 %v1081, %v1080
  %v1386 = vpack.c.b16 %v1083, %v1082
  %v1387 = vpack.c.b16 %v1085, %v1084
  %v1388 = vpack.c.b16 %v1087, %v1086
  %v1389 = vpack.c.b16 %v1089, %v1088
  %v1390 = vpack.c.b16 %v1091, %v1090
  %v1391 = vpack.c.b16 %v1093, %v1092
  %v1392 = vpack.c.b16 %v1095, %v1094
  %v1393 = vpack.c.b16 %v1097, %v1096
  %v1394 = vpack.c.b16 %v1099, %v1098
  %v1395 = vpack.c.b16 %v1101, %v1100
  %v1396 = vpack.c.b16 %v1103, %v1102
  %v1397 = vpack.c.b16 %v1105, %v1104
  %v1398 = vpack.c.b16 %v1107, %v1106
  %v1399 = vpack.c.b16 %v1109, %v1108
  %v1400 = vpack.c.b16 %v1111, %v1110
  %v1401 = vpack.c.b16 %v1113, %v1112
  %v1402 = vpack.c.b16 %v1115, %v1114
  %v1403 = vpack.c.b16 %v1117, %v1116
  %v1404 = vpack.c.b16 %v1119, %v1118
  %v1405 = vpack.c.b16 %v1121, %v1120
  %v1406 = vpack.c.b16 %v1123, %v1122
  %v1407 = vpack.c.b16 %v1125, %v1124
  %v1408 = vpack.c.b16 %v1127, %v1126
  %v1409 = vpack.c.b16 %v1129, %v1128
  %v1410 = vpack.c.b16 %v1131, %v1130
  %v1411 = vpack.c.b16 %v1133, %v1132
  %v1412 = vpack.c.b16 %v1135, %v1134
  %v1413 = vpack.c.b16 %v1137, %v1136
  %v1414 = vpack.c.b16 %v1139, %v1138
  %v1415 = vpack.c.b16 %v1141, %v1140
  %v1416 = vpack.c.b16 %v1143, %v1142
  %v1417 = vpack.c.b16 %v1145, %v1144
  %v1418 = vpack.c.b16 %v1147, %v1146
  %v1419 = vpack.c.b16 %v1149, %v1148
  %v1420 = vpack.c.b16 %v1151, %v1150
  %v1421 = vpack.c.b16 %v1153, %v1152
  %v1422 = vpack.c.b16 %v1155, %v1154
  %v1423 = vpack.c.b16 %v1157, %v1156
  %v1424 = vpack.c.b16 %v1159, %v1158
  %v1425 = vpack.c.b16 %v1161, %v1160
  %v1426 = vpack.c.b16 %v1163, %v1162
  %v1427 = vpack.c.b16 %v1165, %v1164
  %v1428 = vpack.c.b16 %v1167, %v1166
  %v1429 = vpack.c.b16 %v1169, %v1168
  %v1430 = vpack.c.b16 %v1171, %v1170
  %v1431 = vpack.c.b16 %v1173, %v1172
  %v1432 = vpack.c.b16 %v1175, %v1174
  %v1433 = vpack.c.b16 %v1177, %v1176
  %v1434 = vpack.c.b16 %v1179, %v1178
  %v1435 = vpack.c.b16 %v1181, %v1180
  %v1436 = vpack.c.b16 %v1183, %v1182
  %v1437 = vpack.c.b16 %v1185, %v1184
  %v1438 = vpack.c.b16 %v1187, %v1186
  %v1439 = vpack.c.b16 %v1189, %v1188
  %v1440 = vpack.c.b16 %v1191, %v1190
  %v1441 = vpack.c.b16 %v1193, %v1192
  %v1442 = vpack.c.b16 %v1195, %v1194
  %v1443 = vpack.c.b16 %v1197, %v1196
  %v1444 = vpack.c.b16 %v1199, %v1198
  %v1445 = vpack.c.b16 %v1201, %v1200
  %v1446 = vpack.c.b16 %v1203, %v1202
  %v1447 = vpack.c.b16 %v1205, %v1204
  %v1448 = vpack.c.b16 %v1207, %v1206
  %v1449 = vpack.c.b16 %v1209, %v1208
  %v1450 = vpack.c.b16 %v1211, %v1210
  %v1451 = vpack.c.b16 %v1213, %v1212
  %v1452 = vpack.c.b16 %v1215, %v1214
  %v1453 = vpack.c.b16 %v1217, %v1216
  %v1454 = vpack.c.b16 %v1219, %v1218
  %v1455 = vpack.c.b16 %v1221, %v1220
  %v1456 = vpack.c.b16 %v1223, %v1222
  %v1457 = vpack.c.b16 %v1225, %v1224
  %v1458 = vpack.c.b16 %v1227, %v1226
  %v1459 = vpack.c.b16 %v1229, %v1228
  %v1460 = vpack.c.b16 %v1231, %v1230
  %v1461 = vpack.c.b16 %v1233, %v1232
  %v1462 = vpack.c.b16 %v1235, %v1234
  %v1463 = vpack.c.b16 %v1237, %v1236
  %v1464 = vpack.c.b16 %v1239, %v1238
  %v1465 = vpack.c.b16 %v1241, %v1240
  %v1466 = vpack.c.b16 %v1243, %v1242
  %v1467 = vpack.c.b16 %v1245, %v1244
  %v1468 = vpack.c.b16 %v1247, %v1246
  %v1469 = vpack.c.b16 %v1249, %v1248
  %v1470 = vpack.c.b16 %v1251, %v1250
  %v1471 = vpack.c.b16 %v1253, %v1252
  %v1472 = vpack.c.b16 %v1255, %v1254
  %v1473 = vpack.c.b16 %v1257, %v1256
  %v1474 = vpack.c.b16 %v1259, %v1258
  %v1475 = vpack.c.b16 %v1261, %v1260
  %v1476 = vpack.c.b16 %v1263, %v1262
  %v1477 = vpack.c.b16 %v1265, %v1264
  %v1478 = vpack.c.b16 %v1267, %v1266
  %v1479 = vpack.c.b16 %v1269, %v1268
  %v1480 = vpack.c.b16 %v1271, %v1270
  %v1481 = vpack.c.b16 %v1273, %v1272
  %v1482 = vpack.c.b16 %v1275, %v1274
  %v1483 = vpack.c.b16 %v1277, %v1276
  %v1484 = vpack.c.b16 %v1279, %v1278
  %v1485 = vpack.c.b16 %v1281, %v1280
  %v1486 = vpack.c.b16 %v1283, %v1282
  %v1487 = vpack.c.b16 %v1285, %v1284
  %v1488 = vpack.c.b16 %v1287, %v1286
  %v1489 = vpack.c.b16 %v1289, %v1288
  %v1490 = vpack.c.b16 %v1291, %v1290
  %v1491 = vpack.c.b16 %v1293, %v1292
  %v1492 = vpack.c.b16 %v1295, %v1294
  %v1493 = vpack.c.b16 %v1297, %v1296
  %vm1690 = vcmask 523264
  %v1692 = vsel %vm1690, %v489, 0
  %1694 = vmatprep.subr.bf16.mxu0 0
  %1695 = vmatpush1.bf16.msra.mxu0 %v1305
  %1696 = vmatprep.subr.bf16.mxu0 0
  %1697 = vmatpush1.bf16.msra.mxu0 %v1304
  %1698 = vmatprep.subr.bf16.mxu0 0
  %1699 = vmatpush1.bf16.msra.mxu0 %v1303
  %1700 = vmatprep.subr.bf16.mxu0 0
  %1701 = vmatpush1.bf16.msra.mxu0 %v1302
  %1702 = vmatprep.subr.bf16.mxu0 0
  %1703 = vmatpush1.bf16.msra.mxu0 %v1301
  %1704 = vmatprep.subr.bf16.mxu0 0
  %1705 = vmatpush1.bf16.msra.mxu0 %v1300
  %1706 = vmatprep.subr.bf16.mxu0 0
  %1707 = vmatpush1.bf16.msra.mxu0 %v1299
  %1708 = vmatprep.subr.bf16.mxu0 0
  %1709 = vmatpush1.bf16.msra.mxu0 %v1298
  %1710 = vmatprep.subr.bf16.mxu0 0
  %1711 = vmatpush2.bf16.msra.mxu0 %v1313
  %1712 = vmatprep.subr.bf16.mxu0 0
  %1713 = vmatpush2.bf16.msra.mxu0 %v1312
  %1714 = vmatprep.subr.bf16.mxu0 0
  %1715 = vmatpush2.bf16.msra.mxu0 %v1311
  %1716 = vmatprep.subr.bf16.mxu0 0
  %1717 = vmatpush2.bf16.msra.mxu0 %v1310
  %1718 = vmatprep.subr.bf16.mxu0 0
  %1719 = vmatpush2.bf16.msra.mxu0 %v1309
  %1720 = vmatprep.subr.bf16.mxu0 0
  %1721 = vmatpush2.bf16.msra.mxu0 %v1308
  %1722 = vmatprep.subr.bf16.mxu0 0
  %1723 = vmatpush2.bf16.msra.mxu0 %v1307
  %1724 = vmatprep.subr.bf16.mxu0 0
  %1725 = vmatpush2.bf16.msra.mxu0 %v1306
  %1726 = vmatprep.mubr.bf16.mxu0 %v466
  %1727 = vmatmul.mubr.bf16.gmra.mxu0 %v465
  %v1728 = vpop.f32.mrf.mxu0
  %v1729 = vadd.f32 %v425, %v1728
  %v1730 = vpop.f32.mrf.mxu0
  %v1731 = vpop.f32.mrf.mxu0
  %v1732 = vpop.f32.mrf.mxu0
  %1733 = vdwg.mxu0
  %1734 = vmatprep.subr.bf16.mxu0 0
  %1735 = vmatpush1.bf16.msra.mxu0 %v1321
  %1736 = vmatprep.subr.bf16.mxu0 0
  %1737 = vmatpush1.bf16.msra.mxu0 %v1320
  %1738 = vmatprep.subr.bf16.mxu0 0
  %1739 = vmatpush1.bf16.msra.mxu0 %v1319
  %1740 = vmatprep.subr.bf16.mxu0 0
  %1741 = vmatpush1.bf16.msra.mxu0 %v1318
  %1742 = vmatprep.subr.bf16.mxu0 0
  %1743 = vmatpush1.bf16.msra.mxu0 %v1317
  %1744 = vmatprep.subr.bf16.mxu0 0
  %1745 = vmatpush1.bf16.msra.mxu0 %v1316
  %1746 = vmatprep.subr.bf16.mxu0 0
  %1747 = vmatpush1.bf16.msra.mxu0 %v1315
  %1748 = vmatprep.subr.bf16.mxu0 0
  %1749 = vmatpush1.bf16.msra.mxu0 %v1314
  %1750 = vmatprep.subr.bf16.mxu0 0
  %1751 = vmatpush2.bf16.msra.mxu0 %v1329
  %1752 = vmatprep.subr.bf16.mxu0 0
  %1753 = vmatpush2.bf16.msra.mxu0 %v1328
  %1754 = vmatprep.subr.bf16.mxu0 0
  %1755 = vmatpush2.bf16.msra.mxu0 %v1327
  %1756 = vmatprep.subr.bf16.mxu0 0
  %1757 = vmatpush2.bf16.msra.mxu0 %v1326
  %1758 = vmatprep.subr.bf16.mxu0 0
  %1759 = vmatpush2.bf16.msra.mxu0 %v1325
  %1760 = vmatprep.subr.bf16.mxu0 0
  %1761 = vmatpush2.bf16.msra.mxu0 %v1324
  %1762 = vmatprep.subr.bf16.mxu0 0
  %1763 = vmatpush2.bf16.msra.mxu0 %v1323
  %1764 = vmatprep.subr.bf16.mxu0 0
  %1765 = vmatpush2.bf16.msra.mxu0 %v1322
  %1766 = vmatprep.mubr.bf16.mxu0 %v468
  %1767 = vmatmul.mubr.bf16.gmra.mxu0 %v467
  %v1768 = vpop.f32.mrf.mxu0
  %v1769 = vadd.f32 %v1729, %v1768
  %v1770 = vpop.f32.mrf.mxu0
  %v1771 = vpop.f32.mrf.mxu0
  %v1772 = vpop.f32.mrf.mxu0
  %1773 = vdwg.mxu0
  %1774 = vmatprep.subr.bf16.mxu0 0
  %1775 = vmatpush1.bf16.msra.mxu0 %v1337
  %1776 = vmatprep.subr.bf16.mxu0 0
  %1777 = vmatpush1.bf16.msra.mxu0 %v1336
  %1778 = vmatprep.subr.bf16.mxu0 0
  %1779 = vmatpush1.bf16.msra.mxu0 %v1335
  %1780 = vmatprep.subr.bf16.mxu0 0
  %1781 = vmatpush1.bf16.msra.mxu0 %v1334
  %1782 = vmatprep.subr.bf16.mxu0 0
  %1783 = vmatpush1.bf16.msra.mxu0 %v1333
  %1784 = vmatprep.subr.bf16.mxu0 0
  %1785 = vmatpush1.bf16.msra.mxu0 %v1332
  %1786 = vmatprep.subr.bf16.mxu0 0
  %1787 = vmatpush1.bf16.msra.mxu0 %v1331
  %1788 = vmatprep.subr.bf16.mxu0 0
  %1789 = vmatpush1.bf16.msra.mxu0 %v1330
  %1790 = vmatprep.subr.bf16.mxu0 0
  %1791 = vmatpush2.bf16.msra.mxu0 %v1345
  %1792 = vmatprep.subr.bf16.mxu0 0
  %1793 = vmatpush2.bf16.msra.mxu0 %v1344
  %1794 = vmatprep.subr.bf16.mxu0 0
  %1795 = vmatpush2.bf16.msra.mxu0 %v1343
  %1796 = vmatprep.subr.bf16.mxu0 0
  %1797 = vmatpush2.bf16.msra.mxu0 %v1342
  %1798 = vmatprep.subr.bf16.mxu0 0
  %1799 = vmatpush2.bf16.msra.mxu0 %v1341
  %1800 = vmatprep.subr.bf16.mxu0 0
  %1801 = vmatpush2.bf16.msra.mxu0 %v1340
  %1802 = vmatprep.subr.bf16.mxu0 0
  %1803 = vmatpush2.bf16.msra.mxu0 %v1339
  %1804 = vmatprep.subr.bf16.mxu0 0
  %1805 = vmatpush2.bf16.msra.mxu0 %v1338
  %1806 = vmatprep.mubr.bf16.mxu0 %v470
  %1807 = vmatmul.mubr.bf16.gmra.mxu0 %v469
  %v1808 = vpop.f32.mrf.mxu0
  %v1809 = vadd.f32 %v1769, %v1808
  %v1810 = vpop.f32.mrf.mxu0
  %v1811 = vpop.f32.mrf.mxu0
  %v1812 = vpop.f32.mrf.mxu0
  %1813 = vdwg.mxu0
  %1814 = vmatprep.subr.bf16.mxu0 0
  %1815 = vmatpush1.bf16.msra.mxu0 %v1353
  %1816 = vmatprep.subr.bf16.mxu0 0
  %1817 = vmatpush1.bf16.msra.mxu0 %v1352
  %1818 = vmatprep.subr.bf16.mxu0 0
  %1819 = vmatpush1.bf16.msra.mxu0 %v1351
  %1820 = vmatprep.subr.bf16.mxu0 0
  %1821 = vmatpush1.bf16.msra.mxu0 %v1350
  %1822 = vmatprep.subr.bf16.mxu0 0
  %1823 = vmatpush1.bf16.msra.mxu0 %v1349
  %1824 = vmatprep.subr.bf16.mxu0 0
  %1825 = vmatpush1.bf16.msra.mxu0 %v1348
  %1826 = vmatprep.subr.bf16.mxu0 0
  %1827 = vmatpush1.bf16.msra.mxu0 %v1347
  %1828 = vmatprep.subr.bf16.mxu0 0
  %1829 = vmatpush1.bf16.msra.mxu0 %v1346
  %1830 = vmatprep.subr.bf16.mxu0 0
  %1831 = vmatpush2.bf16.msra.mxu0 %v1361
  %1832 = vmatprep.subr.bf16.mxu0 0
  %1833 = vmatpush2.bf16.msra.mxu0 %v1360
  %1834 = vmatprep.subr.bf16.mxu0 0
  %1835 = vmatpush2.bf16.msra.mxu0 %v1359
  %1836 = vmatprep.subr.bf16.mxu0 0
  %1837 = vmatpush2.bf16.msra.mxu0 %v1358
  %1838 = vmatprep.subr.bf16.mxu0 0
  %1839 = vmatpush2.bf16.msra.mxu0 %v1357
  %1840 = vmatprep.subr.bf16.mxu0 0
  %1841 = vmatpush2.bf16.msra.mxu0 %v1356
  %1842 = vmatprep.subr.bf16.mxu0 0
  %1843 = vmatpush2.bf16.msra.mxu0 %v1355
  %1844 = vmatprep.subr.bf16.mxu0 0
  %1845 = vmatpush2.bf16.msra.mxu0 %v1354
  %1846 = vmatprep.mubr.bf16.mxu0 %v472
  %1847 = vmatmul.mubr.bf16.gmra.mxu0 %v471
  %v1848 = vpop.f32.mrf.mxu0
  %v1849 = vadd.f32 %v1809, %v1848
  %v1850 = vpop.f32.mrf.mxu0
  %v1851 = vpop.f32.mrf.mxu0
  %v1852 = vpop.f32.mrf.mxu0
  %1853 = vdwg.mxu0
  %1854 = vmatprep.subr.bf16.mxu0 0
  %1855 = vmatpush1.bf16.msra.mxu0 %v1369
  %1856 = vmatprep.subr.bf16.mxu0 0
  %1857 = vmatpush1.bf16.msra.mxu0 %v1368
  %1858 = vmatprep.subr.bf16.mxu0 0
  %1859 = vmatpush1.bf16.msra.mxu0 %v1367
  %1860 = vmatprep.subr.bf16.mxu0 0
  %1861 = vmatpush1.bf16.msra.mxu0 %v1366
  %1862 = vmatprep.subr.bf16.mxu0 0
  %1863 = vmatpush1.bf16.msra.mxu0 %v1365
  %1864 = vmatprep.subr.bf16.mxu0 0
  %1865 = vmatpush1.bf16.msra.mxu0 %v1364
  %1866 = vmatprep.subr.bf16.mxu0 0
  %1867 = vmatpush1.bf16.msra.mxu0 %v1363
  %1868 = vmatprep.subr.bf16.mxu0 0
  %1869 = vmatpush1.bf16.msra.mxu0 %v1362
  %1870 = vmatprep.subr.bf16.mxu0 0
  %1871 = vmatpush2.bf16.msra.mxu0 %v1377
  %1872 = vmatprep.subr.bf16.mxu0 0
  %1873 = vmatpush2.bf16.msra.mxu0 %v1376
  %1874 = vmatprep.subr.bf16.mxu0 0
  %1875 = vmatpush2.bf16.msra.mxu0 %v1375
  %1876 = vmatprep.subr.bf16.mxu0 0
  %1877 = vmatpush2.bf16.msra.mxu0 %v1374
  %1878 = vmatprep.subr.bf16.mxu0 0
  %1879 = vmatpush2.bf16.msra.mxu0 %v1373
  %1880 = vmatprep.subr.bf16.mxu0 0
  %1881 = vmatpush2.bf16.msra.mxu0 %v1372
  %1882 = vmatprep.subr.bf16.mxu0 0
  %1883 = vmatpush2.bf16.msra.mxu0 %v1371
  %1884 = vmatprep.subr.bf16.mxu0 0
  %1885 = vmatpush2.bf16.msra.mxu0 %v1370
  %1886 = vmatprep.mubr.bf16.mxu0 %v474
  %1887 = vmatmul.mubr.bf16.gmra.mxu0 %v473
  %v1888 = vpop.f32.mrf.mxu0
  %v1889 = vadd.f32 %v1849, %v1888
  %v1890 = vpop.f32.mrf.mxu0
  %v1891 = vpop.f32.mrf.mxu0
  %v1892 = vpop.f32.mrf.mxu0
  %1893 = vdwg.mxu0
  %1894 = vmatprep.subr.bf16.mxu0 0
  %1895 = vmatpush1.bf16.msra.mxu0 %v1385
  %1896 = vmatprep.subr.bf16.mxu0 0
  %1897 = vmatpush1.bf16.msra.mxu0 %v1384
  %1898 = vmatprep.subr.bf16.mxu0 0
  %1899 = vmatpush1.bf16.msra.mxu0 %v1383
  %1900 = vmatprep.subr.bf16.mxu0 0
  %1901 = vmatpush1.bf16.msra.mxu0 %v1382
  %1902 = vmatprep.subr.bf16.mxu0 0
  %1903 = vmatpush1.bf16.msra.mxu0 %v1381
  %1904 = vmatprep.subr.bf16.mxu0 0
  %1905 = vmatpush1.bf16.msra.mxu0 %v1380
  %1906 = vmatprep.subr.bf16.mxu0 0
  %1907 = vmatpush1.bf16.msra.mxu0 %v1379
  %1908 = vmatprep.subr.bf16.mxu0 0
  %1909 = vmatpush1.bf16.msra.mxu0 %v1378
  %1910 = vmatprep.subr.bf16.mxu0 0
  %1911 = vmatpush2.bf16.msra.mxu0 %v1393
  %1912 = vmatprep.subr.bf16.mxu0 0
  %1913 = vmatpush2.bf16.msra.mxu0 %v1392
  %1914 = vmatprep.subr.bf16.mxu0 0
  %1915 = vmatpush2.bf16.msra.mxu0 %v1391
  %1916 = vmatprep.subr.bf16.mxu0 0
  %1917 = vmatpush2.bf16.msra.mxu0 %v1390
  %1918 = vmatprep.subr.bf16.mxu0 0
  %1919 = vmatpush2.bf16.msra.mxu0 %v1389
  %1920 = vmatprep.subr.bf16.mxu0 0
  %1921 = vmatpush2.bf16.msra.mxu0 %v1388
  %1922 = vmatprep.subr.bf16.mxu0 0
  %1923 = vmatpush2.bf16.msra.mxu0 %v1387
  %1924 = vmatprep.subr.bf16.mxu0 0
  %1925 = vmatpush2.bf16.msra.mxu0 %v1386
  %1926 = vmatprep.mubr.bf16.mxu0 %v476
  %1927 = vmatmul.mubr.bf16.gmra.mxu0 %v475
  %v1928 = vpop.f32.mrf.mxu0
  %v1929 = vadd.f32 %v1889, %v1928
  %v1930 = vpop.f32.mrf.mxu0
  %v1931 = vpop.f32.mrf.mxu0
  %v1932 = vpop.f32.mrf.mxu0
  %1933 = vdwg.mxu0
  %1934 = vmatprep.subr.bf16.mxu0 0
  %1935 = vmatpush1.bf16.msra.mxu0 %v1401
  %1936 = vmatprep.subr.bf16.mxu0 0
  %1937 = vmatpush1.bf16.msra.mxu0 %v1400
  %1938 = vmatprep.subr.bf16.mxu0 0
  %1939 = vmatpush1.bf16.msra.mxu0 %v1399
  %1940 = vmatprep.subr.bf16.mxu0 0
  %1941 = vmatpush1.bf16.msra.mxu0 %v1398
  %1942 = vmatprep.subr.bf16.mxu0 0
  %1943 = vmatpush1.bf16.msra.mxu0 %v1397
  %1944 = vmatprep.subr.bf16.mxu0 0
  %1945 = vmatpush1.bf16.msra.mxu0 %v1396
  %1946 = vmatprep.subr.bf16.mxu0 0
  %1947 = vmatpush1.bf16.msra.mxu0 %v1395
  %1948 = vmatprep.subr.bf16.mxu0 0
  %1949 = vmatpush1.bf16.msra.mxu0 %v1394
  %1950 = vmatprep.subr.bf16.mxu0 0
  %1951 = vmatpush2.bf16.msra.mxu0 %v1409
  %1952 = vmatprep.subr.bf16.mxu0 0
  %1953 = vmatpush2.bf16.msra.mxu0 %v1408
  %1954 = vmatprep.subr.bf16.mxu0 0
  %1955 = vmatpush2.bf16.msra.mxu0 %v1407
  %1956 = vmatprep.subr.bf16.mxu0 0
  %1957 = vmatpush2.bf16.msra.mxu0 %v1406
  %1958 = vmatprep.subr.bf16.mxu0 0
  %1959 = vmatpush2.bf16.msra.mxu0 %v1405
  %1960 = vmatprep.subr.bf16.mxu0 0
  %1961 = vmatpush2.bf16.msra.mxu0 %v1404
  %1962 = vmatprep.subr.bf16.mxu0 0
  %1963 = vmatpush2.bf16.msra.mxu0 %v1403
  %1964 = vmatprep.subr.bf16.mxu0 0
  %1965 = vmatpush2.bf16.msra.mxu0 %v1402
  %1966 = vmatprep.mubr.bf16.mxu0 %v478
  %1967 = vmatmul.mubr.bf16.gmra.mxu0 %v477
  %v1968 = vpop.f32.mrf.mxu0
  %v1969 = vadd.f32 %v1929, %v1968
  %v1970 = vpop.f32.mrf.mxu0
  %v1971 = vpop.f32.mrf.mxu0
  %v1972 = vpop.f32.mrf.mxu0
  %1973 = vdwg.mxu0
  %1974 = vmatprep.subr.bf16.mxu0 0
  %1975 = vmatpush1.bf16.msra.mxu0 %v1417
  %1976 = vmatprep.subr.bf16.mxu0 0
  %1977 = vmatpush1.bf16.msra.mxu0 %v1416
  %1978 = vmatprep.subr.bf16.mxu0 0
  %1979 = vmatpush1.bf16.msra.mxu0 %v1415
  %1980 = vmatprep.subr.bf16.mxu0 0
  %1981 = vmatpush1.bf16.msra.mxu0 %v1414
  %1982 = vmatprep.subr.bf16.mxu0 0
  %1983 = vmatpush1.bf16.msra.mxu0 %v1413
  %1984 = vmatprep.subr.bf16.mxu0 0
  %1985 = vmatpush1.bf16.msra.mxu0 %v1412
  %1986 = vmatprep.subr.bf16.mxu0 0
  %1987 = vmatpush1.bf16.msra.mxu0 %v1411
  %1988 = vmatprep.subr.bf16.mxu0 0
  %1989 = vmatpush1.bf16.msra.mxu0 %v1410
  %1990 = vmatprep.subr.bf16.mxu0 0
  %1991 = vmatpush2.bf16.msra.mxu0 %v1425
  %1992 = vmatprep.subr.bf16.mxu0 0
  %1993 = vmatpush2.bf16.msra.mxu0 %v1424
  %1994 = vmatprep.subr.bf16.mxu0 0
  %1995 = vmatpush2.bf16.msra.mxu0 %v1423
  %1996 = vmatprep.subr.bf16.mxu0 0
  %1997 = vmatpush2.bf16.msra.mxu0 %v1422
  %1998 = vmatprep.subr.bf16.mxu0 0
  %1999 = vmatpush2.bf16.msra.mxu0 %v1421
  %2000 = vmatprep.subr.bf16.mxu0 0
  %2001 = vmatpush2.bf16.msra.mxu0 %v1420
  %2002 = vmatprep.subr.bf16.mxu0 0
  %2003 = vmatpush2.bf16.msra.mxu0 %v1419
  %2004 = vmatprep.subr.bf16.mxu0 0
  %2005 = vmatpush2.bf16.msra.mxu0 %v1418
  %2006 = vmatprep.mubr.bf16.mxu0 %v480
  %2007 = vmatmul.mubr.bf16.gmra.mxu0 %v479
  %v2008 = vpop.f32.mrf.mxu0
  %v2009 = vadd.f32 %v1969, %v2008
  %v2010 = vpop.f32.mrf.mxu0
  %v2011 = vpop.f32.mrf.mxu0
  %v2012 = vpop.f32.mrf.mxu0
  %2013 = vdwg.mxu0
  %2014 = vmatprep.subr.bf16.mxu0 0
  %2015 = vmatpush1.bf16.msra.mxu0 %v1433
  %2016 = vmatprep.subr.bf16.mxu0 0
  %2017 = vmatpush1.bf16.msra.mxu0 %v1432
  %2018 = vmatprep.subr.bf16.mxu0 0
  %2019 = vmatpush1.bf16.msra.mxu0 %v1431
  %2020 = vmatprep.subr.bf16.mxu0 0
  %2021 = vmatpush1.bf16.msra.mxu0 %v1430
  %2022 = vmatprep.subr.bf16.mxu0 0
  %2023 = vmatpush1.bf16.msra.mxu0 %v1429
  %2024 = vmatprep.subr.bf16.mxu0 0
  %2025 = vmatpush1.bf16.msra.mxu0 %v1428
  %2026 = vmatprep.subr.bf16.mxu0 0
  %2027 = vmatpush1.bf16.msra.mxu0 %v1427
  %2028 = vmatprep.subr.bf16.mxu0 0
  %2029 = vmatpush1.bf16.msra.mxu0 %v1426
  %2030 = vmatprep.subr.bf16.mxu0 0
  %2031 = vmatpush2.bf16.msra.mxu0 %v1441
  %2032 = vmatprep.subr.bf16.mxu0 0
  %2033 = vmatpush2.bf16.msra.mxu0 %v1440
  %2034 = vmatprep.subr.bf16.mxu0 0
  %2035 = vmatpush2.bf16.msra.mxu0 %v1439
  %2036 = vmatprep.subr.bf16.mxu0 0
  %2037 = vmatpush2.bf16.msra.mxu0 %v1438
  %2038 = vmatprep.subr.bf16.mxu0 0
  %2039 = vmatpush2.bf16.msra.mxu0 %v1437
  %2040 = vmatprep.subr.bf16.mxu0 0
  %2041 = vmatpush2.bf16.msra.mxu0 %v1436
  %2042 = vmatprep.subr.bf16.mxu0 0
  %2043 = vmatpush2.bf16.msra.mxu0 %v1435
  %2044 = vmatprep.subr.bf16.mxu0 0
  %2045 = vmatpush2.bf16.msra.mxu0 %v1434
  %2046 = vmatprep.mubr.bf16.mxu0 %v482
  %2047 = vmatmul.mubr.bf16.gmra.mxu0 %v481
  %v2048 = vpop.f32.mrf.mxu0
  %v2049 = vadd.f32 %v2009, %v2048
  %v2050 = vpop.f32.mrf.mxu0
  %v2051 = vpop.f32.mrf.mxu0
  %v2052 = vpop.f32.mrf.mxu0
  %2053 = vdwg.mxu0
  %2054 = vmatprep.subr.bf16.mxu0 0
  %2055 = vmatpush1.bf16.msra.mxu0 %v1449
  %2056 = vmatprep.subr.bf16.mxu0 0
  %2057 = vmatpush1.bf16.msra.mxu0 %v1448
  %2058 = vmatprep.subr.bf16.mxu0 0
  %2059 = vmatpush1.bf16.msra.mxu0 %v1447
  %2060 = vmatprep.subr.bf16.mxu0 0
  %2061 = vmatpush1.bf16.msra.mxu0 %v1446
  %2062 = vmatprep.subr.bf16.mxu0 0
  %2063 = vmatpush1.bf16.msra.mxu0 %v1445
  %2064 = vmatprep.subr.bf16.mxu0 0
  %2065 = vmatpush1.bf16.msra.mxu0 %v1444
  %2066 = vmatprep.subr.bf16.mxu0 0
  %2067 = vmatpush1.bf16.msra.mxu0 %v1443
  %2068 = vmatprep.subr.bf16.mxu0 0
  %2069 = vmatpush1.bf16.msra.mxu0 %v1442
  %2070 = vmatprep.subr.bf16.mxu0 0
  %2071 = vmatpush2.bf16.msra.mxu0 %v1457
  %2072 = vmatprep.subr.bf16.mxu0 0
  %2073 = vmatpush2.bf16.msra.mxu0 %v1456
  %2074 = vmatprep.subr.bf16.mxu0 0
  %2075 = vmatpush2.bf16.msra.mxu0 %v1455
  %2076 = vmatprep.subr.bf16.mxu0 0
  %2077 = vmatpush2.bf16.msra.mxu0 %v1454
  %2078 = vmatprep.subr.bf16.mxu0 0
  %2079 = vmatpush2.bf16.msra.mxu0 %v1453
  %2080 = vmatprep.subr.bf16.mxu0 0
  %2081 = vmatpush2.bf16.msra.mxu0 %v1452
  %2082 = vmatprep.subr.bf16.mxu0 0
  %2083 = vmatpush2.bf16.msra.mxu0 %v1451
  %2084 = vmatprep.subr.bf16.mxu0 0
  %2085 = vmatpush2.bf16.msra.mxu0 %v1450
  %2086 = vmatprep.mubr.bf16.mxu0 %v484
  %2087 = vmatmul.mubr.bf16.gmra.mxu0 %v483
  %v2088 = vpop.f32.mrf.mxu0
  %v2089 = vadd.f32 %v2049, %v2088
  %v2090 = vpop.f32.mrf.mxu0
  %v2091 = vpop.f32.mrf.mxu0
  %v2092 = vpop.f32.mrf.mxu0
  %2093 = vdwg.mxu0
  %2094 = vmatprep.subr.bf16.mxu0 0
  %2095 = vmatpush1.bf16.msra.mxu0 %v1465
  %2096 = vmatprep.subr.bf16.mxu0 0
  %2097 = vmatpush1.bf16.msra.mxu0 %v1464
  %2098 = vmatprep.subr.bf16.mxu0 0
  %2099 = vmatpush1.bf16.msra.mxu0 %v1463
  %2100 = vmatprep.subr.bf16.mxu0 0
  %2101 = vmatpush1.bf16.msra.mxu0 %v1462
  %2102 = vmatprep.subr.bf16.mxu0 0
  %2103 = vmatpush1.bf16.msra.mxu0 %v1461
  %2104 = vmatprep.subr.bf16.mxu0 0
  %2105 = vmatpush1.bf16.msra.mxu0 %v1460
  %2106 = vmatprep.subr.bf16.mxu0 0
  %2107 = vmatpush1.bf16.msra.mxu0 %v1459
  %2108 = vmatprep.subr.bf16.mxu0 0
  %2109 = vmatpush1.bf16.msra.mxu0 %v1458
  %2110 = vmatprep.subr.bf16.mxu0 0
  %2111 = vmatpush2.bf16.msra.mxu0 %v1473
  %2112 = vmatprep.subr.bf16.mxu0 0
  %2113 = vmatpush2.bf16.msra.mxu0 %v1472
  %2114 = vmatprep.subr.bf16.mxu0 0
  %2115 = vmatpush2.bf16.msra.mxu0 %v1471
  %2116 = vmatprep.subr.bf16.mxu0 0
  %2117 = vmatpush2.bf16.msra.mxu0 %v1470
  %2118 = vmatprep.subr.bf16.mxu0 0
  %2119 = vmatpush2.bf16.msra.mxu0 %v1469
  %2120 = vmatprep.subr.bf16.mxu0 0
  %2121 = vmatpush2.bf16.msra.mxu0 %v1468
  %2122 = vmatprep.subr.bf16.mxu0 0
  %2123 = vmatpush2.bf16.msra.mxu0 %v1467
  %2124 = vmatprep.subr.bf16.mxu0 0
  %2125 = vmatpush2.bf16.msra.mxu0 %v1466
  %2126 = vmatprep.mubr.bf16.mxu0 %v486
  %2127 = vmatmul.mubr.bf16.gmra.mxu0 %v485
  %v2128 = vpop.f32.mrf.mxu0
  %v2129 = vadd.f32 %v2089, %v2128
  %v2130 = vpop.f32.mrf.mxu0
  %v2131 = vpop.f32.mrf.mxu0
  %v2132 = vpop.f32.mrf.mxu0
  %2133 = vdwg.mxu0
  %2134 = vmatprep.subr.bf16.mxu0 0
  %2135 = vmatpush1.bf16.msra.mxu0 %v1481
  %2136 = vmatprep.subr.bf16.mxu0 0
  %2137 = vmatpush1.bf16.msra.mxu0 %v1480
  %2138 = vmatprep.subr.bf16.mxu0 0
  %2139 = vmatpush1.bf16.msra.mxu0 %v1479
  %2140 = vmatprep.subr.bf16.mxu0 0
  %2141 = vmatpush1.bf16.msra.mxu0 %v1478
  %2142 = vmatprep.subr.bf16.mxu0 0
  %2143 = vmatpush1.bf16.msra.mxu0 %v1477
  %2144 = vmatprep.subr.bf16.mxu0 0
  %2145 = vmatpush1.bf16.msra.mxu0 %v1476
  %2146 = vmatprep.subr.bf16.mxu0 0
  %2147 = vmatpush1.bf16.msra.mxu0 %v1475
  %2148 = vmatprep.subr.bf16.mxu0 0
  %2149 = vmatpush1.bf16.msra.mxu0 %v1474
  %2150 = vmatprep.subr.bf16.mxu0 0
  %2151 = vmatpush2.bf16.msra.mxu0 %v1489
  %2152 = vmatprep.subr.bf16.mxu0 0
  %2153 = vmatpush2.bf16.msra.mxu0 %v1488
  %2154 = vmatprep.subr.bf16.mxu0 0
  %2155 = vmatpush2.bf16.msra.mxu0 %v1487
  %2156 = vmatprep.subr.bf16.mxu0 0
  %2157 = vmatpush2.bf16.msra.mxu0 %v1486
  %2158 = vmatprep.subr.bf16.mxu0 0
  %2159 = vmatpush2.bf16.msra.mxu0 %v1485
  %2160 = vmatprep.subr.bf16.mxu0 0
  %2161 = vmatpush2.bf16.msra.mxu0 %v1484
  %2162 = vmatprep.subr.bf16.mxu0 0
  %2163 = vmatpush2.bf16.msra.mxu0 %v1483
  %2164 = vmatprep.subr.bf16.mxu0 0
  %2165 = vmatpush2.bf16.msra.mxu0 %v1482
  %2166 = vmatprep.mubr.bf16.mxu0 %v488
  %2167 = vmatmul.mubr.bf16.gmra.mxu0 %v487
  %v2168 = vpop.f32.mrf.mxu0
  %v2169 = vadd.f32 %v2129, %v2168
  %v2170 = vpop.f32.mrf.mxu0
  %v2171 = vpop.f32.mrf.mxu0
  %v2172 = vpop.f32.mrf.mxu0
  %2173 = vdwg.mxu0
  %2174 = vmatprep.subr.bf16.mxu0 0
  %2175 = vmatpush1.bf16.msra.mxu0 0
  %2176 = vmatprep.subr.bf16.mxu0 0
  %2177 = vmatpush1.bf16.msra.mxu0 0
  %2178 = vmatprep.subr.bf16.mxu0 0
  %2179 = vmatpush1.bf16.msra.mxu0 0
  %2180 = vmatprep.subr.bf16.mxu0 0
  %2181 = vmatpush1.bf16.msra.mxu0 0
  %2182 = vmatprep.subr.bf16.mxu0 0
  %2183 = vmatpush1.bf16.msra.mxu0 %v1493
  %2184 = vmatprep.subr.bf16.mxu0 0
  %2185 = vmatpush1.bf16.msra.mxu0 %v1492
  %2186 = vmatprep.subr.bf16.mxu0 0
  %2187 = vmatpush1.bf16.msra.mxu0 %v1491
  %2188 = vmatprep.subr.bf16.mxu0 0
  %2189 = vmatpush1.bf16.msra.mxu0 %v1490
  %2190 = vmatprep.subr.bf16.mxu0 0
  %2191 = vmatpush2.bf16.msra.mxu0 0
  %2192 = vmatprep.subr.bf16.mxu0 0
  %2193 = vmatpush2.bf16.msra.mxu0 0
  %2194 = vmatprep.subr.bf16.mxu0 0
  %2195 = vmatpush2.bf16.msra.mxu0 0
  %2196 = vmatprep.subr.bf16.mxu0 0
  %2197 = vmatpush2.bf16.msra.mxu0 0
  %2198 = vmatprep.subr.bf16.mxu0 0
  %2199 = vmatpush2.bf16.msra.mxu0 0
  %2200 = vmatprep.subr.bf16.mxu0 0
  %2201 = vmatpush2.bf16.msra.mxu0 0
  %2202 = vmatprep.subr.bf16.mxu0 0
  %2203 = vmatpush2.bf16.msra.mxu0 0
  %2204 = vmatprep.subr.bf16.mxu0 0
  %2205 = vmatpush2.bf16.msra.mxu0 0
  %2206 = vmatprep.mubr.bf16.mxu0 0
  %2207 = vmatmul.mubr.bf16.gmra.mxu0 %v1692
  %v2208 = vpop.f32.mrf.mxu0
  %v2209 = vadd.f32 %v2169, %v2208
  %v2210 = vpop.f32.mrf.mxu0
  %v2211 = vpop.f32.mrf.mxu0
  %v2212 = vpop.f32.mrf.mxu0
  %2213 = vdwg.mxu0
  %2214 = vst [vmem:[%s3] sm:$0xff] %v2209
  // Predicated region
  $region14: #{cnn_forward.5} parent=0 // pred_check
    _
  $region15: #{cnn_forward.5} parent=0 // pred_check_branch
    %2216 = sbr.rel (0) target = $region17
  $region16: #{cnn_forward.5} parent=0 // pred_region
    _
  $region17: #{cnn_forward.5} parent=0 // pred_fallthru
    _
  // Predicated region
  $region18: #{cnn_forward.5} parent=0 // pred_check
    _
  $region19: #{cnn_forward.5} parent=0 // pred_check_branch
    %2218 = sbr.rel (0) target = $region21
  $region20: #{cnn_forward.5} parent=0 // pred_region
    _
  $region21: #{cnn_forward.5} parent=0 // pred_fallthru
    _

</llo_original>
